<compile_context>
chip_gen: v6e
topology: v6e:2x2x1
jax: 0.10.0
libtpu: 0.0.40
codegen_flags: <defaults>
</compile_context>

<pallas_src>
import functools

import jax
import jax.numpy as jnp
from jax.experimental import pallas as pl
from jax.experimental.pallas import tpu as pltpu


def inception_aux_kernel(x_ref, w0_ref, s0_ref, t0_ref,
                         w1_ref, s1_ref, t1_ref, wf_ref, bf_ref,
                         out_ref, h0p_ref, *, B, Hp, Wp, K1):
    j = pl.program_id(0)
    Cmid = w0_ref.shape[1]
    Ho1 = Hp - K1 + 1
    Wo1 = Wp - K1 + 1
    npos = Ho1 * Wo1

    # ---- grid step 0: pool (folded into w0) + conv0 + bn0 + relu, build the
    #      stacked im2col matrix for conv1, and seed the fc accumulator with
    #      the bias.
    @pl.when(j == 0)
    def _():
        h0 = jnp.dot(x_ref[...], w0_ref[...],
                     preferred_element_type=jnp.float32)
        h0 = jnp.maximum(h0 * s0_ref[...] + t0_ref[...], 0.0)
        h0 = h0.reshape(B, Hp, Wp, Cmid)
        rows = [h0[:, p:p + K1, q:q + K1, :].reshape(B, K1 * K1 * Cmid)
                for p in range(Ho1) for q in range(Wo1)]
        im2col = rows[0] if npos == 1 else jnp.concatenate(rows, axis=0)
        h0p_ref[...] = im2col.astype(jnp.bfloat16)
        out_ref[...] = jnp.broadcast_to(bf_ref[...], out_ref.shape)

    # ---- every grid step: one CBLK-wide block of conv1 output channels.
    # One bf16 MXU matmul (M = npos*B) with f32 accumulation, bn1 + relu,
    # adaptive average over the conv1 output positions, then this block's
    # partial fc contribution accumulated into the resident output.
    y = jnp.dot(h0p_ref[...], w1_ref[...],
                preferred_element_type=jnp.float32)
    y = jnp.maximum(y * s1_ref[...] + t1_ref[...], 0.0)
    feat = y.reshape(npos, B, y.shape[-1]).sum(axis=0) * (1.0 / npos)
    out_ref[...] += jnp.dot(feat, wf_ref[...],
                            preferred_element_type=jnp.float32)


def inception_aux(x_nchw, params, num_classes, eps=1e-3):
    """InceptionAux forward. x_nchw: (B, Cin, H, W). Eval-mode BatchNorm."""
    (w0, g0, b0, m0, v0, w1, g1, b1, m1, v1, wf, bfc) = params

    x = jnp.transpose(x_nchw, (0, 2, 3, 1)).astype(jnp.float32)   # NHWC
    B, H, W, Cin = x.shape
    Cmid = w0.shape[0]                   # 128
    C1, _, K1, _ = w1.shape              # 768, 128, 5, 5

    # avg_pool2d(kernel_size=2, stride=3) output size (valid pooling).
    Hp = (H - 2) // 3 + 1
    Wp = (W - 2) // 3 + 1
    assert Hp >= K1 and Wp >= K1, "input too small for the 5x5 valid conv1"
    Ho1, Wo1 = Hp - K1 + 1, Wp - K1 + 1
    npos = Ho1 * Wo1

    # Pooling windows concatenated along the channel axis (pure layout); the
    # 1/4 averaging is folded into the conv0 weight so pool+conv0 become one
    # lane-dense matmul inside the kernel.
    wins = [x[:, ky:ky + 3 * (Hp - 1) + 1:3, kx:kx + 3 * (Wp - 1) + 1:3, :]
            for ky in range(2) for kx in range(2)]
    xflat = jnp.concatenate(wins, axis=-1).reshape(B * Hp * Wp, 4 * Cin)

    # Fold BatchNorm (inference, eps=1e-3) into per-channel scale/shift.
    s0 = (g0 / jnp.sqrt(v0 + eps)).astype(jnp.float32)
    t0 = (b0 - m0 * s0).astype(jnp.float32)
    s1 = (g1 / jnp.sqrt(v1 + eps)).astype(jnp.float32)
    t1 = (b1 - m1 * s1).astype(jnp.float32)

    # conv0 (1x1) as (4*Cin, Cmid) with the pooling average folded in.
    w0_mat = jnp.transpose(w0[:, :, 0, 0], (1, 0)).astype(jnp.float32)
    w0_cat = jnp.concatenate([w0_mat] * 4, axis=0) * 0.25

    # conv1 (5x5 valid) as a single im2col matmul; rows ordered (i, j, ci).
    w1_mat = jnp.transpose(w1, (2, 3, 1, 0)).reshape(K1 * K1 * Cmid, C1)
    w1_mat = w1_mat.astype(jnp.bfloat16)          # bf16 MXU path, f32 acc

    # fc, padded to a lane-dense multiple of 128 output columns.
    ncpad = ((num_classes + 127) // 128) * 128
    wf_mat = jnp.zeros((C1, ncpad), jnp.float32).at[:, :num_classes].set(
        jnp.transpose(wf, (1, 0)).astype(jnp.float32))
    bf_pad = jnp.zeros((1, ncpad), jnp.float32).at[0, :num_classes].set(
        bfc.astype(jnp.float32))

    # 256-wide conv1 output-channel blocks (matches v6e/v7x MXU width, fewer
    # grid steps); fall back to 128 if C1 isn't a multiple of 256.
    CBLK = 256 if C1 % 256 == 0 else 128
    assert C1 % CBLK == 0
    nblk = C1 // CBLK

    kernel = functools.partial(inception_aux_kernel, B=B, Hp=Hp, Wp=Wp, K1=K1)

    flops = 2 * (B * Hp * Wp * 4 * Cin * Cmid
                 + npos * B * K1 * K1 * Cmid * C1
                 + B * C1 * ncpad)
    bytes_accessed = int(xflat.size * 4 + w0_cat.size * 4 + w1_mat.size * 2
                         + wf_mat.size * 4 + (2 * Cmid + 2 * C1 + ncpad) * 4
                         + B * ncpad * 4)

    out = pl.pallas_call(
        kernel,
        out_shape=jax.ShapeDtypeStruct((B, ncpad), jnp.float32),
        grid_spec=pltpu.PrefetchScalarGridSpec(
            num_scalar_prefetch=0,
            grid=(nblk,),
            in_specs=[
                pl.BlockSpec((B * Hp * Wp, 4 * Cin), lambda j: (0, 0)),   # xflat
                pl.BlockSpec((4 * Cin, Cmid), lambda j: (0, 0)),          # w0
                pl.BlockSpec((1, Cmid), lambda j: (0, 0)),                # s0
                pl.BlockSpec((1, Cmid), lambda j: (0, 0)),                # t0
                pl.BlockSpec((K1 * K1 * Cmid, CBLK), lambda j: (0, j)),   # w1 blk
                pl.BlockSpec((1, CBLK), lambda j: (0, j)),                # s1 blk
                pl.BlockSpec((1, CBLK), lambda j: (0, j)),                # t1 blk
                pl.BlockSpec((CBLK, ncpad), lambda j: (j, 0)),            # wf blk
                pl.BlockSpec((1, ncpad), lambda j: (0, 0)),               # fc bias
            ],
            out_specs=pl.BlockSpec((B, ncpad), lambda j: (0, 0)),
            scratch_shapes=[pltpu.VMEM((npos * B, K1 * K1 * Cmid),
                                       jnp.bfloat16)],
        ),
        compiler_params=pltpu.CompilerParams(
            # Single grid axis accumulates the fc output -> reduction axis.
            # (No worthwhile independent axis at these shapes for megacore.)
            dimension_semantics=("arbitrary",),
            vmem_limit_bytes=32 * 1024 * 1024),
        cost_estimate=pl.CostEstimate(flops=flops, transcendentals=0,
                                      bytes_accessed=bytes_accessed),
    )(xflat, w0_cat, s0.reshape(1, Cmid), t0.reshape(1, Cmid),
      w1_mat, s1.reshape(1, C1), t1.reshape(1, C1), wf_mat, bf_pad)

    return out[:, :num_classes]


def reference_inception_aux(x, params, eps=1e-3):
    """Plain-JAX reference matching the PyTorch InceptionAux (eval-mode BN)."""
    w0, g0, b0, m0, v0, w1, g1, b1, m1, v1, wf, bfc = params

    p = jax.lax.reduce_window(x, 0.0, jax.lax.add,
                              (1, 1, 2, 2), (1, 1, 3, 3), 'VALID') / 4.0

    def conv(a, w):
        return jax.lax.conv_general_dilated(
            a, w, (1, 1), 'VALID', dimension_numbers=('NCHW', 'OIHW', 'NCHW'))

    def bn(a, g, b, m, v):
        return ((a - m[None, :, None, None])
                / jnp.sqrt(v[None, :, None, None] + eps)
                * g[None, :, None, None] + b[None, :, None, None])

    h = jax.nn.relu(bn(conv(p, w0), g0, b0, m0, v0))
    h = jax.nn.relu(bn(conv(h, w1), g1, b1, m1, v1))
    h = jnp.mean(h, axis=(2, 3))          # adaptive_avg_pool2d((1,1)) + flatten
    return h @ wf.T + bfc


if __name__ == "__main__":
    B, Cin, H, W = 2, 4, 16, 16
    NUM_CLASSES = 10
    Cmid, C1, K1 = 128, 768, 5

    key = jax.random.PRNGKey(0)
    ks = jax.random.split(key, 13)

    x = jax.random.normal(ks[0], (B, Cin, H, W), dtype=jnp.float32)

    w0 = jax.random.normal(ks[1], (Cmid, Cin, 1, 1), jnp.float32) / jnp.sqrt(Cin)
    g0 = 1.0 + 0.1 * jax.random.normal(ks[2], (Cmid,), jnp.float32)
    b0 = 0.1 * jax.random.normal(ks[3], (Cmid,), jnp.float32)
    m0 = 0.1 * jax.random.normal(ks[4], (Cmid,), jnp.float32)
    v0 = 1.0 + 0.1 * jax.random.uniform(ks[5], (Cmid,), jnp.float32)

    w1 = (jax.random.normal(ks[6], (C1, Cmid, K1, K1), jnp.float32)
          / jnp.sqrt(Cmid * K1 * K1))
    g1 = 1.0 + 0.1 * jax.random.normal(ks[7], (C1,), jnp.float32)
    b1 = 0.1 * jax.random.normal(ks[8], (C1,), jnp.float32)
    m1 = 0.1 * jax.random.normal(ks[9], (C1,), jnp.float32)
    v1 = 1.0 + 0.1 * jax.random.uniform(ks[10], (C1,), jnp.float32)

    wf = jax.random.normal(ks[11], (NUM_CLASSES, C1), jnp.float32) / jnp.sqrt(C1)
    bfc = 0.1 * jax.random.normal(ks[12], (NUM_CLASSES,), jnp.float32)

    params = (w0, g0, b0, m0, v0, w1, g1, b1, m1, v1, wf, bfc)

    out = jax.block_until_ready(inception_aux(x, params, NUM_CLASSES))
    ref = jax.block_until_ready(reference_inception_aux(x, params))

    assert out.shape == (B, NUM_CLASSES), out.shape
    max_err = float(jnp.max(jnp.abs(out - ref)))
    assert jnp.allclose(out, ref, atol=2e-2, rtol=2e-2), max_err

    print("KERNEL_OK")
</pallas_src>

<mosaic_0001>
module attributes {stable_mosaic.version = 11 : i64} {
  func.func @inception_aux_kernel(%arg0: i32, %arg1: memref<50x16xf32, #tpu.memory_space<vmem>>, %arg2: memref<16x128xf32, #tpu.memory_space<vmem>>, %arg3: memref<1x128xf32, #tpu.memory_space<vmem>>, %arg4: memref<1x128xf32, #tpu.memory_space<vmem>>, %arg5: memref<3200x256xbf16, #tpu.memory_space<vmem>>, %arg6: memref<1x256xf32, #tpu.memory_space<vmem>>, %arg7: memref<1x256xf32, #tpu.memory_space<vmem>>, %arg8: memref<256x128xf32, #tpu.memory_space<vmem>>, %arg9: memref<1x128xf32, #tpu.memory_space<vmem>>, %arg10: memref<2x128xf32, #tpu.memory_space<vmem>>, %arg11: memref<2x3200xbf16, #tpu.memory_space<vmem>>) attributes {dimension_semantics = [#tpu.dimension_semantics<arbitrary>], iteration_bounds = array<i64: 3>, scalar_prefetch = 0 : i64, scratch_operands = 1 : i64, tpu.core_type = #tpu.core_type<tc>, window_params = [{pipeline_mode = #tpu.pipeline_mode<synchronous>, transform_indices = @transform_0, window_bounds = array<i64: 50, 16>}, {pipeline_mode = #tpu.pipeline_mode<synchronous>, transform_indices = @transform_1, window_bounds = array<i64: 16, 128>}, {pipeline_mode = #tpu.pipeline_mode<synchronous>, transform_indices = @transform_2, window_bounds = array<i64: 1, 128>}, {pipeline_mode = #tpu.pipeline_mode<synchronous>, transform_indices = @transform_3, window_bounds = array<i64: 1, 128>}, {transform_indices = @transform_4, window_bounds = array<i64: 3200, 256>}, {transform_indices = @transform_5, window_bounds = array<i64: 1, 256>}, {transform_indices = @transform_6, window_bounds = array<i64: 1, 256>}, {transform_indices = @transform_7, window_bounds = array<i64: 256, 128>}, {pipeline_mode = #tpu.pipeline_mode<synchronous>, transform_indices = @transform_8, window_bounds = array<i64: 1, 128>}, {pipeline_mode = #tpu.pipeline_mode<synchronous>, transform_indices = @transform_9, window_bounds = array<i64: 2, 128>}]} {
    %c0_i32 = arith.constant 0 : i32
    %0 = arith.cmpi eq, %arg0, %c0_i32 : i32
    %1 = arith.extui %0 : i1 to i32
    %c0_i32_0 = arith.constant 0 : i32
    %2 = arith.cmpi ne, %1, %c0_i32_0 : i32
    scf.if %2 {
      %c0_18 = arith.constant 0 : index
      %c0_19 = arith.constant 0 : index
      %23 = vector.load %arg1[%c0_18, %c0_19] : memref<50x16xf32, #tpu.memory_space<vmem>>, vector<50x16xf32>
      %c0_20 = arith.constant 0 : index
      %c0_21 = arith.constant 0 : index
      %24 = vector.load %arg2[%c0_20, %c0_21] : memref<16x128xf32, #tpu.memory_space<vmem>>, vector<16x128xf32>
      %cst_22 = arith.constant dense<0.000000e+00> : vector<50x128xf32>
      %25 = tpu.matmul %23, %24, %cst_22 {dimension_numbers = #tpu.dot_dimension_numbers<[1], [0], [0], [1], [0, 0, 1, 1], [], []>} : vector<50x16xf32>, vector<16x128xf32>, vector<50x128xf32> -> vector<50x128xf32>
      %c0_23 = arith.constant 0 : index
      %c0_24 = arith.constant 0 : index
      %26 = vector.load %arg3[%c0_23, %c0_24] : memref<1x128xf32, #tpu.memory_space<vmem>>, vector<1x128xf32>
      %27 = vector.broadcast %26 : vector<1x128xf32> to vector<50x128xf32>
      %28 = arith.mulf %25, %27 : vector<50x128xf32>
      %c0_25 = arith.constant 0 : index
      %c0_26 = arith.constant 0 : index
      %29 = vector.load %arg4[%c0_25, %c0_26] : memref<1x128xf32, #tpu.memory_space<vmem>>, vector<1x128xf32>
      %30 = vector.broadcast %29 : vector<1x128xf32> to vector<50x128xf32>
      %31 = arith.addf %28, %30 : vector<50x128xf32>
      %cst_27 = arith.constant 0.000000e+00 : f32
      %32 = vector.broadcast %cst_27 : f32 to vector<50x128xf32>
      %33 = arith.maximumf %31, %32 : vector<50x128xf32>
      %34 = vector.shape_cast %33 : vector<50x128xf32> to vector<2x5x5x128xf32>
      %35 = vector.shape_cast %34 : vector<2x5x5x128xf32> to vector<2x3200xf32>
      %36 = arith.truncf %35 : vector<2x3200xf32> to vector<2x3200xbf16>
      %c0_28 = arith.constant 0 : index
      %c0_29 = arith.constant 0 : index
      %37 = vector.load %arg11[%c0_28, %c0_29] : memref<2x3200xbf16, #tpu.memory_space<vmem>>, vector<2x3200xbf16>
      tpu.vector_store %arg11[%c0_28, %c0_29], %36 {strides = array<i32>} : memref<2x3200xbf16, #tpu.memory_space<vmem>>, vector<2x3200xbf16>,
      %c0_30 = arith.constant 0 : index
      %c0_31 = arith.constant 0 : index
      %38 = vector.load %arg9[%c0_30, %c0_31] : memref<1x128xf32, #tpu.memory_space<vmem>>, vector<1x128xf32>
      %39 = vector.shape_cast %38 : vector<1x128xf32> to vector<1x128xf32>
      %40 = vector.broadcast %39 : vector<1x128xf32> to vector<2x128xf32>
      %c0_32 = arith.constant 0 : index
      %c0_33 = arith.constant 0 : index
      %41 = vector.load %arg10[%c0_32, %c0_33] : memref<2x128xf32, #tpu.memory_space<vmem>>, vector<2x128xf32>
      tpu.vector_store %arg10[%c0_32, %c0_33], %40 {strides = array<i32>} : memref<2x128xf32, #tpu.memory_space<vmem>>, vector<2x128xf32>,
    } else {
    }
    %c0 = arith.constant 0 : index
    %c0_1 = arith.constant 0 : index
    %3 = vector.load %arg11[%c0, %c0_1] : memref<2x3200xbf16, #tpu.memory_space<vmem>>, vector<2x3200xbf16>
    %c0_2 = arith.constant 0 : index
    %c0_3 = arith.constant 0 : index
    %4 = vector.load %arg5[%c0_2, %c0_3] : memref<3200x256xbf16, #tpu.memory_space<vmem>>, vector<3200x256xbf16>
    %cst = arith.constant dense<0.000000e+00> : vector<2x256xf32>
    %5 = tpu.matmul %3, %4, %cst {dimension_numbers = #tpu.dot_dimension_numbers<[1], [0], [0], [1], [0, 0, 1, 1], [], []>} : vector<2x3200xbf16>, vector<3200x256xbf16>, vector<2x256xf32> -> vector<2x256xf32>
    %c0_4 = arith.constant 0 : index
    %c0_5 = arith.constant 0 : index
    %6 = vector.load %arg6[%c0_4, %c0_5] : memref<1x256xf32, #tpu.memory_space<vmem>>, vector<1x256xf32>
    %7 = vector.broadcast %6 : vector<1x256xf32> to vector<2x256xf32>
    %8 = arith.mulf %5, %7 : vector<2x256xf32>
    %c0_6 = arith.constant 0 : index
    %c0_7 = arith.constant 0 : index
    %9 = vector.load %arg7[%c0_6, %c0_7] : memref<1x256xf32, #tpu.memory_space<vmem>>, vector<1x256xf32>
    %10 = vector.broadcast %9 : vector<1x256xf32> to vector<2x256xf32>
    %11 = arith.addf %8, %10 : vector<2x256xf32>
    %cst_8 = arith.constant 0.000000e+00 : f32
    %12 = vector.broadcast %cst_8 : f32 to vector<2x256xf32>
    %13 = arith.maximumf %11, %12 : vector<2x256xf32>
    %14 = vector.shape_cast %13 : vector<2x256xf32> to vector<1x2x256xf32>
    %cst_9 = arith.constant dense<0.000000e+00> : vector<2x256xf32>
    %15 = vector.multi_reduction <add>, %14, %cst_9 [0] : vector<1x2x256xf32> to vector<2x256xf32>
    %cst_10 = arith.constant 1.000000e+00 : f32
    %16 = vector.broadcast %cst_10 : f32 to vector<2x256xf32>
    %17 = arith.mulf %15, %16 : vector<2x256xf32>
    %c0_11 = arith.constant 0 : index
    %c0_12 = arith.constant 0 : index
    %18 = vector.load %arg10[%c0_11, %c0_12] : memref<2x128xf32, #tpu.memory_space<vmem>>, vector<2x128xf32>
    %c0_13 = arith.constant 0 : index
    %c0_14 = arith.constant 0 : index
    %19 = vector.load %arg8[%c0_13, %c0_14] : memref<256x128xf32, #tpu.memory_space<vmem>>, vector<256x128xf32>
    %cst_15 = arith.constant dense<0.000000e+00> : vector<2x128xf32>
    %20 = tpu.matmul %17, %19, %cst_15 {dimension_numbers = #tpu.dot_dimension_numbers<[1], [0], [0], [1], [0, 0, 1, 1], [], []>} : vector<2x256xf32>, vector<256x128xf32>, vector<2x128xf32> -> vector<2x128xf32>
    %21 = arith.addf %18, %20 : vector<2x128xf32>
    %c0_16 = arith.constant 0 : index
    %c0_17 = arith.constant 0 : index
    %22 = vector.load %arg10[%c0_16, %c0_17] : memref<2x128xf32, #tpu.memory_space<vmem>>, vector<2x128xf32>
    tpu.vector_store %arg10[%c0_16, %c0_17], %21 {strides = array<i32>} : memref<2x128xf32, #tpu.memory_space<vmem>>, vector<2x128xf32>,
    return
  }
  func.func @transform_0(%arg0: i32) -> (i32, i32) {
    %c0_i32 = arith.constant 0 : i32
    %c0_i32_0 = arith.constant 0 : i32
    %c0_i32_1 = arith.constant 0 : i32
    return %c0_i32, %c0_i32_0 : i32, i32
  }
  func.func @transform_1(%arg0: i32) -> (i32, i32) {
    %c0_i32 = arith.constant 0 : i32
    %c0_i32_0 = arith.constant 0 : i32
    %c0_i32_1 = arith.constant 0 : i32
    return %c0_i32, %c0_i32_0 : i32, i32
  }
  func.func @transform_2(%arg0: i32) -> (i32, i32) {
    %c0_i32 = arith.constant 0 : i32
    %c0_i32_0 = arith.constant 0 : i32
    %c0_i32_1 = arith.constant 0 : i32
    return %c0_i32, %c0_i32_0 : i32, i32
  }
  func.func @transform_3(%arg0: i32) -> (i32, i32) {
    %c0_i32 = arith.constant 0 : i32
    %c0_i32_0 = arith.constant 0 : i32
    %c0_i32_1 = arith.constant 0 : i32
    return %c0_i32, %c0_i32_0 : i32, i32
  }
  func.func @transform_4(%arg0: i32) -> (i32, i32) {
    %c0_i32 = arith.constant 0 : i32
    %c0_i32_0 = arith.constant 0 : i32
    return %c0_i32, %arg0 : i32, i32
  }
  func.func @transform_5(%arg0: i32) -> (i32, i32) {
    %c0_i32 = arith.constant 0 : i32
    %c0_i32_0 = arith.constant 0 : i32
    return %c0_i32, %arg0 : i32, i32
  }
  func.func @transform_6(%arg0: i32) -> (i32, i32) {
    %c0_i32 = arith.constant 0 : i32
    %c0_i32_0 = arith.constant 0 : i32
    return %c0_i32, %arg0 : i32, i32
  }
  func.func @transform_7(%arg0: i32) -> (i32, i32) {
    %c0_i32 = arith.constant 0 : i32
    %c0_i32_0 = arith.constant 0 : i32
    return %arg0, %c0_i32 : i32, i32
  }
  func.func @transform_8(%arg0: i32) -> (i32, i32) {
    %c0_i32 = arith.constant 0 : i32
    %c0_i32_0 = arith.constant 0 : i32
    %c0_i32_1 = arith.constant 0 : i32
    return %c0_i32, %c0_i32_0 : i32, i32
  }
  func.func @transform_9(%arg0: i32) -> (i32, i32) {
    %c0_i32 = arith.constant 0 : i32
    %c0_i32_0 = arith.constant 0 : i32
    %c0_i32_1 = arith.constant 0 : i32
    return %c0_i32, %c0_i32_0 : i32, i32
  }
}

</mosaic_0001>

<llo_original>
// kernel: tpu_custom_call.1
$region0: #{tpu_custom_call.1}
  #allocation0 [shape = 'u32[]', space=smem, size = 0x4, offset = 0x4, fixed_abs, tag = 'smem constant byte address 0x4 - core index']
  #allocation1 [shape = 'u32[144,128]{1,0:T(1,128)}', space=vmem, size = 0x12000, scoped, tag = 'internal scratch']
  #allocation2 [shape = 'bf16[2,3200]{1,0:T(2,128)(2,1)}', space=vmem, size = 0x3200, scoped, tag = 'scratch operand']
  %s0 = inlined_call_operand.vmem [shape: f32[50,16], index: 0, kind: input, shape index: {}]
  %s1 = inlined_call_operand.hbm [shape: f32[16,128], index: 1, kind: input, shape index: {}]
  %s2 = inlined_call_operand.hbm [shape: f32[1,128], index: 2, kind: input, shape index: {}]
  %s3 = inlined_call_operand.hbm [shape: f32[1,128], index: 3, kind: input, shape index: {}]
  %s4 = inlined_call_operand.hbm [shape: bf16[3200,768], index: 4, kind: input, shape index: {}]
  %s5 = inlined_call_operand.hbm [shape: f32[1,768], index: 5, kind: input, shape index: {}]
  %s6 = inlined_call_operand.hbm [shape: f32[1,768], index: 6, kind: input, shape index: {}]
  %s7 = inlined_call_operand.hbm [shape: f32[768,128], index: 7, kind: input, shape index: {}]
  %s8 = inlined_call_operand.hbm [shape: f32[1,128], index: 8, kind: input, shape index: {}]
  %s9 = inlined_call_operand.hbm [shape: f32[2,128], index: 9, kind: output, shape index: {}]
  %s10 = sld [smem:[#allocation0]]
  $region105: #{tpu_custom_call.1} parent=0
    _
  %s12 = ssub.s32 1, %s10
  %s13 = scalar_select 0, %s12, %s10
  $region1: #{tpu_custom_call.1} parent=0
    #allocation3 [shape = 'u8[8192]{0}', space=vmem, size = 0x2000, scoped, tag = 'input window, operand 1, single buffered']
    #allocation4 [shape = 's32[2]{0}', space=sflag, size = 0x8, scoped, tag = 'scoped memory for tpu_custom_call.1']
    #allocation5 [shape = 's32[2]{0}', space=sflag, size = 0x8, scoped, tag = 'scoped memory for tpu_custom_call.1']
    #allocation6 [shape = 'u8[512]{0}', space=vmem, size = 0x400, scoped, tag = 'input window, operand 2, single buffered']
    #allocation7 [shape = 's32[1]{0}', space=sflag, size = 0x4, scoped, tag = 'scoped memory for tpu_custom_call.1']
    #allocation8 [shape = 'u8[512]{0}', space=vmem, size = 0x400, scoped, tag = 'input window, operand 3, single buffered']
    #allocation9 [shape = 'u8[3276800]{0}', space=vmem, size = 0x320000, scoped, tag = 'input window, operand 4']
    #allocation10 [shape = 's32[2]{0}', space=sflag, size = 0x8, scoped, tag = 'scoped memory for tpu_custom_call.1']
    #allocation11 [shape = 'u8[2048]{0}', space=vmem, size = 0x800, scoped, tag = 'input window, operand 5']
    #allocation12 [shape = 'u8[2048]{0}', space=vmem, size = 0x800, scoped, tag = 'input window, operand 6']
    #allocation13 [shape = 's32[2]{0}', space=sflag, size = 0x8, scoped, tag = 'scoped memory for tpu_custom_call.1']
    #allocation14 [shape = 'u8[262144]{0}', space=vmem, size = 0x40000, scoped, tag = 'input window, operand 7']
    #allocation15 [shape = 'u8[512]{0}', space=vmem, size = 0x400, scoped, tag = 'input window, operand 8, single buffered']
    #allocation16 [shape = 's32[1]{0}', space=sflag, size = 0x4, scoped, tag = 'scoped memory for tpu_custom_call.1']
    #allocation17 [shape = 'u8[1024]{0}', space=vmem, size = 0x400, scoped, tag = 'output window, operand 0, single buffered']
    %14 = vsyncpa [#allocation4], 0
    %15 = vsyncpa [#allocation7], 0
    %16 = vsyncpa [#allocation10], 0
    %s17 = scalar_lea.sflag [#allocation10], 1
    %18 = vsyncpa %s17, 0
    %19 = vsyncpa [#allocation13], 0
    %s20 = scalar_lea.sflag [#allocation13], 1
    %21 = vsyncpa %s20, 0
    %22 = vsyncpa [#allocation16], 0
    %23 = vsyncpa [#allocation5], 0
    loop: start=0, step=1, limit=5
    $region2: #{tpu_custom_call.1} parent=1 // loop_pre_header
      _
    $region3: #{tpu_custom_call.1} parent=1 // loop_header
      %s25 = sphi 0, %s29
      %p26 = scmp.ge.s32.totalorder %s25, 5
      %s33 = sphi 0, %s33
      %s35 = sphi 0, %s33
      %s36 = sphi 0, %s35
      %s50 = sphi 0, %s36
      %s54 = sphi 0, %s54
      %s56 = sphi 0, %s54
      %s57 = sphi 0, %s56
      %s71 = sphi 0, %s57
      %s75 = sphi 0, %s75
      %s77 = sphi 0, %s75
      %s78 = sphi 0, %s77
      %s92 = sphi 0, %s78
      %s96 = sphi 0, %s96
      %s98 = sphi 0, %s96
      %s99 = sphi 0, %s98
      %s113 = sphi 0, %s99
      %s119 = sphi 0, %s121
      %s122 = sphi 0, %s119
      %s123 = sphi 0, %s122
      %s139 = sphi 0, %s123
      %s145 = sphi 0, %s147
      %s148 = sphi 0, %s145
      %s149 = sphi 0, %s148
      %s165 = sphi 0, %s149
      %s171 = sphi 0, %s173
      %s174 = sphi 0, %s171
      %s175 = sphi 0, %s174
      %s191 = sphi 0, %s175
      %s197 = sphi 0, %s199
      %s200 = sphi 0, %s197
      %s201 = sphi 0, %s200
      %s217 = sphi 0, %s201
      %s221 = sphi 0, %s221
      %s223 = sphi 0, %s221
      %s224 = sphi 0, %s223
      %s238 = sphi 0, %s224
      %s242 = sphi 0, %s242
      %s244 = sphi 0, %s242
      %s245 = sphi 0, %s244
      %s259 = sphi 0, %s245
    $region4: #{tpu_custom_call.1} parent=1 // loop_header_branch
      %28 = sbr.rel (%p26) target = $region8
    $region5: #{tpu_custom_call.1} parent=1 // loop_body
      %s30 = ssub.s32 %s25, 1
      %s31 = ssub.s32 %s25, 2
      %s32 = sadd.s32 %s25, 1
      %s34 = sadd.s32 %s33, 1
      %p37 = scmp.eq.s32.totalorder %s25, 2
      %p38 = scmp.ne.s32.totalorder %s33, %s35
      %p39 = scmp.eq.s32.totalorder %s25, 0
      %p40 = por %p38, %p39
      %p41 = scmp.ne.s32.totalorder %s33, %s35
      %p42 = scmp.eq.s32.totalorder %s30, 2
      %p43 = por %p41, %p42
      %p44 = scmp.ne.s32.totalorder %s35, %s36
      %p45 = scmp.eq.s32.totalorder %s30, 0
      %p46 = por %p44, %p45
      %p47 = scmp.ne.s32.totalorder %s35, %s36
      %p48 = scmp.eq.s32.totalorder %s31, 2
      %p49 = por %p47, %p48
      %p51 = scmp.ne.s32.totalorder %s36, %s50
      %p52 = scmp.eq.s32.totalorder %s31, 0
      %p53 = por %p51, %p52
      %s55 = sadd.s32 %s54, 1
      %p58 = scmp.eq.s32.totalorder %s25, 2
      %p59 = scmp.ne.s32.totalorder %s54, %s56
      %p60 = scmp.eq.s32.totalorder %s25, 0
      %p61 = por %p59, %p60
      %p62 = scmp.ne.s32.totalorder %s54, %s56
      %p63 = scmp.eq.s32.totalorder %s30, 2
      %p64 = por %p62, %p63
      %p65 = scmp.ne.s32.totalorder %s56, %s57
      %p66 = scmp.eq.s32.totalorder %s30, 0
      %p67 = por %p65, %p66
      %p68 = scmp.ne.s32.totalorder %s56, %s57
      %p69 = scmp.eq.s32.totalorder %s31, 2
      %p70 = por %p68, %p69
      %p72 = scmp.ne.s32.totalorder %s57, %s71
      %p73 = scmp.eq.s32.totalorder %s31, 0
      %p74 = por %p72, %p73
      %s76 = sadd.s32 %s75, 1
      %p79 = scmp.eq.s32.totalorder %s25, 2
      %p80 = scmp.ne.s32.totalorder %s75, %s77
      %p81 = scmp.eq.s32.totalorder %s25, 0
      %p82 = por %p80, %p81
      %p83 = scmp.ne.s32.totalorder %s75, %s77
      %p84 = scmp.eq.s32.totalorder %s30, 2
      %p85 = por %p83, %p84
      %p86 = scmp.ne.s32.totalorder %s77, %s78
      %p87 = scmp.eq.s32.totalorder %s30, 0
      %p88 = por %p86, %p87
      %p89 = scmp.ne.s32.totalorder %s77, %s78
      %p90 = scmp.eq.s32.totalorder %s31, 2
      %p91 = por %p89, %p90
      %p93 = scmp.ne.s32.totalorder %s78, %s92
      %p94 = scmp.eq.s32.totalorder %s31, 0
      %p95 = por %p93, %p94
      %s97 = sadd.s32 %s96, 1
      %p100 = scmp.eq.s32.totalorder %s25, 2
      %p101 = scmp.ne.s32.totalorder %s96, %s98
      %p102 = scmp.eq.s32.totalorder %s25, 0
      %p103 = por %p101, %p102
      %p104 = scmp.ne.s32.totalorder %s96, %s98
      %p105 = scmp.eq.s32.totalorder %s30, 2
      %p106 = por %p104, %p105
      %p107 = scmp.ne.s32.totalorder %s98, %s99
      %p108 = scmp.eq.s32.totalorder %s30, 0
      %p109 = por %p107, %p108
      %p110 = scmp.ne.s32.totalorder %s98, %s99
      %p111 = scmp.eq.s32.totalorder %s31, 2
      %p112 = por %p110, %p111
      %p114 = scmp.ne.s32.totalorder %s99, %s113
      %p115 = scmp.eq.s32.totalorder %s31, 0
      %p116 = por %p114, %p115
      %s117 = ssub.s32 %s25, %s32
      %p118 = scmp.eq.s32.totalorder %s117, 0
      %s120 = sadd.s32 %s119, 1
      %s121 = scalar_select %p118, %s119, %s120
      %p124 = pneg %p118
      %p125 = scmp.eq.s32.totalorder %s25, 2
      %p126 = por %p124, %p125
      %p127 = scmp.ne.s32.totalorder %s119, %s122
      %p128 = scmp.eq.s32.totalorder %s25, 0
      %p129 = por %p127, %p128
      %p130 = scmp.ne.s32.totalorder %s119, %s122
      %p131 = scmp.eq.s32.totalorder %s30, 2
      %p132 = por %p130, %p131
      %p133 = scmp.ne.s32.totalorder %s122, %s123
      %p134 = scmp.eq.s32.totalorder %s30, 0
      %p135 = por %p133, %p134
      %p136 = scmp.ne.s32.totalorder %s122, %s123
      %p137 = scmp.eq.s32.totalorder %s31, 2
      %p138 = por %p136, %p137
      %p140 = scmp.ne.s32.totalorder %s123, %s139
      %p141 = scmp.eq.s32.totalorder %s31, 0
      %p142 = por %p140, %p141
      %s143 = ssub.s32 %s25, %s32
      %p144 = scmp.eq.s32.totalorder %s143, 0
      %s146 = sadd.s32 %s145, 1
      %s147 = scalar_select %p144, %s145, %s146
      %p150 = pneg %p144
      %p151 = scmp.eq.s32.totalorder %s25, 2
      %p152 = por %p150, %p151
      %p153 = scmp.ne.s32.totalorder %s145, %s148
      %p154 = scmp.eq.s32.totalorder %s25, 0
      %p155 = por %p153, %p154
      %p156 = scmp.ne.s32.totalorder %s145, %s148
      %p157 = scmp.eq.s32.totalorder %s30, 2
      %p158 = por %p156, %p157
      %p159 = scmp.ne.s32.totalorder %s148, %s149
      %p160 = scmp.eq.s32.totalorder %s30, 0
      %p161 = por %p159, %p160
      %p162 = scmp.ne.s32.totalorder %s148, %s149
      %p163 = scmp.eq.s32.totalorder %s31, 2
      %p164 = por %p162, %p163
      %p166 = scmp.ne.s32.totalorder %s149, %s165
      %p167 = scmp.eq.s32.totalorder %s31, 0
      %p168 = por %p166, %p167
      %s169 = ssub.s32 %s25, %s32
      %p170 = scmp.eq.s32.totalorder %s169, 0
      %s172 = sadd.s32 %s171, 1
      %s173 = scalar_select %p170, %s171, %s172
      %p176 = pneg %p170
      %p177 = scmp.eq.s32.totalorder %s25, 2
      %p178 = por %p176, %p177
      %p179 = scmp.ne.s32.totalorder %s171, %s174
      %p180 = scmp.eq.s32.totalorder %s25, 0
      %p181 = por %p179, %p180
      %p182 = scmp.ne.s32.totalorder %s171, %s174
      %p183 = scmp.eq.s32.totalorder %s30, 2
      %p184 = por %p182, %p183
      %p185 = scmp.ne.s32.totalorder %s174, %s175
      %p186 = scmp.eq.s32.totalorder %s30, 0
      %p187 = por %p185, %p186
      %p188 = scmp.ne.s32.totalorder %s174, %s175
      %p189 = scmp.eq.s32.totalorder %s31, 2
      %p190 = por %p188, %p189
      %p192 = scmp.ne.s32.totalorder %s175, %s191
      %p193 = scmp.eq.s32.totalorder %s31, 0
      %p194 = por %p192, %p193
      %s195 = ssub.s32 %s25, %s32
      %p196 = scmp.eq.s32.totalorder %s195, 0
      %s198 = sadd.s32 %s197, 1
      %s199 = scalar_select %p196, %s197, %s198
      %p202 = pneg %p196
      %p203 = scmp.eq.s32.totalorder %s25, 2
      %p204 = por %p202, %p203
      %p205 = scmp.ne.s32.totalorder %s197, %s200
      %p206 = scmp.eq.s32.totalorder %s25, 0
      %p207 = por %p205, %p206
      %p208 = scmp.ne.s32.totalorder %s197, %s200
      %p209 = scmp.eq.s32.totalorder %s30, 2
      %p210 = por %p208, %p209
      %p211 = scmp.ne.s32.totalorder %s200, %s201
      %p212 = scmp.eq.s32.totalorder %s30, 0
      %p213 = por %p211, %p212
      %p214 = scmp.ne.s32.totalorder %s200, %s201
      %p215 = scmp.eq.s32.totalorder %s31, 2
      %p216 = por %p214, %p215
      %p218 = scmp.ne.s32.totalorder %s201, %s217
      %p219 = scmp.eq.s32.totalorder %s31, 0
      %p220 = por %p218, %p219
      %s222 = sadd.s32 %s221, 1
      %p225 = scmp.eq.s32.totalorder %s25, 2
      %p226 = scmp.ne.s32.totalorder %s221, %s223
      %p227 = scmp.eq.s32.totalorder %s25, 0
      %p228 = por %p226, %p227
      %p229 = scmp.ne.s32.totalorder %s221, %s223
      %p230 = scmp.eq.s32.totalorder %s30, 2
      %p231 = por %p229, %p230
      %p232 = scmp.ne.s32.totalorder %s223, %s224
      %p233 = scmp.eq.s32.totalorder %s30, 0
      %p234 = por %p232, %p233
      %p235 = scmp.ne.s32.totalorder %s223, %s224
      %p236 = scmp.eq.s32.totalorder %s31, 2
      %p237 = por %p235, %p236
      %p239 = scmp.ne.s32.totalorder %s224, %s238
      %p240 = scmp.eq.s32.totalorder %s31, 0
      %p241 = por %p239, %p240
      %s243 = sadd.s32 %s242, 1
      %p246 = scmp.eq.s32.totalorder %s25, 2
      %p247 = scmp.ne.s32.totalorder %s242, %s244
      %p248 = scmp.eq.s32.totalorder %s25, 0
      %p249 = por %p247, %p248
      %p250 = scmp.ne.s32.totalorder %s242, %s244
      %p251 = scmp.eq.s32.totalorder %s30, 2
      %p252 = por %p250, %p251
      %p253 = scmp.ne.s32.totalorder %s244, %s245
      %p254 = scmp.eq.s32.totalorder %s30, 0
      %p255 = por %p253, %p254
      %p256 = scmp.ne.s32.totalorder %s244, %s245
      %p257 = scmp.eq.s32.totalorder %s31, 2
      %p258 = por %p256, %p257
      %p260 = scmp.ne.s32.totalorder %s245, %s259
      %p261 = scmp.eq.s32.totalorder %s31, 0
      %p262 = por %p260, %p261
      %p263 = scmp.le.s32.totalorder 1, %s25
      %p264 = scmp.lt.s32.totalorder %s25, 4
      %p265 = pnand %p263, %p264
      %p266 = pneg %p265
      // Predicated region
      $region9: #{tpu_custom_call.1} parent=5 // pred_check
        _
      $region10: #{tpu_custom_call.1} parent=5 // pred_check_branch
        %268 = sbr.rel (%p265) target = $region12
      $region11: #{tpu_custom_call.1} parent=5 // pred_region
        %s269 = ssub.s32 %s25, 1
        // Predicated region
        $region13: #{tpu_custom_call.1} parent=11 // pred_check
          %p270 = pneg %p46
        $region14: #{tpu_custom_call.1} parent=11 // pred_check_branch
          %272 = sbr.rel (%p270) target = $region16
        $region15: #{tpu_custom_call.1} parent=11 // pred_region
          _
        $region16: #{tpu_custom_call.1} parent=11 // pred_fallthru
          _
        // Predicated region
        $region17: #{tpu_custom_call.1} parent=11 // pred_check
          %p273 = pneg %p67
        $region18: #{tpu_custom_call.1} parent=11 // pred_check_branch
          %275 = sbr.rel (%p273) target = $region20
        $region19: #{tpu_custom_call.1} parent=11 // pred_region
          %s277 = ssub.s32 256, 256
          %278 = vsyncadd [#allocation4], %s277
          %s279 = sshll.u32 [#allocation3], 4
          %s280 = int_to_ptr.vmem [resolvable:$true] %s279
          %285 = dma.hbm_to_vmem [thread:$0]  %s1, 256, %s280, [#allocation4], 128, 128, 8
        $region20: #{tpu_custom_call.1} parent=11 // pred_fallthru
          _
        // Predicated region
        $region21: #{tpu_custom_call.1} parent=11 // pred_check
          %p286 = pneg %p88
        $region22: #{tpu_custom_call.1} parent=11 // pred_check_branch
          %288 = sbr.rel (%p286) target = $region24
        $region23: #{tpu_custom_call.1} parent=11 // pred_region
          %s290 = ssub.s32 16, 16
          %291 = vsyncadd [#allocation7], %s290
          %s293 = sshll.u32 [#allocation6], 4
          %s294 = int_to_ptr.vmem [resolvable:$true] %s293
          %296 = dma.hbm_to_vmem [thread:$0]  %s2, 16, %s294, [#allocation7]
        $region24: #{tpu_custom_call.1} parent=11 // pred_fallthru
          _
        // Predicated region
        $region25: #{tpu_custom_call.1} parent=11 // pred_check
          %p297 = pneg %p109
        $region26: #{tpu_custom_call.1} parent=11 // pred_check_branch
          %299 = sbr.rel (%p297) target = $region28
        $region27: #{tpu_custom_call.1} parent=11 // pred_region
          %s301 = ssub.s32 16, 16
          %302 = vsyncadd [#allocation7], %s301
          %s304 = sshll.u32 [#allocation8], 4
          %s305 = int_to_ptr.vmem [resolvable:$true] %s304
          %307 = dma.hbm_to_vmem [thread:$0]  %s3, 16, %s305, [#allocation7]
        $region28: #{tpu_custom_call.1} parent=11 // pred_fallthru
          _
        // Predicated region
        $region29: #{tpu_custom_call.1} parent=11 // pred_check
          %p308 = pneg %p234
        $region30: #{tpu_custom_call.1} parent=11 // pred_check_branch
          %310 = sbr.rel (%p308) target = $region32
        $region31: #{tpu_custom_call.1} parent=11 // pred_region
          %s312 = ssub.s32 16, 16
          %313 = vsyncadd [#allocation16], %s312
          %s315 = sshll.u32 [#allocation15], 4
          %s316 = int_to_ptr.vmem [resolvable:$true] %s315
          %318 = dma.hbm_to_vmem [thread:$0]  %s8, 16, %s316, [#allocation16]
        $region32: #{tpu_custom_call.1} parent=11 // pred_fallthru
          _
      $region12: #{tpu_custom_call.1} parent=5 // pred_fallthru
        _
      %p319 = scmp.lt.s32.totalorder %s25, 3
      // Predicated region
      $region33: #{tpu_custom_call.1} parent=5 // pred_check
        %p320 = pneg %p319
      $region34: #{tpu_custom_call.1} parent=5 // pred_check_branch
        %322 = sbr.rel (%p320) target = $region36
      $region35: #{tpu_custom_call.1} parent=5 // pred_region
        // Predicated region
        $region37: #{tpu_custom_call.1} parent=35 // pred_check
          %p323 = pneg %p129
        $region38: #{tpu_custom_call.1} parent=35 // pred_check_branch
          %325 = sbr.rel (%p323) target = $region40
        $region39: #{tpu_custom_call.1} parent=35 // pred_region
          %s326 = sand.u32 %s25, 1
          %s327 = scalar_lea.sflag [#allocation10], %s326
          %s328 = sand.u32 %s119, 1
          %s329 = smul.addr %s328, 3200
          %s330 = scalar_lea.vmem [#allocation9], %s329
          %s331 = smul.u32 2, %s25
          %s333 = ssub.s32 51200, 51200
          %334 = vsyncadd %s327, %s333
          %s335 = smul.addr %s331, 64
          %s336 = scalar_lea.hbm %s4, %s335
          %s337 = sshll.u32 %s330, 4
          %s338 = int_to_ptr.vmem [resolvable:$true] %s337
          %343 = dma.hbm_to_vmem [thread:$0]  %s336, 51200, %s338, %s327, 384, 128, 8
        $region40: #{tpu_custom_call.1} parent=35 // pred_fallthru
          _
        // Predicated region
        $region41: #{tpu_custom_call.1} parent=35 // pred_check
          %p344 = pneg %p155
        $region42: #{tpu_custom_call.1} parent=35 // pred_check_branch
          %346 = sbr.rel (%p344) target = $region44
        $region43: #{tpu_custom_call.1} parent=35 // pred_region
          %s347 = sand.u32 %s25, 1
          %s348 = scalar_lea.sflag [#allocation10], %s347
          %s349 = sand.u32 %s145, 1
          %s350 = smul.addr %s349, 2
          %s351 = scalar_lea.vmem [#allocation11], %s350
          %s352 = smul.u32 2, %s25
          %s354 = ssub.s32 32, 32
          %355 = vsyncadd %s348, %s354
          %s356 = smul.addr %s352, 16
          %s357 = scalar_lea.hbm %s5, %s356
          %s359 = sshll.u32 %s351, 4
          %s360 = int_to_ptr.vmem [resolvable:$true] %s359
          %362 = dma.hbm_to_vmem [thread:$0]  %s357, 32, %s360, %s348
        $region44: #{tpu_custom_call.1} parent=35 // pred_fallthru
          _
        // Predicated region
        $region45: #{tpu_custom_call.1} parent=35 // pred_check
          %p363 = pneg %p181
        $region46: #{tpu_custom_call.1} parent=35 // pred_check_branch
          %365 = sbr.rel (%p363) target = $region48
        $region47: #{tpu_custom_call.1} parent=35 // pred_region
          %s366 = sand.u32 %s25, 1
          %s367 = scalar_lea.sflag [#allocation13], %s366
          %s368 = sand.u32 %s171, 1
          %s369 = smul.addr %s368, 2
          %s370 = scalar_lea.vmem [#allocation12], %s369
          %s371 = smul.u32 2, %s25
          %s373 = ssub.s32 32, 32
          %374 = vsyncadd %s367, %s373
          %s375 = smul.addr %s371, 16
          %s376 = scalar_lea.hbm %s6, %s375
          %s378 = sshll.u32 %s370, 4
          %s379 = int_to_ptr.vmem [resolvable:$true] %s378
          %381 = dma.hbm_to_vmem [thread:$0]  %s376, 32, %s379, %s367
        $region48: #{tpu_custom_call.1} parent=35 // pred_fallthru
          _
        // Predicated region
        $region49: #{tpu_custom_call.1} parent=35 // pred_check
          %p382 = pneg %p207
        $region50: #{tpu_custom_call.1} parent=35 // pred_check_branch
          %384 = sbr.rel (%p382) target = $region52
        $region51: #{tpu_custom_call.1} parent=35 // pred_region
          %s385 = sand.u32 %s25, 1
          %s386 = scalar_lea.sflag [#allocation13], %s385
          %s387 = sand.u32 %s197, 1
          %s388 = smul.addr %s387, 256
          %s389 = scalar_lea.vmem [#allocation14], %s388
          %s390 = smul.u32 32, %s25
          %s392 = ssub.s32 4096, 4096
          %393 = vsyncadd %s386, %s392
          %s394 = smul.addr %s390, 128
          %s395 = scalar_lea.hbm %s7, %s394
          %s396 = sshll.u32 %s389, 4
          %s397 = int_to_ptr.vmem [resolvable:$true] %s396
          %402 = dma.hbm_to_vmem [thread:$0]  %s395, 4096, %s397, %s386, 128, 128, 8
        $region52: #{tpu_custom_call.1} parent=35 // pred_fallthru
          _
      $region36: #{tpu_custom_call.1} parent=5 // pred_fallthru
        _
      %p403 = scmp.le.s32.totalorder 1, %s25
      %p404 = scmp.lt.s32.totalorder %s25, 4
      %p405 = pnand %p403, %p404
      %p406 = pneg %p405
      // Predicated region
      $region53: #{tpu_custom_call.1} parent=5 // pred_check
        _
      $region54: #{tpu_custom_call.1} parent=5 // pred_check_branch
        %408 = sbr.rel (%p405) target = $region56
      $region55: #{tpu_custom_call.1} parent=5 // pred_region
        %s409 = ssub.s32 %s25, 1
        // Predicated region
        $region57: #{tpu_custom_call.1} parent=55 // pred_check
          %p410 = pneg %p67
        $region58: #{tpu_custom_call.1} parent=55 // pred_check_branch
          %412 = sbr.rel (%p410) target = $region60
        $region59: #{tpu_custom_call.1} parent=55 // pred_region
          %413 = dma.done [#allocation4], 256
        $region60: #{tpu_custom_call.1} parent=55 // pred_fallthru
          _
        // Predicated region
        $region61: #{tpu_custom_call.1} parent=55 // pred_check
          %p414 = pneg %p88
        $region62: #{tpu_custom_call.1} parent=55 // pred_check_branch
          %416 = sbr.rel (%p414) target = $region64
        $region63: #{tpu_custom_call.1} parent=55 // pred_region
          %417 = dma.done [#allocation7], 16
        $region64: #{tpu_custom_call.1} parent=55 // pred_fallthru
          _
        // Predicated region
        $region65: #{tpu_custom_call.1} parent=55 // pred_check
          %p418 = pneg %p109
        $region66: #{tpu_custom_call.1} parent=55 // pred_check_branch
          %420 = sbr.rel (%p418) target = $region68
        $region67: #{tpu_custom_call.1} parent=55 // pred_region
          %421 = dma.done [#allocation7], 16
        $region68: #{tpu_custom_call.1} parent=55 // pred_fallthru
          _
        %s422 = sand.u32 %s30, 1
        %s423 = scalar_lea.sflag [#allocation10], %s422
        %s424 = sand.u32 %s122, 1
        %s425 = smul.addr %s424, 3200
        %s426 = scalar_lea.vmem [#allocation9], %s425
        // Predicated region
        $region69: #{tpu_custom_call.1} parent=55 // pred_check
          %p427 = pneg %p135
        $region70: #{tpu_custom_call.1} parent=55 // pred_check_branch
          %429 = sbr.rel (%p427) target = $region72
        $region71: #{tpu_custom_call.1} parent=55 // pred_region
          %430 = dma.done %s423, 51200
        $region72: #{tpu_custom_call.1} parent=55 // pred_fallthru
          _
        %s431 = sand.u32 %s30, 1
        %s432 = scalar_lea.sflag [#allocation10], %s431
        %s433 = sand.u32 %s148, 1
        %s434 = smul.addr %s433, 2
        %s435 = scalar_lea.vmem [#allocation11], %s434
        // Predicated region
        $region73: #{tpu_custom_call.1} parent=55 // pred_check
          %p436 = pneg %p161
        $region74: #{tpu_custom_call.1} parent=55 // pred_check_branch
          %438 = sbr.rel (%p436) target = $region76
        $region75: #{tpu_custom_call.1} parent=55 // pred_region
          %439 = dma.done %s432, 32
        $region76: #{tpu_custom_call.1} parent=55 // pred_fallthru
          _
        %s440 = sand.u32 %s30, 1
        %s441 = scalar_lea.sflag [#allocation13], %s440
        %s442 = sand.u32 %s174, 1
        %s443 = smul.addr %s442, 2
        %s444 = scalar_lea.vmem [#allocation12], %s443
        // Predicated region
        $region77: #{tpu_custom_call.1} parent=55 // pred_check
          %p445 = pneg %p187
        $region78: #{tpu_custom_call.1} parent=55 // pred_check_branch
          %447 = sbr.rel (%p445) target = $region80
        $region79: #{tpu_custom_call.1} parent=55 // pred_region
          %448 = dma.done %s441, 32
        $region80: #{tpu_custom_call.1} parent=55 // pred_fallthru
          _
        %s449 = sand.u32 %s30, 1
        %s450 = scalar_lea.sflag [#allocation13], %s449
        %s451 = sand.u32 %s200, 1
        %s452 = smul.addr %s451, 256
        %s453 = scalar_lea.vmem [#allocation14], %s452
        // Predicated region
        $region81: #{tpu_custom_call.1} parent=55 // pred_check
          %p454 = pneg %p213
        $region82: #{tpu_custom_call.1} parent=55 // pred_check_branch
          %456 = sbr.rel (%p454) target = $region84
        $region83: #{tpu_custom_call.1} parent=55 // pred_region
          %457 = dma.done %s450, 4096
        $region84: #{tpu_custom_call.1} parent=55 // pred_fallthru
          _
        // Predicated region
        $region85: #{tpu_custom_call.1} parent=55 // pred_check
          %p458 = pneg %p234
        $region86: #{tpu_custom_call.1} parent=55 // pred_check_branch
          %460 = sbr.rel (%p458) target = $region88
        $region87: #{tpu_custom_call.1} parent=55 // pred_region
          %461 = dma.done [#allocation16], 16
        $region88: #{tpu_custom_call.1} parent=55 // pred_fallthru
          _
        %p462 = pneg %p46
        %p463 = pneg %p43
        %p464 = pneg %p67
        %p465 = pneg %p64
        %p466 = pneg %p88
        %p467 = pneg %p85
        %p468 = pneg %p109
        %p469 = pneg %p106
        %s470 = sand.u32 %s30, 1
        %s471 = scalar_lea.sflag [#allocation10], %s470
        %s472 = sand.u32 %s122, 1
        %s473 = smul.addr %s472, 3200
        %s474 = scalar_lea.vmem [#allocation9], %s473
        %p475 = pneg %p135
        %p476 = pneg %p132
        %s477 = sand.u32 %s30, 1
        %s478 = scalar_lea.sflag [#allocation10], %s477
        %s479 = sand.u32 %s148, 1
        %s480 = smul.addr %s479, 2
        %s481 = scalar_lea.vmem [#allocation11], %s480
        %p482 = pneg %p161
        %p483 = pneg %p158
        %s484 = sand.u32 %s30, 1
        %s485 = scalar_lea.sflag [#allocation13], %s484
        %s486 = sand.u32 %s174, 1
        %s487 = smul.addr %s486, 2
        %s488 = scalar_lea.vmem [#allocation12], %s487
        %p489 = pneg %p187
        %p490 = pneg %p184
        %s491 = sand.u32 %s30, 1
        %s492 = scalar_lea.sflag [#allocation13], %s491
        %s493 = sand.u32 %s200, 1
        %s494 = smul.addr %s493, 256
        %s495 = scalar_lea.vmem [#allocation14], %s494
        %p496 = pneg %p213
        %p497 = pneg %p210
        %p498 = pneg %p234
        %p499 = pneg %p231
        %p500 = pneg %p255
        %p501 = pneg %p252
        %s502 = smul.u32 2, %s30
        %s503 = smul.u32 2, %s30
        %s504 = smul.u32 2, %s30
        %s505 = smul.u32 32, %s30
        %p507 = scmp.eq.s32.totalorder %s30, 0
        // Predicated region
        $region89: #{tpu_custom_call.1} parent=55 // pred_check
          %p508 = pneg %p507
        $region90: #{tpu_custom_call.1} parent=55 // pred_check_branch
          %510 = sbr.rel (%p508) target = $region92
        $region91: #{tpu_custom_call.1} parent=55 // pred_region
          %v511 = vld [vmem:[%s0] sm:$0xff]
          %v512 = vld [vmem:[%s0 + $0x8] sm:$0xff]
          %v513 = vld [vmem:[%s0 + $0x10] sm:$0xff]
          %v514 = vld [vmem:[%s0 + $0x18] sm:$0xff]
          %v515 = vld [vmem:[%s0 + $0x20] sm:$0xff]
          %v516 = vld [vmem:[%s0 + $0x28] sm:$0xff]
          %v517 = vld [vmem:[%s0 + $0x30] sm:$0x3]
          %v518 = vld [vmem:[#allocation3] sm:$0xff]
          %v519 = vld [vmem:[#allocation3 + $0x8] sm:$0xff]
          %vm520 = vcmask 130048
          %v522 = vsel %vm520, %v511, 0
          %v525 = vsel %vm520, %v512, 0
          %v528 = vsel %vm520, %v513, 0
          %v531 = vsel %vm520, %v514, 0
          %v534 = vsel %vm520, %v515, 0
          %v537 = vsel %vm520, %v516, 0
          %v540 = vsel %vm520, %v517, 0
          %542 = vmatprep.subr.mxu0 0.0
          %543 = vmatpush1.msra.mxu0 0.0
          %544 = vmatprep.subr.mxu0 0.0
          %545 = vmatpush1.msra.mxu0 0.0
          %546 = vmatprep.subr.mxu0 0.0
          %547 = vmatpush1.msra.mxu0 0.0
          %548 = vmatprep.subr.mxu0 0.0
          %549 = vmatpush1.msra.mxu0 0.0
          %550 = vmatprep.subr.mxu0 0.0
          %551 = vmatpush1.msra.mxu0 0.0
          %552 = vmatprep.subr.mxu0 0.0
          %553 = vmatpush1.msra.mxu0 0.0
          %554 = vmatprep.subr.mxu0 0.0
          %555 = vmatpush1.msra.mxu0 0.0
          %556 = vmatprep.subr.mxu0 0.0
          %557 = vmatpush1.msra.mxu0 0.0
          %558 = vmatprep.subr.mxu0 0.0
          %559 = vmatpush1.msra.mxu0 0.0
          %560 = vmatprep.subr.mxu0 0.0
          %561 = vmatpush1.msra.mxu0 0.0
          %562 = vmatprep.subr.mxu0 0.0
          %563 = vmatpush1.msra.mxu0 0.0
          %564 = vmatprep.subr.mxu0 0.0
          %565 = vmatpush1.msra.mxu0 0.0
          %566 = vmatprep.subr.mxu0 0.0
          %567 = vmatpush1.msra.mxu0 0.0
          %568 = vmatprep.subr.mxu0 0.0
          %569 = vmatpush1.msra.mxu0 0.0
          %570 = vmatprep.subr.mxu0 0.0
          %571 = vmatpush1.msra.mxu0 %v519
          %572 = vmatprep.subr.mxu0 0.0
          %573 = vmatpush1.msra.mxu0 %v518
          %574 = vmatprep.subr.mxu0 0.0
          %575 = vmatpush2.msra.mxu0 0.0
          %576 = vmatprep.subr.mxu0 0.0
          %577 = vmatpush2.msra.mxu0 0.0
          %578 = vmatprep.subr.mxu0 0.0
          %579 = vmatpush2.msra.mxu0 0.0
          %580 = vmatprep.subr.mxu0 0.0
          %581 = vmatpush2.msra.mxu0 0.0
          %582 = vmatprep.subr.mxu0 0.0
          %583 = vmatpush2.msra.mxu0 0.0
          %584 = vmatprep.subr.mxu0 0.0
          %585 = vmatpush2.msra.mxu0 0.0
          %586 = vmatprep.subr.mxu0 0.0
          %587 = vmatpush2.msra.mxu0 0.0
          %588 = vmatprep.subr.mxu0 0.0
          %589 = vmatpush2.msra.mxu0 0.0
          %590 = vmatprep.subr.mxu0 0.0
          %591 = vmatpush2.msra.mxu0 0.0
          %592 = vmatprep.subr.mxu0 0.0
          %593 = vmatpush2.msra.mxu0 0.0
          %594 = vmatprep.subr.mxu0 0.0
          %595 = vmatpush2.msra.mxu0 0.0
          %596 = vmatprep.subr.mxu0 0.0
          %597 = vmatpush2.msra.mxu0 0.0
          %598 = vmatprep.subr.mxu0 0.0
          %599 = vmatpush2.msra.mxu0 0.0
          %600 = vmatprep.subr.mxu0 0.0
          %601 = vmatpush2.msra.mxu0 0.0
          %602 = vmatprep.subr.mxu0 0.0
          %603 = vmatpush2.msra.mxu0 0.0
          %604 = vmatprep.subr.mxu0 0.0
          %605 = vmatpush2.msra.mxu0 0.0
          %606 = vmatprep.mubr.f32.mxu0 0.0
          %607 = vmatmul.mubr.f32.gmra.mxu0 %v522
          %v608 = vpop.f32.mrf.mxu0
          %v609 = vadd.f32 0.0, %v608
          %v610 = vpop.f32.mrf.mxu0
          %611 = vmatprep.mubr.f32.mxu0 0.0
          %612 = vmatmul.mubr.f32.gmra.mxu0 %v525
          %v613 = vpop.f32.mrf.mxu0
          %v614 = vadd.f32 0.0, %v613
          %v615 = vpop.f32.mrf.mxu0
          %616 = vmatprep.mubr.f32.mxu0 0.0
          %617 = vmatmul.mubr.f32.gmra.mxu0 %v528
          %v618 = vpop.f32.mrf.mxu0
          %v619 = vadd.f32 0.0, %v618
          %v620 = vpop.f32.mrf.mxu0
          %621 = vmatprep.mubr.f32.mxu0 0.0
          %622 = vmatmul.mubr.f32.gmra.mxu0 %v531
          %v623 = vpop.f32.mrf.mxu0
          %v624 = vadd.f32 0.0, %v623
          %v625 = vpop.f32.mrf.mxu0
          %626 = vmatprep.mubr.f32.mxu0 0.0
          %627 = vmatmul.mubr.f32.gmra.mxu0 %v534
          %v628 = vpop.f32.mrf.mxu0
          %v629 = vadd.f32 0.0, %v628
          %v630 = vpop.f32.mrf.mxu0
          %631 = vmatprep.mubr.f32.mxu0 0.0
          %632 = vmatmul.mubr.f32.gmra.mxu0 %v537
          %v633 = vpop.f32.mrf.mxu0
          %v634 = vadd.f32 0.0, %v633
          %v635 = vpop.f32.mrf.mxu0
          %636 = vmatprep.mubr.f32.mxu0 0.0
          %637 = vmatmul.mubr.f32.gmra.mxu0 %v540
          %v638 = vpop.f32.mrf.mxu0
          %v639 = vadd.f32 0.0, %v638
          %v640 = vpop.f32.mrf.mxu0
          %641 = vdwg.mxu0
          %v642 = vld [vmem:[#allocation6] sm:$0x1]
          %v644 = vlaneseq
          %v645 = vshrl.u32 %v644, 7
          %v646 = vsub.s32 0, %v645
          %v647 = vrot.slane %v642, %v646
          %v649 = vmul.f32 %v609, %v647
          %v650 = vmul.f32 %v614, %v647
          %v651 = vmul.f32 %v619, %v647
          %v652 = vmul.f32 %v624, %v647
          %v653 = vmul.f32 %v629, %v647
          %v654 = vmul.f32 %v634, %v647
          %v655 = vmul.f32 %v639, %v647
          %v656 = vld [vmem:[#allocation8] sm:$0x1]
          %v658 = vlaneseq
          %v659 = vshrl.u32 %v658, 7
          %v660 = vsub.s32 0, %v659
          %v661 = vrot.slane %v656, %v660
          %v663 = vadd.f32 %v649, %v661
          %v664 = vadd.f32 %v650, %v661
          %v665 = vadd.f32 %v651, %v661
          %v666 = vadd.f32 %v652, %v661
          %v667 = vadd.f32 %v653, %v661
          %v668 = vadd.f32 %v654, %v661
          %v669 = vadd.f32 %v655, %v661
          %v670 = vmax.f32 %v663, 0.0
          %v671 = vmax.f32 %v664, 0.0
          %v672 = vmax.f32 %v665, 0.0
          %v673 = vmax.f32 %v666, 0.0
          %v674 = vmax.f32 %v667, 0.0
          %v675 = vmax.f32 %v668, 0.0
          %v676 = vmax.f32 %v669, 0.0
          %vm677 = vcmask 1040384
          %v678 = vsel %vm677, %v670, 0.0
          %vm679 = vcmask 1041409
          %v680 = vsel %vm679, %v673, %v678
          %v681 = vrot.slane %v670, 1
          %v682 = vsel %vm677, %v681, 0.0
          %v683 = vrot.slane %v673, 1
          %v684 = vsel %vm679, %v683, %v682
          %v685 = vrot.slane %v670, 2
          %v686 = vsel %vm677, %v685, 0.0
          %v687 = vrot.slane %v673, 2
          %v688 = vsel %vm679, %v687, %v686
          %v689 = vrot.slane %v670, 3
          %v690 = vsel %vm677, %v689, 0.0
          %v691 = vrot.slane %v673, 3
          %v692 = vsel %vm679, %v691, %v690
          %v693 = vrot.slane %v670, 4
          %v694 = vsel %vm677, %v693, 0.0
          %v695 = vrot.slane %v673, 4
          %v696 = vsel %vm679, %v695, %v694
          %v697 = vrot.slane %v670, 5
          %v698 = vsel %vm677, %v697, 0.0
          %v699 = vrot.slane %v673, 5
          %v700 = vsel %vm679, %v699, %v698
          %v701 = vrot.slane %v670, 6
          %v702 = vsel %vm677, %v701, 0.0
          %v703 = vrot.slane %v673, 6
          %v704 = vsel %vm679, %v703, %v702
          %v705 = vrot.slane %v670, 7
          %v706 = vsel %vm677, %v705, 0.0
          %v707 = vrot.slane %v674, 7
          %v708 = vsel %vm679, %v707, %v706
          %v709 = vsel %vm677, %v671, 0.0
          %v710 = vsel %vm679, %v674, %v709
          %v711 = vrot.slane %v671, 1
          %v712 = vsel %vm677, %v711, 0.0
          %v713 = vrot.slane %v674, 1
          %v714 = vsel %vm679, %v713, %v712
          %v715 = vrot.slane %v671, 2
          %v716 = vsel %vm677, %v715, 0.0
          %v717 = vrot.slane %v674, 2
          %v718 = vsel %vm679, %v717, %v716
          %v719 = vrot.slane %v671, 3
          %v720 = vsel %vm677, %v719, 0.0
          %v721 = vrot.slane %v674, 3
          %v722 = vsel %vm679, %v721, %v720
          %v723 = vrot.slane %v671, 4
          %v724 = vsel %vm677, %v723, 0.0
          %v725 = vrot.slane %v674, 4
          %v726 = vsel %vm679, %v725, %v724
          %v727 = vrot.slane %v671, 5
          %v728 = vsel %vm677, %v727, 0.0
          %v729 = vrot.slane %v674, 5
          %v730 = vsel %vm679, %v729, %v728
          %v731 = vrot.slane %v671, 6
          %v732 = vsel %vm677, %v731, 0.0
          %v733 = vrot.slane %v674, 6
          %v734 = vsel %vm679, %v733, %v732
          %v735 = vrot.slane %v671, 7
          %v736 = vsel %vm677, %v735, 0.0
          %v737 = vrot.slane %v675, 7
          %v738 = vsel %vm679, %v737, %v736
          %v739 = vsel %vm677, %v672, 0.0
          %v740 = vsel %vm679, %v675, %v739
          %v741 = vrot.slane %v672, 1
          %v742 = vsel %vm677, %v741, 0.0
          %v743 = vrot.slane %v675, 1
          %v744 = vsel %vm679, %v743, %v742
          %v745 = vrot.slane %v672, 2
          %v746 = vsel %vm677, %v745, 0.0
          %v747 = vrot.slane %v675, 2
          %v748 = vsel %vm679, %v747, %v746
          %v749 = vrot.slane %v672, 3
          %v750 = vsel %vm677, %v749, 0.0
          %v751 = vrot.slane %v675, 3
          %v752 = vsel %vm679, %v751, %v750
          %v753 = vrot.slane %v672, 4
          %v754 = vsel %vm677, %v753, 0.0
          %v755 = vrot.slane %v675, 4
          %v756 = vsel %vm679, %v755, %v754
          %v757 = vrot.slane %v672, 5
          %v758 = vsel %vm677, %v757, 0.0
          %v759 = vrot.slane %v675, 5
          %v760 = vsel %vm679, %v759, %v758
          %v761 = vrot.slane %v672, 6
          %v762 = vsel %vm677, %v761, 0.0
          %v763 = vrot.slane %v675, 6
          %v764 = vsel %vm679, %v763, %v762
          %v765 = vrot.slane %v672, 7
          %v766 = vsel %vm677, %v765, 0.0
          %v767 = vrot.slane %v676, 7
          %v768 = vsel %vm679, %v767, %v766
          %v769 = vsel %vm677, %v673, 0.0
          %v770 = vsel %vm679, %v676, %v769
          %v771 = vpack.c.bf16 %v680, %v680
          %v772 = vpack.c.bf16 %v684, %v684
          %v773 = vpack.c.bf16 %v688, %v688
          %v774 = vpack.c.bf16 %v692, %v692
          %v775 = vpack.c.bf16 %v696, %v696
          %v776 = vpack.c.bf16 %v700, %v700
          %v777 = vpack.c.bf16 %v704, %v704
          %v778 = vpack.c.bf16 %v708, %v708
          %v779 = vpack.c.bf16 %v710, %v710
          %v780 = vpack.c.bf16 %v714, %v714
          %v781 = vpack.c.bf16 %v718, %v718
          %v782 = vpack.c.bf16 %v722, %v722
          %v783 = vpack.c.bf16 %v726, %v726
          %v784 = vpack.c.bf16 %v730, %v730
          %v785 = vpack.c.bf16 %v734, %v734
          %v786 = vpack.c.bf16 %v738, %v738
          %v787 = vpack.c.bf16 %v740, %v740
          %v788 = vpack.c.bf16 %v744, %v744
          %v789 = vpack.c.bf16 %v748, %v748
          %v790 = vpack.c.bf16 %v752, %v752
          %v791 = vpack.c.bf16 %v756, %v756
          %v792 = vpack.c.bf16 %v760, %v760
          %v793 = vpack.c.bf16 %v764, %v764
          %v794 = vpack.c.bf16 %v768, %v768
          %v795 = vpack.c.bf16 %v770, %v770
          %v821 = vcombine.low %v771, %v772
          %v822 = vcombine.low %v773, %v774
          %v823 = vcombine.low %v775, %v776
          %v824 = vcombine.low %v777, %v778
          %v826 = vunpack.c.l.s4 1966171168
          %v827 = vunpack.c.0.s8 %v826
          %v828 = vlaneseq
          %v829 = vshrl.u32 %v828, 7
          %v830 = vsub.s32 %v827, %v829
          %v831 = vrot.slane %v821, %v830
          %v833 = vunpack.c.l.s4 1966171168
          %v834 = vunpack.c.0.s8 %v833
          %v835 = vlaneseq
          %v836 = vshrl.u32 %v835, 7
          %v837 = vsub.s32 %v834, %v836
          %v838 = vrot.slane %v822, %v837
          %v840 = vunpack.c.l.s4 1966171168
          %v841 = vunpack.c.0.s8 %v840
          %v842 = vlaneseq
          %v843 = vshrl.u32 %v842, 7
          %v844 = vsub.s32 %v841, %v843
          %v845 = vrot.slane %v823, %v844
          %v847 = vunpack.c.l.s4 1966171168
          %v848 = vunpack.c.0.s8 %v847
          %v849 = vlaneseq
          %v850 = vshrl.u32 %v849, 7
          %v851 = vsub.s32 %v848, %v850
          %v852 = vrot.slane %v824, %v851
          %v853 = vcombine.low %v831, %v838
          %v854 = vcombine.low %v845, %v852
          %v856 = vunpack.c.l.s4 1966171168
          %v857 = vunpack.c.0.s8 %v856
          %v858 = vlaneseq
          %v859 = vshrl.u32 %v858, 7
          %v860 = vsub.s32 %v857, %v859
          %v861 = vrot.slane %v853, %v860
          %v863 = vunpack.c.l.s4 1966171168
          %v864 = vunpack.c.0.s8 %v863
          %v865 = vlaneseq
          %v866 = vshrl.u32 %v865, 7
          %v867 = vsub.s32 %v864, %v866
          %v868 = vrot.slane %v854, %v867
          %v869 = vcombine.low %v861, %v868
          %v870 = vcombine.low %v779, %v780
          %v871 = vcombine.low %v781, %v782
          %v872 = vcombine.low %v783, %v784
          %v873 = vcombine.low %v785, %v786
          %v875 = vunpack.c.l.s4 1966171168
          %v876 = vunpack.c.0.s8 %v875
          %v877 = vlaneseq
          %v878 = vshrl.u32 %v877, 7
          %v879 = vsub.s32 %v876, %v878
          %v880 = vrot.slane %v870, %v879
          %v882 = vunpack.c.l.s4 1966171168
          %v883 = vunpack.c.0.s8 %v882
          %v884 = vlaneseq
          %v885 = vshrl.u32 %v884, 7
          %v886 = vsub.s32 %v883, %v885
          %v887 = vrot.slane %v871, %v886
          %v889 = vunpack.c.l.s4 1966171168
          %v890 = vunpack.c.0.s8 %v889
          %v891 = vlaneseq
          %v892 = vshrl.u32 %v891, 7
          %v893 = vsub.s32 %v890, %v892
          %v894 = vrot.slane %v872, %v893
          %v896 = vunpack.c.l.s4 1966171168
          %v897 = vunpack.c.0.s8 %v896
          %v898 = vlaneseq
          %v899 = vshrl.u32 %v898, 7
          %v900 = vsub.s32 %v897, %v899
          %v901 = vrot.slane %v873, %v900
          %v902 = vcombine.low %v880, %v887
          %v903 = vcombine.low %v894, %v901
          %v905 = vunpack.c.l.s4 1966171168
          %v906 = vunpack.c.0.s8 %v905
          %v907 = vlaneseq
          %v908 = vshrl.u32 %v907, 7
          %v909 = vsub.s32 %v906, %v908
          %v910 = vrot.slane %v902, %v909
          %v912 = vunpack.c.l.s4 1966171168
          %v913 = vunpack.c.0.s8 %v912
          %v914 = vlaneseq
          %v915 = vshrl.u32 %v914, 7
          %v916 = vsub.s32 %v913, %v915
          %v917 = vrot.slane %v903, %v916
          %v918 = vcombine.low %v910, %v917
          %v919 = vcombine.low %v787, %v788
          %v920 = vcombine.low %v789, %v790
          %v921 = vcombine.low %v791, %v792
          %v922 = vcombine.low %v793, %v794
          %v924 = vunpack.c.l.s4 1966171168
          %v925 = vunpack.c.0.s8 %v924
          %v926 = vlaneseq
          %v927 = vshrl.u32 %v926, 7
          %v928 = vsub.s32 %v925, %v927
          %v929 = vrot.slane %v919, %v928
          %v931 = vunpack.c.l.s4 1966171168
          %v932 = vunpack.c.0.s8 %v931
          %v933 = vlaneseq
          %v934 = vshrl.u32 %v933, 7
          %v935 = vsub.s32 %v932, %v934
          %v936 = vrot.slane %v920, %v935
          %v938 = vunpack.c.l.s4 1966171168
          %v939 = vunpack.c.0.s8 %v938
          %v940 = vlaneseq
          %v941 = vshrl.u32 %v940, 7
          %v942 = vsub.s32 %v939, %v941
          %v943 = vrot.slane %v921, %v942
          %v945 = vunpack.c.l.s4 1966171168
          %v946 = vunpack.c.0.s8 %v945
          %v947 = vlaneseq
          %v948 = vshrl.u32 %v947, 7
          %v949 = vsub.s32 %v946, %v948
          %v950 = vrot.slane %v922, %v949
          %v951 = vcombine.low %v929, %v936
          %v952 = vcombine.low %v943, %v950
          %v954 = vunpack.c.l.s4 1966171168
          %v955 = vunpack.c.0.s8 %v954
          %v956 = vlaneseq
          %v957 = vshrl.u32 %v956, 7
          %v958 = vsub.s32 %v955, %v957
          %v959 = vrot.slane %v951, %v958
          %v961 = vunpack.c.l.s4 1966171168
          %v962 = vunpack.c.0.s8 %v961
          %v963 = vlaneseq
          %v964 = vshrl.u32 %v963, 7
          %v965 = vsub.s32 %v962, %v964
          %v966 = vrot.slane %v952, %v965
          %v967 = vcombine.low %v959, %v966
          %v969 = vunpack.c.l.s4 1966171168
          %v970 = vunpack.c.0.s8 %v969
          %v971 = vlaneseq
          %v972 = vshrl.u32 %v971, 7
          %v973 = vsub.s32 %v970, %v972
          %v974 = vrot.slane %v795, %v973
          %v976 = vunpack.c.l.s4 1966171168
          %v977 = vunpack.c.0.s8 %v976
          %v978 = vlaneseq
          %v979 = vshrl.u32 %v978, 7
          %v980 = vsub.s32 %v977, %v979
          %v981 = vrot.slane %v974, %v980
          %986 = vst [vmem:[#allocation2] sm:$0xff] %v869
          %987 = vst [vmem:[#allocation2 + $0x8] sm:$0xff] %v918
          %988 = vst [vmem:[#allocation2 + $0x10] sm:$0xff] %v967
          %989 = vst [vmem:[#allocation2 + $0x18] sm:$0x1] %v981
          %v990 = vld [vmem:[#allocation15] sm:$0x1]
          %v992 = vlaneseq
          %v993 = vshrl.u32 %v992, 7
          %v994 = vsub.s32 0, %v993
          %v995 = vrot.slane %v990, %v994
          %997 = vst [vmem:[#allocation17] sm:$0x3] %v995
        $region92: #{tpu_custom_call.1} parent=55 // pred_fallthru
          _
        %v998 = vld [vmem:[#allocation2] sm:$0xff]
        %v999 = vld [vmem:[#allocation2 + $0x8] sm:$0xff]
        %v1000 = vld [vmem:[#allocation2 + $0x10] sm:$0xff]
        %v1001 = vld [vmem:[#allocation2 + $0x18] sm:$0x1]
        %v1002 = vld [vmem:[%s426] sm:$0xff]
        %v1003 = vld [vmem:[%s426 + $0x8] sm:$0xff]
        %v1004 = vld [vmem:[%s426 + $0x10] sm:$0xff]
        %v1005 = vld [vmem:[%s426 + $0x18] sm:$0xff]
        %v1006 = vld [vmem:[%s426 + $0x20] sm:$0xff]
        %v1007 = vld [vmem:[%s426 + $0x28] sm:$0xff]
        %v1008 = vld [vmem:[%s426 + $0x30] sm:$0xff]
        %v1009 = vld [vmem:[%s426 + $0x38] sm:$0xff]
        %v1010 = vld [vmem:[%s426 + $0x40] sm:$0xff]
        %v1011 = vld [vmem:[%s426 + $0x48] sm:$0xff]
        %v1012 = vld [vmem:[%s426 + $0x50] sm:$0xff]
        %v1013 = vld [vmem:[%s426 + $0x58] sm:$0xff]
        %v1014 = vld [vmem:[%s426 + $0x60] sm:$0xff]
        %v1015 = vld [vmem:[%s426 + $0x68] sm:$0xff]
        %v1016 = vld [vmem:[%s426 + $0x70] sm:$0xff]
        %v1017 = vld [vmem:[%s426 + $0x78] sm:$0xff]
        %v1018 = vld [vmem:[%s426 + $0x80] sm:$0xff]
        %v1019 = vld [vmem:[%s426 + $0x88] sm:$0xff]
        %v1020 = vld [vmem:[%s426 + $0x90] sm:$0xff]
        %v1021 = vld [vmem:[%s426 + $0x98] sm:$0xff]
        %v1022 = vld [vmem:[%s426 + $0xa0] sm:$0xff]
        %v1023 = vld [vmem:[%s426 + $0xa8] sm:$0xff]
        %v1024 = vld [vmem:[%s426 + $0xb0] sm:$0xff]
        %v1025 = vld [vmem:[%s426 + $0xb8] sm:$0xff]
        %v1026 = vld [vmem:[%s426 + $0xc0] sm:$0xff]
        %v1027 = vld [vmem:[%s426 + $0xc8] sm:$0xff]
        %v1028 = vld [vmem:[%s426 + $0xd0] sm:$0xff]
        %v1029 = vld [vmem:[%s426 + $0xd8] sm:$0xff]
        %v1030 = vld [vmem:[%s426 + $0xe0] sm:$0xff]
        %v1031 = vld [vmem:[%s426 + $0xe8] sm:$0xff]
        %v1032 = vld [vmem:[%s426 + $0xf0] sm:$0xff]
        %v1033 = vld [vmem:[%s426 + $0xf8] sm:$0xff]
        %v1034 = vld [vmem:[%s426 + $0x100] sm:$0xff]
        %v1035 = vld [vmem:[%s426 + $0x108] sm:$0xff]
        %v1036 = vld [vmem:[%s426 + $0x110] sm:$0xff]
        %v1037 = vld [vmem:[%s426 + $0x118] sm:$0xff]
        %v1038 = vld [vmem:[%s426 + $0x120] sm:$0xff]
        %v1039 = vld [vmem:[%s426 + $0x128] sm:$0xff]
        %v1040 = vld [vmem:[%s426 + $0x130] sm:$0xff]
        %v1041 = vld [vmem:[%s426 + $0x138] sm:$0xff]
        %v1042 = vld [vmem:[%s426 + $0x140] sm:$0xff]
        %v1043 = vld [vmem:[%s426 + $0x148] sm:$0xff]
        %v1044 = vld [vmem:[%s426 + $0x150] sm:$0xff]
        %v1045 = vld [vmem:[%s426 + $0x158] sm:$0xff]
        %v1046 = vld [vmem:[%s426 + $0x160] sm:$0xff]
        %v1047 = vld [vmem:[%s426 + $0x168] sm:$0xff]
        %v1048 = vld [vmem:[%s426 + $0x170] sm:$0xff]
        %v1049 = vld [vmem:[%s426 + $0x178] sm:$0xff]
        %v1050 = vld [vmem:[%s426 + $0x180] sm:$0xff]
        %v1051 = vld [vmem:[%s426 + $0x188] sm:$0xff]
        %v1052 = vld [vmem:[%s426 + $0x190] sm:$0xff]
        %v1053 = vld [vmem:[%s426 + $0x198] sm:$0xff]
        %v1054 = vld [vmem:[%s426 + $0x1a0] sm:$0xff]
        %v1055 = vld [vmem:[%s426 + $0x1a8] sm:$0xff]
        %v1056 = vld [vmem:[%s426 + $0x1b0] sm:$0xff]
        %v1057 = vld [vmem:[%s426 + $0x1b8] sm:$0xff]
        %v1058 = vld [vmem:[%s426 + $0x1c0] sm:$0xff]
        %v1059 = vld [vmem:[%s426 + $0x1c8] sm:$0xff]
        %v1060 = vld [vmem:[%s426 + $0x1d0] sm:$0xff]
        %v1061 = vld [vmem:[%s426 + $0x1d8] sm:$0xff]
        %v1062 = vld [vmem:[%s426 + $0x1e0] sm:$0xff]
        %v1063 = vld [vmem:[%s426 + $0x1e8] sm:$0xff]
        %v1064 = vld [vmem:[%s426 + $0x1f0] sm:$0xff]
        %v1065 = vld [vmem:[%s426 + $0x1f8] sm:$0xff]
        %v1066 = vld [vmem:[%s426 + $0x200] sm:$0xff]
        %v1067 = vld [vmem:[%s426 + $0x208] sm:$0xff]
        %v1068 = vld [vmem:[%s426 + $0x210] sm:$0xff]
        %v1069 = vld [vmem:[%s426 + $0x218] sm:$0xff]
        %v1070 = vld [vmem:[%s426 + $0x220] sm:$0xff]
        %v1071 = vld [vmem:[%s426 + $0x228] sm:$0xff]
        %v1072 = vld [vmem:[%s426 + $0x230] sm:$0xff]
        %v1073 = vld [vmem:[%s426 + $0x238] sm:$0xff]
        %v1074 = vld [vmem:[%s426 + $0x240] sm:$0xff]
        %v1075 = vld [vmem:[%s426 + $0x248] sm:$0xff]
        %v1076 = vld [vmem:[%s426 + $0x250] sm:$0xff]
        %v1077 = vld [vmem:[%s426 + $0x258] sm:$0xff]
        %v1078 = vld [vmem:[%s426 + $0x260] sm:$0xff]
        %v1079 = vld [vmem:[%s426 + $0x268] sm:$0xff]
        %v1080 = vld [vmem:[%s426 + $0x270] sm:$0xff]
        %v1081 = vld [vmem:[%s426 + $0x278] sm:$0xff]
        %v1082 = vld [vmem:[%s426 + $0x280] sm:$0xff]
        %v1083 = vld [vmem:[%s426 + $0x288] sm:$0xff]
        %v1084 = vld [vmem:[%s426 + $0x290] sm:$0xff]
        %v1085 = vld [vmem:[%s426 + $0x298] sm:$0xff]
        %v1086 = vld [vmem:[%s426 + $0x2a0] sm:$0xff]
        %v1087 = vld [vmem:[%s426 + $0x2a8] sm:$0xff]
        %v1088 = vld [vmem:[%s426 + $0x2b0] sm:$0xff]
        %v1089 = vld [vmem:[%s426 + $0x2b8] sm:$0xff]
        %v1090 = vld [vmem:[%s426 + $0x2c0] sm:$0xff]
        %v1091 = vld [vmem:[%s426 + $0x2c8] sm:$0xff]
        %v1092 = vld [vmem:[%s426 + $0x2d0] sm:$0xff]
        %v1093 = vld [vmem:[%s426 + $0x2d8] sm:$0xff]
        %v1094 = vld [vmem:[%s426 + $0x2e0] sm:$0xff]
        %v1095 = vld [vmem:[%s426 + $0x2e8] sm:$0xff]
        %v1096 = vld [vmem:[%s426 + $0x2f0] sm:$0xff]
        %v1097 = vld [vmem:[%s426 + $0x2f8] sm:$0xff]
        %v1098 = vld [vmem:[%s426 + $0x300] sm:$0xff]
        %v1099 = vld [vmem:[%s426 + $0x308] sm:$0xff]
        %v1100 = vld [vmem:[%s426 + $0x310] sm:$0xff]
        %v1101 = vld [vmem:[%s426 + $0x318] sm:$0xff]
        %v1102 = vld [vmem:[%s426 + $0x320] sm:$0xff]
        %v1103 = vld [vmem:[%s426 + $0x328] sm:$0xff]
        %v1104 = vld [vmem:[%s426 + $0x330] sm:$0xff]
        %v1105 = vld [vmem:[%s426 + $0x338] sm:$0xff]
        %v1106 = vld [vmem:[%s426 + $0x340] sm:$0xff]
        %v1107 = vld [vmem:[%s426 + $0x348] sm:$0xff]
        %v1108 = vld [vmem:[%s426 + $0x350] sm:$0xff]
        %v1109 = vld [vmem:[%s426 + $0x358] sm:$0xff]
        %v1110 = vld [vmem:[%s426 + $0x360] sm:$0xff]
        %v1111 = vld [vmem:[%s426 + $0x368] sm:$0xff]
        %v1112 = vld [vmem:[%s426 + $0x370] sm:$0xff]
        %v1113 = vld [vmem:[%s426 + $0x378] sm:$0xff]
        %v1114 = vld [vmem:[%s426 + $0x380] sm:$0xff]
        %v1115 = vld [vmem:[%s426 + $0x388] sm:$0xff]
        %v1116 = vld [vmem:[%s426 + $0x390] sm:$0xff]
        %v1117 = vld [vmem:[%s426 + $0x398] sm:$0xff]
        %v1118 = vld [vmem:[%s426 + $0x3a0] sm:$0xff]
        %v1119 = vld [vmem:[%s426 + $0x3a8] sm:$0xff]
        %v1120 = vld [vmem:[%s426 + $0x3b0] sm:$0xff]
        %v1121 = vld [vmem:[%s426 + $0x3b8] sm:$0xff]
        %v1122 = vld [vmem:[%s426 + $0x3c0] sm:$0xff]
        %v1123 = vld [vmem:[%s426 + $0x3c8] sm:$0xff]
        %v1124 = vld [vmem:[%s426 + $0x3d0] sm:$0xff]
        %v1125 = vld [vmem:[%s426 + $0x3d8] sm:$0xff]
        %v1126 = vld [vmem:[%s426 + $0x3e0] sm:$0xff]
        %v1127 = vld [vmem:[%s426 + $0x3e8] sm:$0xff]
        %v1128 = vld [vmem:[%s426 + $0x3f0] sm:$0xff]
        %v1129 = vld [vmem:[%s426 + $0x3f8] sm:$0xff]
        %v1130 = vld [vmem:[%s426 + $0x400] sm:$0xff]
        %v1131 = vld [vmem:[%s426 + $0x408] sm:$0xff]
        %v1132 = vld [vmem:[%s426 + $0x410] sm:$0xff]
        %v1133 = vld [vmem:[%s426 + $0x418] sm:$0xff]
        %v1134 = vld [vmem:[%s426 + $0x420] sm:$0xff]
        %v1135 = vld [vmem:[%s426 + $0x428] sm:$0xff]
        %v1136 = vld [vmem:[%s426 + $0x430] sm:$0xff]
        %v1137 = vld [vmem:[%s426 + $0x438] sm:$0xff]
        %v1138 = vld [vmem:[%s426 + $0x440] sm:$0xff]
        %v1139 = vld [vmem:[%s426 + $0x448] sm:$0xff]
        %v1140 = vld [vmem:[%s426 + $0x450] sm:$0xff]
        %v1141 = vld [vmem:[%s426 + $0x458] sm:$0xff]
        %v1142 = vld [vmem:[%s426 + $0x460] sm:$0xff]
        %v1143 = vld [vmem:[%s426 + $0x468] sm:$0xff]
        %v1144 = vld [vmem:[%s426 + $0x470] sm:$0xff]
        %v1145 = vld [vmem:[%s426 + $0x478] sm:$0xff]
        %v1146 = vld [vmem:[%s426 + $0x480] sm:$0xff]
        %v1147 = vld [vmem:[%s426 + $0x488] sm:$0xff]
        %v1148 = vld [vmem:[%s426 + $0x490] sm:$0xff]
        %v1149 = vld [vmem:[%s426 + $0x498] sm:$0xff]
        %v1150 = vld [vmem:[%s426 + $0x4a0] sm:$0xff]
        %v1151 = vld [vmem:[%s426 + $0x4a8] sm:$0xff]
        %v1152 = vld [vmem:[%s426 + $0x4b0] sm:$0xff]
        %v1153 = vld [vmem:[%s426 + $0x4b8] sm:$0xff]
        %v1154 = vld [vmem:[%s426 + $0x4c0] sm:$0xff]
        %v1155 = vld [vmem:[%s426 + $0x4c8] sm:$0xff]
        %v1156 = vld [vmem:[%s426 + $0x4d0] sm:$0xff]
        %v1157 = vld [vmem:[%s426 + $0x4d8] sm:$0xff]
        %v1158 = vld [vmem:[%s426 + $0x4e0] sm:$0xff]
        %v1159 = vld [vmem:[%s426 + $0x4e8] sm:$0xff]
        %v1160 = vld [vmem:[%s426 + $0x4f0] sm:$0xff]
        %v1161 = vld [vmem:[%s426 + $0x4f8] sm:$0xff]
        %v1162 = vld [vmem:[%s426 + $0x500] sm:$0xff]
        %v1163 = vld [vmem:[%s426 + $0x508] sm:$0xff]
        %v1164 = vld [vmem:[%s426 + $0x510] sm:$0xff]
        %v1165 = vld [vmem:[%s426 + $0x518] sm:$0xff]
        %v1166 = vld [vmem:[%s426 + $0x520] sm:$0xff]
        %v1167 = vld [vmem:[%s426 + $0x528] sm:$0xff]
        %v1168 = vld [vmem:[%s426 + $0x530] sm:$0xff]
        %v1169 = vld [vmem:[%s426 + $0x538] sm:$0xff]
        %v1170 = vld [vmem:[%s426 + $0x540] sm:$0xff]
        %v1171 = vld [vmem:[%s426 + $0x548] sm:$0xff]
        %v1172 = vld [vmem:[%s426 + $0x550] sm:$0xff]
        %v1173 = vld [vmem:[%s426 + $0x558] sm:$0xff]
        %v1174 = vld [vmem:[%s426 + $0x560] sm:$0xff]
        %v1175 = vld [vmem:[%s426 + $0x568] sm:$0xff]
        %v1176 = vld [vmem:[%s426 + $0x570] sm:$0xff]
        %v1177 = vld [vmem:[%s426 + $0x578] sm:$0xff]
        %v1178 = vld [vmem:[%s426 + $0x580] sm:$0xff]
        %v1179 = vld [vmem:[%s426 + $0x588] sm:$0xff]
        %v1180 = vld [vmem:[%s426 + $0x590] sm:$0xff]
        %v1181 = vld [vmem:[%s426 + $0x598] sm:$0xff]
        %v1182 = vld [vmem:[%s426 + $0x5a0] sm:$0xff]
        %v1183 = vld [vmem:[%s426 + $0x5a8] sm:$0xff]
        %v1184 = vld [vmem:[%s426 + $0x5b0] sm:$0xff]
        %v1185 = vld [vmem:[%s426 + $0x5b8] sm:$0xff]
        %v1186 = vld [vmem:[%s426 + $0x5c0] sm:$0xff]
        %v1187 = vld [vmem:[%s426 + $0x5c8] sm:$0xff]
        %v1188 = vld [vmem:[%s426 + $0x5d0] sm:$0xff]
        %v1189 = vld [vmem:[%s426 + $0x5d8] sm:$0xff]
        %v1190 = vld [vmem:[%s426 + $0x5e0] sm:$0xff]
        %v1191 = vld [vmem:[%s426 + $0x5e8] sm:$0xff]
        %v1192 = vld [vmem:[%s426 + $0x5f0] sm:$0xff]
        %v1193 = vld [vmem:[%s426 + $0x5f8] sm:$0xff]
        %v1194 = vld [vmem:[%s426 + $0x600] sm:$0xff]
        %v1195 = vld [vmem:[%s426 + $0x608] sm:$0xff]
        %v1196 = vld [vmem:[%s426 + $0x610] sm:$0xff]
        %v1197 = vld [vmem:[%s426 + $0x618] sm:$0xff]
        %v1198 = vld [vmem:[%s426 + $0x620] sm:$0xff]
        %v1199 = vld [vmem:[%s426 + $0x628] sm:$0xff]
        %v1200 = vld [vmem:[%s426 + $0x630] sm:$0xff]
        %v1201 = vld [vmem:[%s426 + $0x638] sm:$0xff]
        %v1202 = vld [vmem:[%s426 + $0x640] sm:$0xff]
        %v1203 = vld [vmem:[%s426 + $0x648] sm:$0xff]
        %v1204 = vld [vmem:[%s426 + $0x650] sm:$0xff]
        %v1205 = vld [vmem:[%s426 + $0x658] sm:$0xff]
        %v1206 = vld [vmem:[%s426 + $0x660] sm:$0xff]
        %v1207 = vld [vmem:[%s426 + $0x668] sm:$0xff]
        %v1208 = vld [vmem:[%s426 + $0x670] sm:$0xff]
        %v1209 = vld [vmem:[%s426 + $0x678] sm:$0xff]
        %v1210 = vld [vmem:[%s426 + $0x680] sm:$0xff]
        %v1211 = vld [vmem:[%s426 + $0x688] sm:$0xff]
        %v1212 = vld [vmem:[%s426 + $0x690] sm:$0xff]
        %v1213 = vld [vmem:[%s426 + $0x698] sm:$0xff]
        %v1214 = vld [vmem:[%s426 + $0x6a0] sm:$0xff]
        %v1215 = vld [vmem:[%s426 + $0x6a8] sm:$0xff]
        %v1216 = vld [vmem:[%s426 + $0x6b0] sm:$0xff]
        %v1217 = vld [vmem:[%s426 + $0x6b8] sm:$0xff]
        %v1218 = vld [vmem:[%s426 + $0x6c0] sm:$0xff]
        %v1219 = vld [vmem:[%s426 + $0x6c8] sm:$0xff]
        %v1220 = vld [vmem:[%s426 + $0x6d0] sm:$0xff]
        %v1221 = vld [vmem:[%s426 + $0x6d8] sm:$0xff]
        %v1222 = vld [vmem:[%s426 + $0x6e0] sm:$0xff]
        %v1223 = vld [vmem:[%s426 + $0x6e8] sm:$0xff]
        %v1224 = vld [vmem:[%s426 + $0x6f0] sm:$0xff]
        %v1225 = vld [vmem:[%s426 + $0x6f8] sm:$0xff]
        %v1226 = vld [vmem:[%s426 + $0x700] sm:$0xff]
        %v1227 = vld [vmem:[%s426 + $0x708] sm:$0xff]
        %v1228 = vld [vmem:[%s426 + $0x710] sm:$0xff]
        %v1229 = vld [vmem:[%s426 + $0x718] sm:$0xff]
        %v1230 = vld [vmem:[%s426 + $0x720] sm:$0xff]
        %v1231 = vld [vmem:[%s426 + $0x728] sm:$0xff]
        %v1232 = vld [vmem:[%s426 + $0x730] sm:$0xff]
        %v1233 = vld [vmem:[%s426 + $0x738] sm:$0xff]
        %v1234 = vld [vmem:[%s426 + $0x740] sm:$0xff]
        %v1235 = vld [vmem:[%s426 + $0x748] sm:$0xff]
        %v1236 = vld [vmem:[%s426 + $0x750] sm:$0xff]
        %v1237 = vld [vmem:[%s426 + $0x758] sm:$0xff]
        %v1238 = vld [vmem:[%s426 + $0x760] sm:$0xff]
        %v1239 = vld [vmem:[%s426 + $0x768] sm:$0xff]
        %v1240 = vld [vmem:[%s426 + $0x770] sm:$0xff]
        %v1241 = vld [vmem:[%s426 + $0x778] sm:$0xff]
        %v1242 = vld [vmem:[%s426 + $0x780] sm:$0xff]
        %v1243 = vld [vmem:[%s426 + $0x788] sm:$0xff]
        %v1244 = vld [vmem:[%s426 + $0x790] sm:$0xff]
        %v1245 = vld [vmem:[%s426 + $0x798] sm:$0xff]
        %v1246 = vld [vmem:[%s426 + $0x7a0] sm:$0xff]
        %v1247 = vld [vmem:[%s426 + $0x7a8] sm:$0xff]
        %v1248 = vld [vmem:[%s426 + $0x7b0] sm:$0xff]
        %v1249 = vld [vmem:[%s426 + $0x7b8] sm:$0xff]
        %v1250 = vld [vmem:[%s426 + $0x7c0] sm:$0xff]
        %v1251 = vld [vmem:[%s426 + $0x7c8] sm:$0xff]
        %v1252 = vld [vmem:[%s426 + $0x7d0] sm:$0xff]
        %v1253 = vld [vmem:[%s426 + $0x7d8] sm:$0xff]
        %v1254 = vld [vmem:[%s426 + $0x7e0] sm:$0xff]
        %v1255 = vld [vmem:[%s426 + $0x7e8] sm:$0xff]
        %v1256 = vld [vmem:[%s426 + $0x7f0] sm:$0xff]
        %v1257 = vld [vmem:[%s426 + $0x7f8] sm:$0xff]
        %v1258 = vld [vmem:[%s426 + $0x800] sm:$0xff]
        %v1259 = vld [vmem:[%s426 + $0x808] sm:$0xff]
        %v1260 = vld [vmem:[%s426 + $0x810] sm:$0xff]
        %v1261 = vld [vmem:[%s426 + $0x818] sm:$0xff]
        %v1262 = vld [vmem:[%s426 + $0x820] sm:$0xff]
        %v1263 = vld [vmem:[%s426 + $0x828] sm:$0xff]
        %v1264 = vld [vmem:[%s426 + $0x830] sm:$0xff]
        %v1265 = vld [vmem:[%s426 + $0x838] sm:$0xff]
        %v1266 = vld [vmem:[%s426 + $0x840] sm:$0xff]
        %v1267 = vld [vmem:[%s426 + $0x848] sm:$0xff]
        %v1268 = vld [vmem:[%s426 + $0x850] sm:$0xff]
        %v1269 = vld [vmem:[%s426 + $0x858] sm:$0xff]
        %v1270 = vld [vmem:[%s426 + $0x860] sm:$0xff]
        %v1271 = vld [vmem:[%s426 + $0x868] sm:$0xff]
        %v1272 = vld [vmem:[%s426 + $0x870] sm:$0xff]
        %v1273 = vld [vmem:[%s426 + $0x878] sm:$0xff]
        %v1274 = vld [vmem:[%s426 + $0x880] sm:$0xff]
        %v1275 = vld [vmem:[%s426 + $0x888] sm:$0xff]
        %v1276 = vld [vmem:[%s426 + $0x890] sm:$0xff]
        %v1277 = vld [vmem:[%s426 + $0x898] sm:$0xff]
        %v1278 = vld [vmem:[%s426 + $0x8a0] sm:$0xff]
        %v1279 = vld [vmem:[%s426 + $0x8a8] sm:$0xff]
        %v1280 = vld [vmem:[%s426 + $0x8b0] sm:$0xff]
        %v1281 = vld [vmem:[%s426 + $0x8b8] sm:$0xff]
        %v1282 = vld [vmem:[%s426 + $0x8c0] sm:$0xff]
        %v1283 = vld [vmem:[%s426 + $0x8c8] sm:$0xff]
        %v1284 = vld [vmem:[%s426 + $0x8d0] sm:$0xff]
        %v1285 = vld [vmem:[%s426 + $0x8d8] sm:$0xff]
        %v1286 = vld [vmem:[%s426 + $0x8e0] sm:$0xff]
        %v1287 = vld [vmem:[%s426 + $0x8e8] sm:$0xff]
        %v1288 = vld [vmem:[%s426 + $0x8f0] sm:$0xff]
        %v1289 = vld [vmem:[%s426 + $0x8f8] sm:$0xff]
        %v1290 = vld [vmem:[%s426 + $0x900] sm:$0xff]
        %v1291 = vld [vmem:[%s426 + $0x908] sm:$0xff]
        %v1292 = vld [vmem:[%s426 + $0x910] sm:$0xff]
        %v1293 = vld [vmem:[%s426 + $0x918] sm:$0xff]
        %v1294 = vld [vmem:[%s426 + $0x920] sm:$0xff]
        %v1295 = vld [vmem:[%s426 + $0x928] sm:$0xff]
        %v1296 = vld [vmem:[%s426 + $0x930] sm:$0xff]
        %v1297 = vld [vmem:[%s426 + $0x938] sm:$0xff]
        %v1298 = vld [vmem:[%s426 + $0x940] sm:$0xff]
        %v1299 = vld [vmem:[%s426 + $0x948] sm:$0xff]
        %v1300 = vld [vmem:[%s426 + $0x950] sm:$0xff]
        %v1301 = vld [vmem:[%s426 + $0x958] sm:$0xff]
        %v1302 = vld [vmem:[%s426 + $0x960] sm:$0xff]
        %v1303 = vld [vmem:[%s426 + $0x968] sm:$0xff]
        %v1304 = vld [vmem:[%s426 + $0x970] sm:$0xff]
        %v1305 = vld [vmem:[%s426 + $0x978] sm:$0xff]
        %v1306 = vld [vmem:[%s426 + $0x980] sm:$0xff]
        %v1307 = vld [vmem:[%s426 + $0x988] sm:$0xff]
        %v1308 = vld [vmem:[%s426 + $0x990] sm:$0xff]
        %v1309 = vld [vmem:[%s426 + $0x998] sm:$0xff]
        %v1310 = vld [vmem:[%s426 + $0x9a0] sm:$0xff]
        %v1311 = vld [vmem:[%s426 + $0x9a8] sm:$0xff]
        %v1312 = vld [vmem:[%s426 + $0x9b0] sm:$0xff]
        %v1313 = vld [vmem:[%s426 + $0x9b8] sm:$0xff]
        %v1314 = vld [vmem:[%s426 + $0x9c0] sm:$0xff]
        %v1315 = vld [vmem:[%s426 + $0x9c8] sm:$0xff]
        %v1316 = vld [vmem:[%s426 + $0x9d0] sm:$0xff]
        %v1317 = vld [vmem:[%s426 + $0x9d8] sm:$0xff]
        %v1318 = vld [vmem:[%s426 + $0x9e0] sm:$0xff]
        %v1319 = vld [vmem:[%s426 + $0x9e8] sm:$0xff]
        %v1320 = vld [vmem:[%s426 + $0x9f0] sm:$0xff]
        %v1321 = vld [vmem:[%s426 + $0x9f8] sm:$0xff]
        %v1322 = vld [vmem:[%s426 + $0xa00] sm:$0xff]
        %v1323 = vld [vmem:[%s426 + $0xa08] sm:$0xff]
        %v1324 = vld [vmem:[%s426 + $0xa10] sm:$0xff]
        %v1325 = vld [vmem:[%s426 + $0xa18] sm:$0xff]
        %v1326 = vld [vmem:[%s426 + $0xa20] sm:$0xff]
        %v1327 = vld [vmem:[%s426 + $0xa28] sm:$0xff]
        %v1328 = vld [vmem:[%s426 + $0xa30] sm:$0xff]
        %v1329 = vld [vmem:[%s426 + $0xa38] sm:$0xff]
        %v1330 = vld [vmem:[%s426 + $0xa40] sm:$0xff]
        %v1331 = vld [vmem:[%s426 + $0xa48] sm:$0xff]
        %v1332 = vld [vmem:[%s426 + $0xa50] sm:$0xff]
        %v1333 = vld [vmem:[%s426 + $0xa58] sm:$0xff]
        %v1334 = vld [vmem:[%s426 + $0xa60] sm:$0xff]
        %v1335 = vld [vmem:[%s426 + $0xa68] sm:$0xff]
        %v1336 = vld [vmem:[%s426 + $0xa70] sm:$0xff]
        %v1337 = vld [vmem:[%s426 + $0xa78] sm:$0xff]
        %v1338 = vld [vmem:[%s426 + $0xa80] sm:$0xff]
        %v1339 = vld [vmem:[%s426 + $0xa88] sm:$0xff]
        %v1340 = vld [vmem:[%s426 + $0xa90] sm:$0xff]
        %v1341 = vld [vmem:[%s426 + $0xa98] sm:$0xff]
        %v1342 = vld [vmem:[%s426 + $0xaa0] sm:$0xff]
        %v1343 = vld [vmem:[%s426 + $0xaa8] sm:$0xff]
        %v1344 = vld [vmem:[%s426 + $0xab0] sm:$0xff]
        %v1345 = vld [vmem:[%s426 + $0xab8] sm:$0xff]
        %v1346 = vld [vmem:[%s426 + $0xac0] sm:$0xff]
        %v1347 = vld [vmem:[%s426 + $0xac8] sm:$0xff]
        %v1348 = vld [vmem:[%s426 + $0xad0] sm:$0xff]
        %v1349 = vld [vmem:[%s426 + $0xad8] sm:$0xff]
        %v1350 = vld [vmem:[%s426 + $0xae0] sm:$0xff]
        %v1351 = vld [vmem:[%s426 + $0xae8] sm:$0xff]
        %v1352 = vld [vmem:[%s426 + $0xaf0] sm:$0xff]
        %v1353 = vld [vmem:[%s426 + $0xaf8] sm:$0xff]
        %v1354 = vld [vmem:[%s426 + $0xb00] sm:$0xff]
        %v1355 = vld [vmem:[%s426 + $0xb08] sm:$0xff]
        %v1356 = vld [vmem:[%s426 + $0xb10] sm:$0xff]
        %v1357 = vld [vmem:[%s426 + $0xb18] sm:$0xff]
        %v1358 = vld [vmem:[%s426 + $0xb20] sm:$0xff]
        %v1359 = vld [vmem:[%s426 + $0xb28] sm:$0xff]
        %v1360 = vld [vmem:[%s426 + $0xb30] sm:$0xff]
        %v1361 = vld [vmem:[%s426 + $0xb38] sm:$0xff]
        %v1362 = vld [vmem:[%s426 + $0xb40] sm:$0xff]
        %v1363 = vld [vmem:[%s426 + $0xb48] sm:$0xff]
        %v1364 = vld [vmem:[%s426 + $0xb50] sm:$0xff]
        %v1365 = vld [vmem:[%s426 + $0xb58] sm:$0xff]
        %v1366 = vld [vmem:[%s426 + $0xb60] sm:$0xff]
        %v1367 = vld [vmem:[%s426 + $0xb68] sm:$0xff]
        %v1368 = vld [vmem:[%s426 + $0xb70] sm:$0xff]
        %v1369 = vld [vmem:[%s426 + $0xb78] sm:$0xff]
        %v1370 = vld [vmem:[%s426 + $0xb80] sm:$0xff]
        %v1371 = vld [vmem:[%s426 + $0xb88] sm:$0xff]
        %v1372 = vld [vmem:[%s426 + $0xb90] sm:$0xff]
        %v1373 = vld [vmem:[%s426 + $0xb98] sm:$0xff]
        %v1374 = vld [vmem:[%s426 + $0xba0] sm:$0xff]
        %v1375 = vld [vmem:[%s426 + $0xba8] sm:$0xff]
        %v1376 = vld [vmem:[%s426 + $0xbb0] sm:$0xff]
        %v1377 = vld [vmem:[%s426 + $0xbb8] sm:$0xff]
        %v1378 = vld [vmem:[%s426 + $0xbc0] sm:$0xff]
        %v1379 = vld [vmem:[%s426 + $0xbc8] sm:$0xff]
        %v1380 = vld [vmem:[%s426 + $0xbd0] sm:$0xff]
        %v1381 = vld [vmem:[%s426 + $0xbd8] sm:$0xff]
        %v1382 = vld [vmem:[%s426 + $0xbe0] sm:$0xff]
        %v1383 = vld [vmem:[%s426 + $0xbe8] sm:$0xff]
        %v1384 = vld [vmem:[%s426 + $0xbf0] sm:$0xff]
        %v1385 = vld [vmem:[%s426 + $0xbf8] sm:$0xff]
        %v1386 = vld [vmem:[%s426 + $0xc00] sm:$0xff]
        %v1387 = vld [vmem:[%s426 + $0xc08] sm:$0xff]
        %v1388 = vld [vmem:[%s426 + $0xc10] sm:$0xff]
        %v1389 = vld [vmem:[%s426 + $0xc18] sm:$0xff]
        %v1390 = vld [vmem:[%s426 + $0xc20] sm:$0xff]
        %v1391 = vld [vmem:[%s426 + $0xc28] sm:$0xff]
        %v1392 = vld [vmem:[%s426 + $0xc30] sm:$0xff]
        %v1393 = vld [vmem:[%s426 + $0xc38] sm:$0xff]
        %v1394 = vld [vmem:[%s426 + $0xc40] sm:$0xff]
        %v1395 = vld [vmem:[%s426 + $0xc48] sm:$0xff]
        %v1396 = vld [vmem:[%s426 + $0xc50] sm:$0xff]
        %v1397 = vld [vmem:[%s426 + $0xc58] sm:$0xff]
        %v1398 = vld [vmem:[%s426 + $0xc60] sm:$0xff]
        %v1399 = vld [vmem:[%s426 + $0xc68] sm:$0xff]
        %v1400 = vld [vmem:[%s426 + $0xc70] sm:$0xff]
        %v1401 = vld [vmem:[%s426 + $0xc78] sm:$0xff]
        %v1406 = vcombine.high %v998, %v998
        %v1408 = vunpack.c.l.s4 1966171168
        %v1409 = vunpack.c.0.s8 %v1408
        %v1410 = vlaneseq
        %v1411 = vshrl.u32 %v1410, 7
        %v1412 = vsub.s32 %v1409, %v1411
        %v1413 = vrot.slane %v998, %v1412
        %v1415 = vunpack.c.l.s4 1966171168
        %v1416 = vunpack.c.0.s8 %v1415
        %v1417 = vlaneseq
        %v1418 = vshrl.u32 %v1417, 7
        %v1419 = vsub.s32 %v1416, %v1418
        %v1420 = vrot.slane %v1406, %v1419
        %v1421 = vcombine.high %v1413, %v1413
        %v1422 = vcombine.high %v1420, %v1420
        %v1424 = vunpack.c.l.s4 1966171168
        %v1425 = vunpack.c.0.s8 %v1424
        %v1426 = vlaneseq
        %v1427 = vshrl.u32 %v1426, 7
        %v1428 = vsub.s32 %v1425, %v1427
        %v1429 = vrot.slane %v1413, %v1428
        %v1431 = vunpack.c.l.s4 1966171168
        %v1432 = vunpack.c.0.s8 %v1431
        %v1433 = vlaneseq
        %v1434 = vshrl.u32 %v1433, 7
        %v1435 = vsub.s32 %v1432, %v1434
        %v1436 = vrot.slane %v1420, %v1435
        %v1438 = vunpack.c.l.s4 1966171168
        %v1439 = vunpack.c.0.s8 %v1438
        %v1440 = vlaneseq
        %v1441 = vshrl.u32 %v1440, 7
        %v1442 = vsub.s32 %v1439, %v1441
        %v1443 = vrot.slane %v1421, %v1442
        %v1445 = vunpack.c.l.s4 1966171168
        %v1446 = vunpack.c.0.s8 %v1445
        %v1447 = vlaneseq
        %v1448 = vshrl.u32 %v1447, 7
        %v1449 = vsub.s32 %v1446, %v1448
        %v1450 = vrot.slane %v1422, %v1449
        %v1451 = vcombine.high %v1429, %v1429
        %v1452 = vcombine.high %v1436, %v1436
        %v1453 = vcombine.high %v1443, %v1443
        %v1454 = vcombine.high %v1450, %v1450
        %v1455 = vcombine.high %v999, %v999
        %v1457 = vunpack.c.l.s4 1966171168
        %v1458 = vunpack.c.0.s8 %v1457
        %v1459 = vlaneseq
        %v1460 = vshrl.u32 %v1459, 7
        %v1461 = vsub.s32 %v1458, %v1460
        %v1462 = vrot.slane %v999, %v1461
        %v1464 = vunpack.c.l.s4 1966171168
        %v1465 = vunpack.c.0.s8 %v1464
        %v1466 = vlaneseq
        %v1467 = vshrl.u32 %v1466, 7
        %v1468 = vsub.s32 %v1465, %v1467
        %v1469 = vrot.slane %v1455, %v1468
        %v1470 = vcombine.high %v1462, %v1462
        %v1471 = vcombine.high %v1469, %v1469
        %v1473 = vunpack.c.l.s4 1966171168
        %v1474 = vunpack.c.0.s8 %v1473
        %v1475 = vlaneseq
        %v1476 = vshrl.u32 %v1475, 7
        %v1477 = vsub.s32 %v1474, %v1476
        %v1478 = vrot.slane %v1462, %v1477
        %v1480 = vunpack.c.l.s4 1966171168
        %v1481 = vunpack.c.0.s8 %v1480
        %v1482 = vlaneseq
        %v1483 = vshrl.u32 %v1482, 7
        %v1484 = vsub.s32 %v1481, %v1483
        %v1485 = vrot.slane %v1469, %v1484
        %v1487 = vunpack.c.l.s4 1966171168
        %v1488 = vunpack.c.0.s8 %v1487
        %v1489 = vlaneseq
        %v1490 = vshrl.u32 %v1489, 7
        %v1491 = vsub.s32 %v1488, %v1490
        %v1492 = vrot.slane %v1470, %v1491
        %v1494 = vunpack.c.l.s4 1966171168
        %v1495 = vunpack.c.0.s8 %v1494
        %v1496 = vlaneseq
        %v1497 = vshrl.u32 %v1496, 7
        %v1498 = vsub.s32 %v1495, %v1497
        %v1499 = vrot.slane %v1471, %v1498
        %v1500 = vcombine.high %v1478, %v1478
        %v1501 = vcombine.high %v1485, %v1485
        %v1502 = vcombine.high %v1492, %v1492
        %v1503 = vcombine.high %v1499, %v1499
        %v1504 = vcombine.high %v1000, %v1000
        %v1506 = vunpack.c.l.s4 1966171168
        %v1507 = vunpack.c.0.s8 %v1506
        %v1508 = vlaneseq
        %v1509 = vshrl.u32 %v1508, 7
        %v1510 = vsub.s32 %v1507, %v1509
        %v1511 = vrot.slane %v1000, %v1510
        %v1513 = vunpack.c.l.s4 1966171168
        %v1514 = vunpack.c.0.s8 %v1513
        %v1515 = vlaneseq
        %v1516 = vshrl.u32 %v1515, 7
        %v1517 = vsub.s32 %v1514, %v1516
        %v1518 = vrot.slane %v1504, %v1517
        %v1519 = vcombine.high %v1511, %v1511
        %v1520 = vcombine.high %v1518, %v1518
        %v1522 = vunpack.c.l.s4 1966171168
        %v1523 = vunpack.c.0.s8 %v1522
        %v1524 = vlaneseq
        %v1525 = vshrl.u32 %v1524, 7
        %v1526 = vsub.s32 %v1523, %v1525
        %v1527 = vrot.slane %v1511, %v1526
        %v1529 = vunpack.c.l.s4 1966171168
        %v1530 = vunpack.c.0.s8 %v1529
        %v1531 = vlaneseq
        %v1532 = vshrl.u32 %v1531, 7
        %v1533 = vsub.s32 %v1530, %v1532
        %v1534 = vrot.slane %v1518, %v1533
        %v1536 = vunpack.c.l.s4 1966171168
        %v1537 = vunpack.c.0.s8 %v1536
        %v1538 = vlaneseq
        %v1539 = vshrl.u32 %v1538, 7
        %v1540 = vsub.s32 %v1537, %v1539
        %v1541 = vrot.slane %v1519, %v1540
        %v1543 = vunpack.c.l.s4 1966171168
        %v1544 = vunpack.c.0.s8 %v1543
        %v1545 = vlaneseq
        %v1546 = vshrl.u32 %v1545, 7
        %v1547 = vsub.s32 %v1544, %v1546
        %v1548 = vrot.slane %v1520, %v1547
        %v1549 = vcombine.high %v1527, %v1527
        %v1550 = vcombine.high %v1534, %v1534
        %v1551 = vcombine.high %v1541, %v1541
        %v1552 = vcombine.high %v1548, %v1548
        %v1554 = vunpack.c.l.s4 1966171168
        %v1555 = vunpack.c.0.s8 %v1554
        %v1556 = vlaneseq
        %v1557 = vshrl.u32 %v1556, 7
        %v1558 = vsub.s32 %v1555, %v1557
        %v1559 = vrot.slane %v1001, %v1558
        %v1561 = vunpack.c.l.s4 1966171168
        %v1562 = vunpack.c.0.s8 %v1561
        %v1563 = vlaneseq
        %v1564 = vshrl.u32 %v1563, 7
        %v1565 = vsub.s32 %v1562, %v1564
        %v1566 = vrot.slane %v1559, %v1565
        %v1992 = vunpack.c.l.b16 %v1002
        %v1993 = vunpack.c.h.b16 %v1002
        %v1994 = vunpack.c.l.b16 %v1003
        %v1995 = vunpack.c.h.b16 %v1003
        %v1996 = vunpack.c.l.b16 %v1004
        %v1997 = vunpack.c.h.b16 %v1004
        %v1998 = vunpack.c.l.b16 %v1005
        %v1999 = vunpack.c.h.b16 %v1005
        %v2000 = vunpack.c.l.b16 %v1006
        %v2001 = vunpack.c.h.b16 %v1006
        %v2002 = vunpack.c.l.b16 %v1007
        %v2003 = vunpack.c.h.b16 %v1007
        %v2004 = vunpack.c.l.b16 %v1008
        %v2005 = vunpack.c.h.b16 %v1008
        %v2006 = vunpack.c.l.b16 %v1009
        %v2007 = vunpack.c.h.b16 %v1009
        %v2008 = vunpack.c.l.b16 %v1010
        %v2009 = vunpack.c.h.b16 %v1010
        %v2010 = vunpack.c.l.b16 %v1011
        %v2011 = vunpack.c.h.b16 %v1011
        %v2012 = vunpack.c.l.b16 %v1012
        %v2013 = vunpack.c.h.b16 %v1012
        %v2014 = vunpack.c.l.b16 %v1013
        %v2015 = vunpack.c.h.b16 %v1013
        %v2016 = vunpack.c.l.b16 %v1014
        %v2017 = vunpack.c.h.b16 %v1014
        %v2018 = vunpack.c.l.b16 %v1015
        %v2019 = vunpack.c.h.b16 %v1015
        %v2020 = vunpack.c.l.b16 %v1016
        %v2021 = vunpack.c.h.b16 %v1016
        %v2022 = vunpack.c.l.b16 %v1017
        %v2023 = vunpack.c.h.b16 %v1017
        %v2024 = vunpack.c.l.b16 %v1018
        %v2025 = vunpack.c.h.b16 %v1018
        %v2026 = vunpack.c.l.b16 %v1019
        %v2027 = vunpack.c.h.b16 %v1019
        %v2028 = vunpack.c.l.b16 %v1020
        %v2029 = vunpack.c.h.b16 %v1020
        %v2030 = vunpack.c.l.b16 %v1021
        %v2031 = vunpack.c.h.b16 %v1021
        %v2032 = vunpack.c.l.b16 %v1022
        %v2033 = vunpack.c.h.b16 %v1022
        %v2034 = vunpack.c.l.b16 %v1023
        %v2035 = vunpack.c.h.b16 %v1023
        %v2036 = vunpack.c.l.b16 %v1024
        %v2037 = vunpack.c.h.b16 %v1024
        %v2038 = vunpack.c.l.b16 %v1025
        %v2039 = vunpack.c.h.b16 %v1025
        %v2040 = vunpack.c.l.b16 %v1026
        %v2041 = vunpack.c.h.b16 %v1026
        %v2042 = vunpack.c.l.b16 %v1027
        %v2043 = vunpack.c.h.b16 %v1027
        %v2044 = vunpack.c.l.b16 %v1028
        %v2045 = vunpack.c.h.b16 %v1028
        %v2046 = vunpack.c.l.b16 %v1029
        %v2047 = vunpack.c.h.b16 %v1029
        %v2048 = vunpack.c.l.b16 %v1030
        %v2049 = vunpack.c.h.b16 %v1030
        %v2050 = vunpack.c.l.b16 %v1031
        %v2051 = vunpack.c.h.b16 %v1031
        %v2052 = vunpack.c.l.b16 %v1032
        %v2053 = vunpack.c.h.b16 %v1032
        %v2054 = vunpack.c.l.b16 %v1033
        %v2055 = vunpack.c.h.b16 %v1033
        %v2056 = vunpack.c.l.b16 %v1034
        %v2057 = vunpack.c.h.b16 %v1034
        %v2058 = vunpack.c.l.b16 %v1035
        %v2059 = vunpack.c.h.b16 %v1035
        %v2060 = vunpack.c.l.b16 %v1036
        %v2061 = vunpack.c.h.b16 %v1036
        %v2062 = vunpack.c.l.b16 %v1037
        %v2063 = vunpack.c.h.b16 %v1037
        %v2064 = vunpack.c.l.b16 %v1038
        %v2065 = vunpack.c.h.b16 %v1038
        %v2066 = vunpack.c.l.b16 %v1039
        %v2067 = vunpack.c.h.b16 %v1039
        %v2068 = vunpack.c.l.b16 %v1040
        %v2069 = vunpack.c.h.b16 %v1040
        %v2070 = vunpack.c.l.b16 %v1041
        %v2071 = vunpack.c.h.b16 %v1041
        %v2072 = vunpack.c.l.b16 %v1042
        %v2073 = vunpack.c.h.b16 %v1042
        %v2074 = vunpack.c.l.b16 %v1043
        %v2075 = vunpack.c.h.b16 %v1043
        %v2076 = vunpack.c.l.b16 %v1044
        %v2077 = vunpack.c.h.b16 %v1044
        %v2078 = vunpack.c.l.b16 %v1045
        %v2079 = vunpack.c.h.b16 %v1045
        %v2080 = vunpack.c.l.b16 %v1046
        %v2081 = vunpack.c.h.b16 %v1046
        %v2082 = vunpack.c.l.b16 %v1047
        %v2083 = vunpack.c.h.b16 %v1047
        %v2084 = vunpack.c.l.b16 %v1048
        %v2085 = vunpack.c.h.b16 %v1048
        %v2086 = vunpack.c.l.b16 %v1049
        %v2087 = vunpack.c.h.b16 %v1049
        %v2088 = vunpack.c.l.b16 %v1050
        %v2089 = vunpack.c.h.b16 %v1050
        %v2090 = vunpack.c.l.b16 %v1051
        %v2091 = vunpack.c.h.b16 %v1051
        %v2092 = vunpack.c.l.b16 %v1052
        %v2093 = vunpack.c.h.b16 %v1052
        %v2094 = vunpack.c.l.b16 %v1053
        %v2095 = vunpack.c.h.b16 %v1053
        %v2096 = vunpack.c.l.b16 %v1054
        %v2097 = vunpack.c.h.b16 %v1054
        %v2098 = vunpack.c.l.b16 %v1055
        %v2099 = vunpack.c.h.b16 %v1055
        %v2100 = vunpack.c.l.b16 %v1056
        %v2101 = vunpack.c.h.b16 %v1056
        %v2102 = vunpack.c.l.b16 %v1057
        %v2103 = vunpack.c.h.b16 %v1057
        %v2104 = vunpack.c.l.b16 %v1058
        %v2105 = vunpack.c.h.b16 %v1058
        %v2106 = vunpack.c.l.b16 %v1059
        %v2107 = vunpack.c.h.b16 %v1059
        %v2108 = vunpack.c.l.b16 %v1060
        %v2109 = vunpack.c.h.b16 %v1060
        %v2110 = vunpack.c.l.b16 %v1061
        %v2111 = vunpack.c.h.b16 %v1061
        %v2112 = vunpack.c.l.b16 %v1062
        %v2113 = vunpack.c.h.b16 %v1062
        %v2114 = vunpack.c.l.b16 %v1063
        %v2115 = vunpack.c.h.b16 %v1063
        %v2116 = vunpack.c.l.b16 %v1064
        %v2117 = vunpack.c.h.b16 %v1064
        %v2118 = vunpack.c.l.b16 %v1065
        %v2119 = vunpack.c.h.b16 %v1065
        %v2120 = vunpack.c.l.b16 %v1066
        %v2121 = vunpack.c.h.b16 %v1066
        %v2122 = vunpack.c.l.b16 %v1067
        %v2123 = vunpack.c.h.b16 %v1067
        %v2124 = vunpack.c.l.b16 %v1068
        %v2125 = vunpack.c.h.b16 %v1068
        %v2126 = vunpack.c.l.b16 %v1069
        %v2127 = vunpack.c.h.b16 %v1069
        %v2128 = vunpack.c.l.b16 %v1070
        %v2129 = vunpack.c.h.b16 %v1070
        %v2130 = vunpack.c.l.b16 %v1071
        %v2131 = vunpack.c.h.b16 %v1071
        %v2132 = vunpack.c.l.b16 %v1072
        %v2133 = vunpack.c.h.b16 %v1072
        %v2134 = vunpack.c.l.b16 %v1073
        %v2135 = vunpack.c.h.b16 %v1073
        %v2136 = vunpack.c.l.b16 %v1074
        %v2137 = vunpack.c.h.b16 %v1074
        %v2138 = vunpack.c.l.b16 %v1075
        %v2139 = vunpack.c.h.b16 %v1075
        %v2140 = vunpack.c.l.b16 %v1076
        %v2141 = vunpack.c.h.b16 %v1076
        %v2142 = vunpack.c.l.b16 %v1077
        %v2143 = vunpack.c.h.b16 %v1077
        %v2144 = vunpack.c.l.b16 %v1078
        %v2145 = vunpack.c.h.b16 %v1078
        %v2146 = vunpack.c.l.b16 %v1079
        %v2147 = vunpack.c.h.b16 %v1079
        %v2148 = vunpack.c.l.b16 %v1080
        %v2149 = vunpack.c.h.b16 %v1080
        %v2150 = vunpack.c.l.b16 %v1081
        %v2151 = vunpack.c.h.b16 %v1081
        %v2152 = vunpack.c.l.b16 %v1082
        %v2153 = vunpack.c.h.b16 %v1082
        %v2154 = vunpack.c.l.b16 %v1083
        %v2155 = vunpack.c.h.b16 %v1083
        %v2156 = vunpack.c.l.b16 %v1084
        %v2157 = vunpack.c.h.b16 %v1084
        %v2158 = vunpack.c.l.b16 %v1085
        %v2159 = vunpack.c.h.b16 %v1085
        %v2160 = vunpack.c.l.b16 %v1086
        %v2161 = vunpack.c.h.b16 %v1086
        %v2162 = vunpack.c.l.b16 %v1087
        %v2163 = vunpack.c.h.b16 %v1087
        %v2164 = vunpack.c.l.b16 %v1088
        %v2165 = vunpack.c.h.b16 %v1088
        %v2166 = vunpack.c.l.b16 %v1089
        %v2167 = vunpack.c.h.b16 %v1089
        %v2168 = vunpack.c.l.b16 %v1090
        %v2169 = vunpack.c.h.b16 %v1090
        %v2170 = vunpack.c.l.b16 %v1091
        %v2171 = vunpack.c.h.b16 %v1091
        %v2172 = vunpack.c.l.b16 %v1092
        %v2173 = vunpack.c.h.b16 %v1092
        %v2174 = vunpack.c.l.b16 %v1093
        %v2175 = vunpack.c.h.b16 %v1093
        %v2176 = vunpack.c.l.b16 %v1094
        %v2177 = vunpack.c.h.b16 %v1094
        %v2178 = vunpack.c.l.b16 %v1095
        %v2179 = vunpack.c.h.b16 %v1095
        %v2180 = vunpack.c.l.b16 %v1096
        %v2181 = vunpack.c.h.b16 %v1096
        %v2182 = vunpack.c.l.b16 %v1097
        %v2183 = vunpack.c.h.b16 %v1097
        %v2184 = vunpack.c.l.b16 %v1098
        %v2185 = vunpack.c.h.b16 %v1098
        %v2186 = vunpack.c.l.b16 %v1099
        %v2187 = vunpack.c.h.b16 %v1099
        %v2188 = vunpack.c.l.b16 %v1100
        %v2189 = vunpack.c.h.b16 %v1100
        %v2190 = vunpack.c.l.b16 %v1101
        %v2191 = vunpack.c.h.b16 %v1101
        %v2192 = vunpack.c.l.b16 %v1102
        %v2193 = vunpack.c.h.b16 %v1102
        %v2194 = vunpack.c.l.b16 %v1103
        %v2195 = vunpack.c.h.b16 %v1103
        %v2196 = vunpack.c.l.b16 %v1104
        %v2197 = vunpack.c.h.b16 %v1104
        %v2198 = vunpack.c.l.b16 %v1105
        %v2199 = vunpack.c.h.b16 %v1105
        %v2200 = vunpack.c.l.b16 %v1106
        %v2201 = vunpack.c.h.b16 %v1106
        %v2202 = vunpack.c.l.b16 %v1107
        %v2203 = vunpack.c.h.b16 %v1107
        %v2204 = vunpack.c.l.b16 %v1108
        %v2205 = vunpack.c.h.b16 %v1108
        %v2206 = vunpack.c.l.b16 %v1109
        %v2207 = vunpack.c.h.b16 %v1109
        %v2208 = vunpack.c.l.b16 %v1110
        %v2209 = vunpack.c.h.b16 %v1110
        %v2210 = vunpack.c.l.b16 %v1111
        %v2211 = vunpack.c.h.b16 %v1111
        %v2212 = vunpack.c.l.b16 %v1112
        %v2213 = vunpack.c.h.b16 %v1112
        %v2214 = vunpack.c.l.b16 %v1113
        %v2215 = vunpack.c.h.b16 %v1113
        %v2216 = vunpack.c.l.b16 %v1114
        %v2217 = vunpack.c.h.b16 %v1114
        %v2218 = vunpack.c.l.b16 %v1115
        %v2219 = vunpack.c.h.b16 %v1115
        %v2220 = vunpack.c.l.b16 %v1116
        %v2221 = vunpack.c.h.b16 %v1116
        %v2222 = vunpack.c.l.b16 %v1117
        %v2223 = vunpack.c.h.b16 %v1117
        %v2224 = vunpack.c.l.b16 %v1118
        %v2225 = vunpack.c.h.b16 %v1118
        %v2226 = vunpack.c.l.b16 %v1119
        %v2227 = vunpack.c.h.b16 %v1119
        %v2228 = vunpack.c.l.b16 %v1120
        %v2229 = vunpack.c.h.b16 %v1120
        %v2230 = vunpack.c.l.b16 %v1121
        %v2231 = vunpack.c.h.b16 %v1121
        %v2232 = vunpack.c.l.b16 %v1122
        %v2233 = vunpack.c.h.b16 %v1122
        %v2234 = vunpack.c.l.b16 %v1123
        %v2235 = vunpack.c.h.b16 %v1123
        %v2236 = vunpack.c.l.b16 %v1124
        %v2237 = vunpack.c.h.b16 %v1124
        %v2238 = vunpack.c.l.b16 %v1125
        %v2239 = vunpack.c.h.b16 %v1125
        %v2240 = vunpack.c.l.b16 %v1126
        %v2241 = vunpack.c.h.b16 %v1126
        %v2242 = vunpack.c.l.b16 %v1127
        %v2243 = vunpack.c.h.b16 %v1127
        %v2244 = vunpack.c.l.b16 %v1128
        %v2245 = vunpack.c.h.b16 %v1128
        %v2246 = vunpack.c.l.b16 %v1129
        %v2247 = vunpack.c.h.b16 %v1129
        %v2248 = vunpack.c.l.b16 %v1130
        %v2249 = vunpack.c.h.b16 %v1130
        %v2250 = vunpack.c.l.b16 %v1131
        %v2251 = vunpack.c.h.b16 %v1131
        %v2252 = vunpack.c.l.b16 %v1132
        %v2253 = vunpack.c.h.b16 %v1132
        %v2254 = vunpack.c.l.b16 %v1133
        %v2255 = vunpack.c.h.b16 %v1133
        %v2256 = vunpack.c.l.b16 %v1134
        %v2257 = vunpack.c.h.b16 %v1134
        %v2258 = vunpack.c.l.b16 %v1135
        %v2259 = vunpack.c.h.b16 %v1135
        %v2260 = vunpack.c.l.b16 %v1136
        %v2261 = vunpack.c.h.b16 %v1136
        %v2262 = vunpack.c.l.b16 %v1137
        %v2263 = vunpack.c.h.b16 %v1137
        %v2264 = vunpack.c.l.b16 %v1138
        %v2265 = vunpack.c.h.b16 %v1138
        %v2266 = vunpack.c.l.b16 %v1139
        %v2267 = vunpack.c.h.b16 %v1139
        %v2268 = vunpack.c.l.b16 %v1140
        %v2269 = vunpack.c.h.b16 %v1140
        %v2270 = vunpack.c.l.b16 %v1141
        %v2271 = vunpack.c.h.b16 %v1141
        %v2272 = vunpack.c.l.b16 %v1142
        %v2273 = vunpack.c.h.b16 %v1142
        %v2274 = vunpack.c.l.b16 %v1143
        %v2275 = vunpack.c.h.b16 %v1143
        %v2276 = vunpack.c.l.b16 %v1144
        %v2277 = vunpack.c.h.b16 %v1144
        %v2278 = vunpack.c.l.b16 %v1145
        %v2279 = vunpack.c.h.b16 %v1145
        %v2280 = vunpack.c.l.b16 %v1146
        %v2281 = vunpack.c.h.b16 %v1146
        %v2282 = vunpack.c.l.b16 %v1147
        %v2283 = vunpack.c.h.b16 %v1147
        %v2284 = vunpack.c.l.b16 %v1148
        %v2285 = vunpack.c.h.b16 %v1148
        %v2286 = vunpack.c.l.b16 %v1149
        %v2287 = vunpack.c.h.b16 %v1149
        %v2288 = vunpack.c.l.b16 %v1150
        %v2289 = vunpack.c.h.b16 %v1150
        %v2290 = vunpack.c.l.b16 %v1151
        %v2291 = vunpack.c.h.b16 %v1151
        %v2292 = vunpack.c.l.b16 %v1152
        %v2293 = vunpack.c.h.b16 %v1152
        %v2294 = vunpack.c.l.b16 %v1153
        %v2295 = vunpack.c.h.b16 %v1153
        %v2296 = vunpack.c.l.b16 %v1154
        %v2297 = vunpack.c.h.b16 %v1154
        %v2298 = vunpack.c.l.b16 %v1155
        %v2299 = vunpack.c.h.b16 %v1155
        %v2300 = vunpack.c.l.b16 %v1156
        %v2301 = vunpack.c.h.b16 %v1156
        %v2302 = vunpack.c.l.b16 %v1157
        %v2303 = vunpack.c.h.b16 %v1157
        %v2304 = vunpack.c.l.b16 %v1158
        %v2305 = vunpack.c.h.b16 %v1158
        %v2306 = vunpack.c.l.b16 %v1159
        %v2307 = vunpack.c.h.b16 %v1159
        %v2308 = vunpack.c.l.b16 %v1160
        %v2309 = vunpack.c.h.b16 %v1160
        %v2310 = vunpack.c.l.b16 %v1161
        %v2311 = vunpack.c.h.b16 %v1161
        %v2312 = vunpack.c.l.b16 %v1162
        %v2313 = vunpack.c.h.b16 %v1162
        %v2314 = vunpack.c.l.b16 %v1163
        %v2315 = vunpack.c.h.b16 %v1163
        %v2316 = vunpack.c.l.b16 %v1164
        %v2317 = vunpack.c.h.b16 %v1164
        %v2318 = vunpack.c.l.b16 %v1165
        %v2319 = vunpack.c.h.b16 %v1165
        %v2320 = vunpack.c.l.b16 %v1166
        %v2321 = vunpack.c.h.b16 %v1166
        %v2322 = vunpack.c.l.b16 %v1167
        %v2323 = vunpack.c.h.b16 %v1167
        %v2324 = vunpack.c.l.b16 %v1168
        %v2325 = vunpack.c.h.b16 %v1168
        %v2326 = vunpack.c.l.b16 %v1169
        %v2327 = vunpack.c.h.b16 %v1169
        %v2328 = vunpack.c.l.b16 %v1170
        %v2329 = vunpack.c.h.b16 %v1170
        %v2330 = vunpack.c.l.b16 %v1171
        %v2331 = vunpack.c.h.b16 %v1171
        %v2332 = vunpack.c.l.b16 %v1172
        %v2333 = vunpack.c.h.b16 %v1172
        %v2334 = vunpack.c.l.b16 %v1173
        %v2335 = vunpack.c.h.b16 %v1173
        %v2336 = vunpack.c.l.b16 %v1174
        %v2337 = vunpack.c.h.b16 %v1174
        %v2338 = vunpack.c.l.b16 %v1175
        %v2339 = vunpack.c.h.b16 %v1175
        %v2340 = vunpack.c.l.b16 %v1176
        %v2341 = vunpack.c.h.b16 %v1176
        %v2342 = vunpack.c.l.b16 %v1177
        %v2343 = vunpack.c.h.b16 %v1177
        %v2344 = vunpack.c.l.b16 %v1178
        %v2345 = vunpack.c.h.b16 %v1178
        %v2346 = vunpack.c.l.b16 %v1179
        %v2347 = vunpack.c.h.b16 %v1179
        %v2348 = vunpack.c.l.b16 %v1180
        %v2349 = vunpack.c.h.b16 %v1180
        %v2350 = vunpack.c.l.b16 %v1181
        %v2351 = vunpack.c.h.b16 %v1181
        %v2352 = vunpack.c.l.b16 %v1182
        %v2353 = vunpack.c.h.b16 %v1182
        %v2354 = vunpack.c.l.b16 %v1183
        %v2355 = vunpack.c.h.b16 %v1183
        %v2356 = vunpack.c.l.b16 %v1184
        %v2357 = vunpack.c.h.b16 %v1184
        %v2358 = vunpack.c.l.b16 %v1185
        %v2359 = vunpack.c.h.b16 %v1185
        %v2360 = vunpack.c.l.b16 %v1186
        %v2361 = vunpack.c.h.b16 %v1186
        %v2362 = vunpack.c.l.b16 %v1187
        %v2363 = vunpack.c.h.b16 %v1187
        %v2364 = vunpack.c.l.b16 %v1188
        %v2365 = vunpack.c.h.b16 %v1188
        %v2366 = vunpack.c.l.b16 %v1189
        %v2367 = vunpack.c.h.b16 %v1189
        %v2368 = vunpack.c.l.b16 %v1190
        %v2369 = vunpack.c.h.b16 %v1190
        %v2370 = vunpack.c.l.b16 %v1191
        %v2371 = vunpack.c.h.b16 %v1191
        %v2372 = vunpack.c.l.b16 %v1192
        %v2373 = vunpack.c.h.b16 %v1192
        %v2374 = vunpack.c.l.b16 %v1193
        %v2375 = vunpack.c.h.b16 %v1193
        %v2376 = vunpack.c.l.b16 %v1194
        %v2377 = vunpack.c.h.b16 %v1194
        %v2378 = vunpack.c.l.b16 %v1195
        %v2379 = vunpack.c.h.b16 %v1195
        %v2380 = vunpack.c.l.b16 %v1196
        %v2381 = vunpack.c.h.b16 %v1196
        %v2382 = vunpack.c.l.b16 %v1197
        %v2383 = vunpack.c.h.b16 %v1197
        %v2384 = vunpack.c.l.b16 %v1198
        %v2385 = vunpack.c.h.b16 %v1198
        %v2386 = vunpack.c.l.b16 %v1199
        %v2387 = vunpack.c.h.b16 %v1199
        %v2388 = vunpack.c.l.b16 %v1200
        %v2389 = vunpack.c.h.b16 %v1200
        %v2390 = vunpack.c.l.b16 %v1201
        %v2391 = vunpack.c.h.b16 %v1201
        %v2392 = vunpack.c.l.b16 %v1202
        %v2393 = vunpack.c.h.b16 %v1202
        %v2394 = vunpack.c.l.b16 %v1203
        %v2395 = vunpack.c.h.b16 %v1203
        %v2396 = vunpack.c.l.b16 %v1204
        %v2397 = vunpack.c.h.b16 %v1204
        %v2398 = vunpack.c.l.b16 %v1205
        %v2399 = vunpack.c.h.b16 %v1205
        %v2400 = vunpack.c.l.b16 %v1206
        %v2401 = vunpack.c.h.b16 %v1206
        %v2402 = vunpack.c.l.b16 %v1207
        %v2403 = vunpack.c.h.b16 %v1207
        %v2404 = vunpack.c.l.b16 %v1208
        %v2405 = vunpack.c.h.b16 %v1208
        %v2406 = vunpack.c.l.b16 %v1209
        %v2407 = vunpack.c.h.b16 %v1209
        %v2408 = vunpack.c.l.b16 %v1210
        %v2409 = vunpack.c.h.b16 %v1210
        %v2410 = vunpack.c.l.b16 %v1211
        %v2411 = vunpack.c.h.b16 %v1211
        %v2412 = vunpack.c.l.b16 %v1212
        %v2413 = vunpack.c.h.b16 %v1212
        %v2414 = vunpack.c.l.b16 %v1213
        %v2415 = vunpack.c.h.b16 %v1213
        %v2416 = vunpack.c.l.b16 %v1214
        %v2417 = vunpack.c.h.b16 %v1214
        %v2418 = vunpack.c.l.b16 %v1215
        %v2419 = vunpack.c.h.b16 %v1215
        %v2420 = vunpack.c.l.b16 %v1216
        %v2421 = vunpack.c.h.b16 %v1216
        %v2422 = vunpack.c.l.b16 %v1217
        %v2423 = vunpack.c.h.b16 %v1217
        %v2424 = vunpack.c.l.b16 %v1218
        %v2425 = vunpack.c.h.b16 %v1218
        %v2426 = vunpack.c.l.b16 %v1219
        %v2427 = vunpack.c.h.b16 %v1219
        %v2428 = vunpack.c.l.b16 %v1220
        %v2429 = vunpack.c.h.b16 %v1220
        %v2430 = vunpack.c.l.b16 %v1221
        %v2431 = vunpack.c.h.b16 %v1221
        %v2432 = vunpack.c.l.b16 %v1222
        %v2433 = vunpack.c.h.b16 %v1222
        %v2434 = vunpack.c.l.b16 %v1223
        %v2435 = vunpack.c.h.b16 %v1223
        %v2436 = vunpack.c.l.b16 %v1224
        %v2437 = vunpack.c.h.b16 %v1224
        %v2438 = vunpack.c.l.b16 %v1225
        %v2439 = vunpack.c.h.b16 %v1225
        %v2440 = vunpack.c.l.b16 %v1226
        %v2441 = vunpack.c.h.b16 %v1226
        %v2442 = vunpack.c.l.b16 %v1227
        %v2443 = vunpack.c.h.b16 %v1227
        %v2444 = vunpack.c.l.b16 %v1228
        %v2445 = vunpack.c.h.b16 %v1228
        %v2446 = vunpack.c.l.b16 %v1229
        %v2447 = vunpack.c.h.b16 %v1229
        %v2448 = vunpack.c.l.b16 %v1230
        %v2449 = vunpack.c.h.b16 %v1230
        %v2450 = vunpack.c.l.b16 %v1231
        %v2451 = vunpack.c.h.b16 %v1231
        %v2452 = vunpack.c.l.b16 %v1232
        %v2453 = vunpack.c.h.b16 %v1232
        %v2454 = vunpack.c.l.b16 %v1233
        %v2455 = vunpack.c.h.b16 %v1233
        %v2456 = vunpack.c.l.b16 %v1234
        %v2457 = vunpack.c.h.b16 %v1234
        %v2458 = vunpack.c.l.b16 %v1235
        %v2459 = vunpack.c.h.b16 %v1235
        %v2460 = vunpack.c.l.b16 %v1236
        %v2461 = vunpack.c.h.b16 %v1236
        %v2462 = vunpack.c.l.b16 %v1237
        %v2463 = vunpack.c.h.b16 %v1237
        %v2464 = vunpack.c.l.b16 %v1238
        %v2465 = vunpack.c.h.b16 %v1238
        %v2466 = vunpack.c.l.b16 %v1239
        %v2467 = vunpack.c.h.b16 %v1239
        %v2468 = vunpack.c.l.b16 %v1240
        %v2469 = vunpack.c.h.b16 %v1240
        %v2470 = vunpack.c.l.b16 %v1241
        %v2471 = vunpack.c.h.b16 %v1241
        %v2472 = vunpack.c.l.b16 %v1242
        %v2473 = vunpack.c.h.b16 %v1242
        %v2474 = vunpack.c.l.b16 %v1243
        %v2475 = vunpack.c.h.b16 %v1243
        %v2476 = vunpack.c.l.b16 %v1244
        %v2477 = vunpack.c.h.b16 %v1244
        %v2478 = vunpack.c.l.b16 %v1245
        %v2479 = vunpack.c.h.b16 %v1245
        %v2480 = vunpack.c.l.b16 %v1246
        %v2481 = vunpack.c.h.b16 %v1246
        %v2482 = vunpack.c.l.b16 %v1247
        %v2483 = vunpack.c.h.b16 %v1247
        %v2484 = vunpack.c.l.b16 %v1248
        %v2485 = vunpack.c.h.b16 %v1248
        %v2486 = vunpack.c.l.b16 %v1249
        %v2487 = vunpack.c.h.b16 %v1249
        %v2488 = vunpack.c.l.b16 %v1250
        %v2489 = vunpack.c.h.b16 %v1250
        %v2490 = vunpack.c.l.b16 %v1251
        %v2491 = vunpack.c.h.b16 %v1251
        %v2492 = vunpack.c.l.b16 %v1252
        %v2493 = vunpack.c.h.b16 %v1252
        %v2494 = vunpack.c.l.b16 %v1253
        %v2495 = vunpack.c.h.b16 %v1253
        %v2496 = vunpack.c.l.b16 %v1254
        %v2497 = vunpack.c.h.b16 %v1254
        %v2498 = vunpack.c.l.b16 %v1255
        %v2499 = vunpack.c.h.b16 %v1255
        %v2500 = vunpack.c.l.b16 %v1256
        %v2501 = vunpack.c.h.b16 %v1256
        %v2502 = vunpack.c.l.b16 %v1257
        %v2503 = vunpack.c.h.b16 %v1257
        %v2504 = vunpack.c.l.b16 %v1258
        %v2505 = vunpack.c.h.b16 %v1258
        %v2506 = vunpack.c.l.b16 %v1259
        %v2507 = vunpack.c.h.b16 %v1259
        %v2508 = vunpack.c.l.b16 %v1260
        %v2509 = vunpack.c.h.b16 %v1260
        %v2510 = vunpack.c.l.b16 %v1261
        %v2511 = vunpack.c.h.b16 %v1261
        %v2512 = vunpack.c.l.b16 %v1262
        %v2513 = vunpack.c.h.b16 %v1262
        %v2514 = vunpack.c.l.b16 %v1263
        %v2515 = vunpack.c.h.b16 %v1263
        %v2516 = vunpack.c.l.b16 %v1264
        %v2517 = vunpack.c.h.b16 %v1264
        %v2518 = vunpack.c.l.b16 %v1265
        %v2519 = vunpack.c.h.b16 %v1265
        %v2520 = vunpack.c.l.b16 %v1266
        %v2521 = vunpack.c.h.b16 %v1266
        %v2522 = vunpack.c.l.b16 %v1267
        %v2523 = vunpack.c.h.b16 %v1267
        %v2524 = vunpack.c.l.b16 %v1268
        %v2525 = vunpack.c.h.b16 %v1268
        %v2526 = vunpack.c.l.b16 %v1269
        %v2527 = vunpack.c.h.b16 %v1269
        %v2528 = vunpack.c.l.b16 %v1270
        %v2529 = vunpack.c.h.b16 %v1270
        %v2530 = vunpack.c.l.b16 %v1271
        %v2531 = vunpack.c.h.b16 %v1271
        %v2532 = vunpack.c.l.b16 %v1272
        %v2533 = vunpack.c.h.b16 %v1272
        %v2534 = vunpack.c.l.b16 %v1273
        %v2535 = vunpack.c.h.b16 %v1273
        %v2536 = vunpack.c.l.b16 %v1274
        %v2537 = vunpack.c.h.b16 %v1274
        %v2538 = vunpack.c.l.b16 %v1275
        %v2539 = vunpack.c.h.b16 %v1275
        %v2540 = vunpack.c.l.b16 %v1276
        %v2541 = vunpack.c.h.b16 %v1276
        %v2542 = vunpack.c.l.b16 %v1277
        %v2543 = vunpack.c.h.b16 %v1277
        %v2544 = vunpack.c.l.b16 %v1278
        %v2545 = vunpack.c.h.b16 %v1278
        %v2546 = vunpack.c.l.b16 %v1279
        %v2547 = vunpack.c.h.b16 %v1279
        %v2548 = vunpack.c.l.b16 %v1280
        %v2549 = vunpack.c.h.b16 %v1280
        %v2550 = vunpack.c.l.b16 %v1281
        %v2551 = vunpack.c.h.b16 %v1281
        %v2552 = vunpack.c.l.b16 %v1282
        %v2553 = vunpack.c.h.b16 %v1282
        %v2554 = vunpack.c.l.b16 %v1283
        %v2555 = vunpack.c.h.b16 %v1283
        %v2556 = vunpack.c.l.b16 %v1284
        %v2557 = vunpack.c.h.b16 %v1284
        %v2558 = vunpack.c.l.b16 %v1285
        %v2559 = vunpack.c.h.b16 %v1285
        %v2560 = vunpack.c.l.b16 %v1286
        %v2561 = vunpack.c.h.b16 %v1286
        %v2562 = vunpack.c.l.b16 %v1287
        %v2563 = vunpack.c.h.b16 %v1287
        %v2564 = vunpack.c.l.b16 %v1288
        %v2565 = vunpack.c.h.b16 %v1288
        %v2566 = vunpack.c.l.b16 %v1289
        %v2567 = vunpack.c.h.b16 %v1289
        %v2568 = vunpack.c.l.b16 %v1290
        %v2569 = vunpack.c.h.b16 %v1290
        %v2570 = vunpack.c.l.b16 %v1291
        %v2571 = vunpack.c.h.b16 %v1291
        %v2572 = vunpack.c.l.b16 %v1292
        %v2573 = vunpack.c.h.b16 %v1292
        %v2574 = vunpack.c.l.b16 %v1293
        %v2575 = vunpack.c.h.b16 %v1293
        %v2576 = vunpack.c.l.b16 %v1294
        %v2577 = vunpack.c.h.b16 %v1294
        %v2578 = vunpack.c.l.b16 %v1295
        %v2579 = vunpack.c.h.b16 %v1295
        %v2580 = vunpack.c.l.b16 %v1296
        %v2581 = vunpack.c.h.b16 %v1296
        %v2582 = vunpack.c.l.b16 %v1297
        %v2583 = vunpack.c.h.b16 %v1297
        %v2584 = vunpack.c.l.b16 %v1298
        %v2585 = vunpack.c.h.b16 %v1298
        %v2586 = vunpack.c.l.b16 %v1299
        %v2587 = vunpack.c.h.b16 %v1299
        %v2588 = vunpack.c.l.b16 %v1300
        %v2589 = vunpack.c.h.b16 %v1300
        %v2590 = vunpack.c.l.b16 %v1301
        %v2591 = vunpack.c.h.b16 %v1301
        %v2592 = vunpack.c.l.b16 %v1302
        %v2593 = vunpack.c.h.b16 %v1302
        %v2594 = vunpack.c.l.b16 %v1303
        %v2595 = vunpack.c.h.b16 %v1303
        %v2596 = vunpack.c.l.b16 %v1304
        %v2597 = vunpack.c.h.b16 %v1304
        %v2598 = vunpack.c.l.b16 %v1305
        %v2599 = vunpack.c.h.b16 %v1305
        %v2600 = vunpack.c.l.b16 %v1306
        %v2601 = vunpack.c.h.b16 %v1306
        %v2602 = vunpack.c.l.b16 %v1307
        %v2603 = vunpack.c.h.b16 %v1307
        %v2604 = vunpack.c.l.b16 %v1308
        %v2605 = vunpack.c.h.b16 %v1308
        %v2606 = vunpack.c.l.b16 %v1309
        %v2607 = vunpack.c.h.b16 %v1309
        %v2608 = vunpack.c.l.b16 %v1310
        %v2609 = vunpack.c.h.b16 %v1310
        %v2610 = vunpack.c.l.b16 %v1311
        %v2611 = vunpack.c.h.b16 %v1311
        %v2612 = vunpack.c.l.b16 %v1312
        %v2613 = vunpack.c.h.b16 %v1312
        %v2614 = vunpack.c.l.b16 %v1313
        %v2615 = vunpack.c.h.b16 %v1313
        %v2616 = vunpack.c.l.b16 %v1314
        %v2617 = vunpack.c.h.b16 %v1314
        %v2618 = vunpack.c.l.b16 %v1315
        %v2619 = vunpack.c.h.b16 %v1315
        %v2620 = vunpack.c.l.b16 %v1316
        %v2621 = vunpack.c.h.b16 %v1316
        %v2622 = vunpack.c.l.b16 %v1317
        %v2623 = vunpack.c.h.b16 %v1317
        %v2624 = vunpack.c.l.b16 %v1318
        %v2625 = vunpack.c.h.b16 %v1318
        %v2626 = vunpack.c.l.b16 %v1319
        %v2627 = vunpack.c.h.b16 %v1319
        %v2628 = vunpack.c.l.b16 %v1320
        %v2629 = vunpack.c.h.b16 %v1320
        %v2630 = vunpack.c.l.b16 %v1321
        %v2631 = vunpack.c.h.b16 %v1321
        %v2632 = vunpack.c.l.b16 %v1322
        %v2633 = vunpack.c.h.b16 %v1322
        %v2634 = vunpack.c.l.b16 %v1323
        %v2635 = vunpack.c.h.b16 %v1323
        %v2636 = vunpack.c.l.b16 %v1324
        %v2637 = vunpack.c.h.b16 %v1324
        %v2638 = vunpack.c.l.b16 %v1325
        %v2639 = vunpack.c.h.b16 %v1325
        %v2640 = vunpack.c.l.b16 %v1326
        %v2641 = vunpack.c.h.b16 %v1326
        %v2642 = vunpack.c.l.b16 %v1327
        %v2643 = vunpack.c.h.b16 %v1327
        %v2644 = vunpack.c.l.b16 %v1328
        %v2645 = vunpack.c.h.b16 %v1328
        %v2646 = vunpack.c.l.b16 %v1329
        %v2647 = vunpack.c.h.b16 %v1329
        %v2648 = vunpack.c.l.b16 %v1330
        %v2649 = vunpack.c.h.b16 %v1330
        %v2650 = vunpack.c.l.b16 %v1331
        %v2651 = vunpack.c.h.b16 %v1331
        %v2652 = vunpack.c.l.b16 %v1332
        %v2653 = vunpack.c.h.b16 %v1332
        %v2654 = vunpack.c.l.b16 %v1333
        %v2655 = vunpack.c.h.b16 %v1333
        %v2656 = vunpack.c.l.b16 %v1334
        %v2657 = vunpack.c.h.b16 %v1334
        %v2658 = vunpack.c.l.b16 %v1335
        %v2659 = vunpack.c.h.b16 %v1335
        %v2660 = vunpack.c.l.b16 %v1336
        %v2661 = vunpack.c.h.b16 %v1336
        %v2662 = vunpack.c.l.b16 %v1337
        %v2663 = vunpack.c.h.b16 %v1337
        %v2664 = vunpack.c.l.b16 %v1338
        %v2665 = vunpack.c.h.b16 %v1338
        %v2666 = vunpack.c.l.b16 %v1339
        %v2667 = vunpack.c.h.b16 %v1339
        %v2668 = vunpack.c.l.b16 %v1340
        %v2669 = vunpack.c.h.b16 %v1340
        %v2670 = vunpack.c.l.b16 %v1341
        %v2671 = vunpack.c.h.b16 %v1341
        %v2672 = vunpack.c.l.b16 %v1342
        %v2673 = vunpack.c.h.b16 %v1342
        %v2674 = vunpack.c.l.b16 %v1343
        %v2675 = vunpack.c.h.b16 %v1343
        %v2676 = vunpack.c.l.b16 %v1344
        %v2677 = vunpack.c.h.b16 %v1344
        %v2678 = vunpack.c.l.b16 %v1345
        %v2679 = vunpack.c.h.b16 %v1345
        %v2680 = vunpack.c.l.b16 %v1346
        %v2681 = vunpack.c.h.b16 %v1346
        %v2682 = vunpack.c.l.b16 %v1347
        %v2683 = vunpack.c.h.b16 %v1347
        %v2684 = vunpack.c.l.b16 %v1348
        %v2685 = vunpack.c.h.b16 %v1348
        %v2686 = vunpack.c.l.b16 %v1349
        %v2687 = vunpack.c.h.b16 %v1349
        %v2688 = vunpack.c.l.b16 %v1350
        %v2689 = vunpack.c.h.b16 %v1350
        %v2690 = vunpack.c.l.b16 %v1351
        %v2691 = vunpack.c.h.b16 %v1351
        %v2692 = vunpack.c.l.b16 %v1352
        %v2693 = vunpack.c.h.b16 %v1352
        %v2694 = vunpack.c.l.b16 %v1353
        %v2695 = vunpack.c.h.b16 %v1353
        %v2696 = vunpack.c.l.b16 %v1354
        %v2697 = vunpack.c.h.b16 %v1354
        %v2698 = vunpack.c.l.b16 %v1355
        %v2699 = vunpack.c.h.b16 %v1355
        %v2700 = vunpack.c.l.b16 %v1356
        %v2701 = vunpack.c.h.b16 %v1356
        %v2702 = vunpack.c.l.b16 %v1357
        %v2703 = vunpack.c.h.b16 %v1357
        %v2704 = vunpack.c.l.b16 %v1358
        %v2705 = vunpack.c.h.b16 %v1358
        %v2706 = vunpack.c.l.b16 %v1359
        %v2707 = vunpack.c.h.b16 %v1359
        %v2708 = vunpack.c.l.b16 %v1360
        %v2709 = vunpack.c.h.b16 %v1360
        %v2710 = vunpack.c.l.b16 %v1361
        %v2711 = vunpack.c.h.b16 %v1361
        %v2712 = vunpack.c.l.b16 %v1362
        %v2713 = vunpack.c.h.b16 %v1362
        %v2714 = vunpack.c.l.b16 %v1363
        %v2715 = vunpack.c.h.b16 %v1363
        %v2716 = vunpack.c.l.b16 %v1364
        %v2717 = vunpack.c.h.b16 %v1364
        %v2718 = vunpack.c.l.b16 %v1365
        %v2719 = vunpack.c.h.b16 %v1365
        %v2720 = vunpack.c.l.b16 %v1366
        %v2721 = vunpack.c.h.b16 %v1366
        %v2722 = vunpack.c.l.b16 %v1367
        %v2723 = vunpack.c.h.b16 %v1367
        %v2724 = vunpack.c.l.b16 %v1368
        %v2725 = vunpack.c.h.b16 %v1368
        %v2726 = vunpack.c.l.b16 %v1369
        %v2727 = vunpack.c.h.b16 %v1369
        %v2728 = vunpack.c.l.b16 %v1370
        %v2729 = vunpack.c.h.b16 %v1370
        %v2730 = vunpack.c.l.b16 %v1371
        %v2731 = vunpack.c.h.b16 %v1371
        %v2732 = vunpack.c.l.b16 %v1372
        %v2733 = vunpack.c.h.b16 %v1372
        %v2734 = vunpack.c.l.b16 %v1373
        %v2735 = vunpack.c.h.b16 %v1373
        %v2736 = vunpack.c.l.b16 %v1374
        %v2737 = vunpack.c.h.b16 %v1374
        %v2738 = vunpack.c.l.b16 %v1375
        %v2739 = vunpack.c.h.b16 %v1375
        %v2740 = vunpack.c.l.b16 %v1376
        %v2741 = vunpack.c.h.b16 %v1376
        %v2742 = vunpack.c.l.b16 %v1377
        %v2743 = vunpack.c.h.b16 %v1377
        %v2744 = vunpack.c.l.b16 %v1378
        %v2745 = vunpack.c.h.b16 %v1378
        %v2746 = vunpack.c.l.b16 %v1379
        %v2747 = vunpack.c.h.b16 %v1379
        %v2748 = vunpack.c.l.b16 %v1380
        %v2749 = vunpack.c.h.b16 %v1380
        %v2750 = vunpack.c.l.b16 %v1381
        %v2751 = vunpack.c.h.b16 %v1381
        %v2752 = vunpack.c.l.b16 %v1382
        %v2753 = vunpack.c.h.b16 %v1382
        %v2754 = vunpack.c.l.b16 %v1383
        %v2755 = vunpack.c.h.b16 %v1383
        %v2756 = vunpack.c.l.b16 %v1384
        %v2757 = vunpack.c.h.b16 %v1384
        %v2758 = vunpack.c.l.b16 %v1385
        %v2759 = vunpack.c.h.b16 %v1385
        %v2760 = vunpack.c.l.b16 %v1386
        %v2761 = vunpack.c.h.b16 %v1386
        %v2762 = vunpack.c.l.b16 %v1387
        %v2763 = vunpack.c.h.b16 %v1387
        %v2764 = vunpack.c.l.b16 %v1388
        %v2765 = vunpack.c.h.b16 %v1388
        %v2766 = vunpack.c.l.b16 %v1389
        %v2767 = vunpack.c.h.b16 %v1389
        %v2768 = vunpack.c.l.b16 %v1390
        %v2769 = vunpack.c.h.b16 %v1390
        %v2770 = vunpack.c.l.b16 %v1391
        %v2771 = vunpack.c.h.b16 %v1391
        %v2772 = vunpack.c.l.b16 %v1392
        %v2773 = vunpack.c.h.b16 %v1392
        %v2774 = vunpack.c.l.b16 %v1393
        %v2775 = vunpack.c.h.b16 %v1393
        %v2776 = vunpack.c.l.b16 %v1394
        %v2777 = vunpack.c.h.b16 %v1394
        %v2778 = vunpack.c.l.b16 %v1395
        %v2779 = vunpack.c.h.b16 %v1395
        %v2780 = vunpack.c.l.b16 %v1396
        %v2781 = vunpack.c.h.b16 %v1396
        %v2782 = vunpack.c.l.b16 %v1397
        %v2783 = vunpack.c.h.b16 %v1397
        %v2784 = vunpack.c.l.b16 %v1398
        %v2785 = vunpack.c.h.b16 %v1398
        %v2786 = vunpack.c.l.b16 %v1399
        %v2787 = vunpack.c.h.b16 %v1399
        %v2788 = vunpack.c.l.b16 %v1400
        %v2789 = vunpack.c.h.b16 %v1400
        %v2790 = vunpack.c.l.b16 %v1401
        %v2791 = vunpack.c.h.b16 %v1401
        %v2792 = vpack.c.b16 %v1994, %v1992
        %v2793 = vpack.c.b16 %v1995, %v1993
        %v2794 = vpack.c.b16 %v1998, %v1996
        %v2795 = vpack.c.b16 %v1999, %v1997
        %v2796 = vpack.c.b16 %v2002, %v2000
        %v2797 = vpack.c.b16 %v2003, %v2001
        %v2798 = vpack.c.b16 %v2006, %v2004
        %v2799 = vpack.c.b16 %v2007, %v2005
        %v2800 = vpack.c.b16 %v2010, %v2008
        %v2801 = vpack.c.b16 %v2011, %v2009
        %v2802 = vpack.c.b16 %v2014, %v2012
        %v2803 = vpack.c.b16 %v2015, %v2013
        %v2804 = vpack.c.b16 %v2018, %v2016
        %v2805 = vpack.c.b16 %v2019, %v2017
        %v2806 = vpack.c.b16 %v2022, %v2020
        %v2807 = vpack.c.b16 %v2023, %v2021
        %v2808 = vpack.c.b16 %v2026, %v2024
        %v2809 = vpack.c.b16 %v2027, %v2025
        %v2810 = vpack.c.b16 %v2030, %v2028
        %v2811 = vpack.c.b16 %v2031, %v2029
        %v2812 = vpack.c.b16 %v2034, %v2032
        %v2813 = vpack.c.b16 %v2035, %v2033
        %v2814 = vpack.c.b16 %v2038, %v2036
        %v2815 = vpack.c.b16 %v2039, %v2037
        %v2816 = vpack.c.b16 %v2042, %v2040
        %v2817 = vpack.c.b16 %v2043, %v2041
        %v2818 = vpack.c.b16 %v2046, %v2044
        %v2819 = vpack.c.b16 %v2047, %v2045
        %v2820 = vpack.c.b16 %v2050, %v2048
        %v2821 = vpack.c.b16 %v2051, %v2049
        %v2822 = vpack.c.b16 %v2054, %v2052
        %v2823 = vpack.c.b16 %v2055, %v2053
        %v2824 = vpack.c.b16 %v2058, %v2056
        %v2825 = vpack.c.b16 %v2059, %v2057
        %v2826 = vpack.c.b16 %v2062, %v2060
        %v2827 = vpack.c.b16 %v2063, %v2061
        %v2828 = vpack.c.b16 %v2066, %v2064
        %v2829 = vpack.c.b16 %v2067, %v2065
        %v2830 = vpack.c.b16 %v2070, %v2068
        %v2831 = vpack.c.b16 %v2071, %v2069
        %v2832 = vpack.c.b16 %v2074, %v2072
        %v2833 = vpack.c.b16 %v2075, %v2073
        %v2834 = vpack.c.b16 %v2078, %v2076
        %v2835 = vpack.c.b16 %v2079, %v2077
        %v2836 = vpack.c.b16 %v2082, %v2080
        %v2837 = vpack.c.b16 %v2083, %v2081
        %v2838 = vpack.c.b16 %v2086, %v2084
        %v2839 = vpack.c.b16 %v2087, %v2085
        %v2840 = vpack.c.b16 %v2090, %v2088
        %v2841 = vpack.c.b16 %v2091, %v2089
        %v2842 = vpack.c.b16 %v2094, %v2092
        %v2843 = vpack.c.b16 %v2095, %v2093
        %v2844 = vpack.c.b16 %v2098, %v2096
        %v2845 = vpack.c.b16 %v2099, %v2097
        %v2846 = vpack.c.b16 %v2102, %v2100
        %v2847 = vpack.c.b16 %v2103, %v2101
        %v2848 = vpack.c.b16 %v2106, %v2104
        %v2849 = vpack.c.b16 %v2107, %v2105
        %v2850 = vpack.c.b16 %v2110, %v2108
        %v2851 = vpack.c.b16 %v2111, %v2109
        %v2852 = vpack.c.b16 %v2114, %v2112
        %v2853 = vpack.c.b16 %v2115, %v2113
        %v2854 = vpack.c.b16 %v2118, %v2116
        %v2855 = vpack.c.b16 %v2119, %v2117
        %v2856 = vpack.c.b16 %v2122, %v2120
        %v2857 = vpack.c.b16 %v2123, %v2121
        %v2858 = vpack.c.b16 %v2126, %v2124
        %v2859 = vpack.c.b16 %v2127, %v2125
        %v2860 = vpack.c.b16 %v2130, %v2128
        %v2861 = vpack.c.b16 %v2131, %v2129
        %v2862 = vpack.c.b16 %v2134, %v2132
        %v2863 = vpack.c.b16 %v2135, %v2133
        %v2864 = vpack.c.b16 %v2138, %v2136
        %v2865 = vpack.c.b16 %v2139, %v2137
        %v2866 = vpack.c.b16 %v2142, %v2140
        %v2867 = vpack.c.b16 %v2143, %v2141
        %v2868 = vpack.c.b16 %v2146, %v2144
        %v2869 = vpack.c.b16 %v2147, %v2145
        %v2870 = vpack.c.b16 %v2150, %v2148
        %v2871 = vpack.c.b16 %v2151, %v2149
        %v2872 = vpack.c.b16 %v2154, %v2152
        %v2873 = vpack.c.b16 %v2155, %v2153
        %v2874 = vpack.c.b16 %v2158, %v2156
        %v2875 = vpack.c.b16 %v2159, %v2157
        %v2876 = vpack.c.b16 %v2162, %v2160
        %v2877 = vpack.c.b16 %v2163, %v2161
        %v2878 = vpack.c.b16 %v2166, %v2164
        %v2879 = vpack.c.b16 %v2167, %v2165
        %v2880 = vpack.c.b16 %v2170, %v2168
        %v2881 = vpack.c.b16 %v2171, %v2169
        %v2882 = vpack.c.b16 %v2174, %v2172
        %v2883 = vpack.c.b16 %v2175, %v2173
        %v2884 = vpack.c.b16 %v2178, %v2176
        %v2885 = vpack.c.b16 %v2179, %v2177
        %v2886 = vpack.c.b16 %v2182, %v2180
        %v2887 = vpack.c.b16 %v2183, %v2181
        %v2888 = vpack.c.b16 %v2186, %v2184
        %v2889 = vpack.c.b16 %v2187, %v2185
        %v2890 = vpack.c.b16 %v2190, %v2188
        %v2891 = vpack.c.b16 %v2191, %v2189
        %v2892 = vpack.c.b16 %v2194, %v2192
        %v2893 = vpack.c.b16 %v2195, %v2193
        %v2894 = vpack.c.b16 %v2198, %v2196
        %v2895 = vpack.c.b16 %v2199, %v2197
        %v2896 = vpack.c.b16 %v2202, %v2200
        %v2897 = vpack.c.b16 %v2203, %v2201
        %v2898 = vpack.c.b16 %v2206, %v2204
        %v2899 = vpack.c.b16 %v2207, %v2205
        %v2900 = vpack.c.b16 %v2210, %v2208
        %v2901 = vpack.c.b16 %v2211, %v2209
        %v2902 = vpack.c.b16 %v2214, %v2212
        %v2903 = vpack.c.b16 %v2215, %v2213
        %v2904 = vpack.c.b16 %v2218, %v2216
        %v2905 = vpack.c.b16 %v2219, %v2217
        %v2906 = vpack.c.b16 %v2222, %v2220
        %v2907 = vpack.c.b16 %v2223, %v2221
        %v2908 = vpack.c.b16 %v2226, %v2224
        %v2909 = vpack.c.b16 %v2227, %v2225
        %v2910 = vpack.c.b16 %v2230, %v2228
        %v2911 = vpack.c.b16 %v2231, %v2229
        %v2912 = vpack.c.b16 %v2234, %v2232
        %v2913 = vpack.c.b16 %v2235, %v2233
        %v2914 = vpack.c.b16 %v2238, %v2236
        %v2915 = vpack.c.b16 %v2239, %v2237
        %v2916 = vpack.c.b16 %v2242, %v2240
        %v2917 = vpack.c.b16 %v2243, %v2241
        %v2918 = vpack.c.b16 %v2246, %v2244
        %v2919 = vpack.c.b16 %v2247, %v2245
        %v2920 = vpack.c.b16 %v2250, %v2248
        %v2921 = vpack.c.b16 %v2251, %v2249
        %v2922 = vpack.c.b16 %v2254, %v2252
        %v2923 = vpack.c.b16 %v2255, %v2253
        %v2924 = vpack.c.b16 %v2258, %v2256
        %v2925 = vpack.c.b16 %v2259, %v2257
        %v2926 = vpack.c.b16 %v2262, %v2260
        %v2927 = vpack.c.b16 %v2263, %v2261
        %v2928 = vpack.c.b16 %v2266, %v2264
        %v2929 = vpack.c.b16 %v2267, %v2265
        %v2930 = vpack.c.b16 %v2270, %v2268
        %v2931 = vpack.c.b16 %v2271, %v2269
        %v2932 = vpack.c.b16 %v2274, %v2272
        %v2933 = vpack.c.b16 %v2275, %v2273
        %v2934 = vpack.c.b16 %v2278, %v2276
        %v2935 = vpack.c.b16 %v2279, %v2277
        %v2936 = vpack.c.b16 %v2282, %v2280
        %v2937 = vpack.c.b16 %v2283, %v2281
        %v2938 = vpack.c.b16 %v2286, %v2284
        %v2939 = vpack.c.b16 %v2287, %v2285
        %v2940 = vpack.c.b16 %v2290, %v2288
        %v2941 = vpack.c.b16 %v2291, %v2289
        %v2942 = vpack.c.b16 %v2294, %v2292
        %v2943 = vpack.c.b16 %v2295, %v2293
        %v2944 = vpack.c.b16 %v2298, %v2296
        %v2945 = vpack.c.b16 %v2299, %v2297
        %v2946 = vpack.c.b16 %v2302, %v2300
        %v2947 = vpack.c.b16 %v2303, %v2301
        %v2948 = vpack.c.b16 %v2306, %v2304
        %v2949 = vpack.c.b16 %v2307, %v2305
        %v2950 = vpack.c.b16 %v2310, %v2308
        %v2951 = vpack.c.b16 %v2311, %v2309
        %v2952 = vpack.c.b16 %v2314, %v2312
        %v2953 = vpack.c.b16 %v2315, %v2313
        %v2954 = vpack.c.b16 %v2318, %v2316
        %v2955 = vpack.c.b16 %v2319, %v2317
        %v2956 = vpack.c.b16 %v2322, %v2320
        %v2957 = vpack.c.b16 %v2323, %v2321
        %v2958 = vpack.c.b16 %v2326, %v2324
        %v2959 = vpack.c.b16 %v2327, %v2325
        %v2960 = vpack.c.b16 %v2330, %v2328
        %v2961 = vpack.c.b16 %v2331, %v2329
        %v2962 = vpack.c.b16 %v2334, %v2332
        %v2963 = vpack.c.b16 %v2335, %v2333
        %v2964 = vpack.c.b16 %v2338, %v2336
        %v2965 = vpack.c.b16 %v2339, %v2337
        %v2966 = vpack.c.b16 %v2342, %v2340
        %v2967 = vpack.c.b16 %v2343, %v2341
        %v2968 = vpack.c.b16 %v2346, %v2344
        %v2969 = vpack.c.b16 %v2347, %v2345
        %v2970 = vpack.c.b16 %v2350, %v2348
        %v2971 = vpack.c.b16 %v2351, %v2349
        %v2972 = vpack.c.b16 %v2354, %v2352
        %v2973 = vpack.c.b16 %v2355, %v2353
        %v2974 = vpack.c.b16 %v2358, %v2356
        %v2975 = vpack.c.b16 %v2359, %v2357
        %v2976 = vpack.c.b16 %v2362, %v2360
        %v2977 = vpack.c.b16 %v2363, %v2361
        %v2978 = vpack.c.b16 %v2366, %v2364
        %v2979 = vpack.c.b16 %v2367, %v2365
        %v2980 = vpack.c.b16 %v2370, %v2368
        %v2981 = vpack.c.b16 %v2371, %v2369
        %v2982 = vpack.c.b16 %v2374, %v2372
        %v2983 = vpack.c.b16 %v2375, %v2373
        %v2984 = vpack.c.b16 %v2378, %v2376
        %v2985 = vpack.c.b16 %v2379, %v2377
        %v2986 = vpack.c.b16 %v2382, %v2380
        %v2987 = vpack.c.b16 %v2383, %v2381
        %v2988 = vpack.c.b16 %v2386, %v2384
        %v2989 = vpack.c.b16 %v2387, %v2385
        %v2990 = vpack.c.b16 %v2390, %v2388
        %v2991 = vpack.c.b16 %v2391, %v2389
        %v2992 = vpack.c.b16 %v2394, %v2392
        %v2993 = vpack.c.b16 %v2395, %v2393
        %v2994 = vpack.c.b16 %v2398, %v2396
        %v2995 = vpack.c.b16 %v2399, %v2397
        %v2996 = vpack.c.b16 %v2402, %v2400
        %v2997 = vpack.c.b16 %v2403, %v2401
        %v2998 = vpack.c.b16 %v2406, %v2404
        %v2999 = vpack.c.b16 %v2407, %v2405
        %v3000 = vpack.c.b16 %v2410, %v2408
        %v3001 = vpack.c.b16 %v2411, %v2409
        %v3002 = vpack.c.b16 %v2414, %v2412
        %v3003 = vpack.c.b16 %v2415, %v2413
        %v3004 = vpack.c.b16 %v2418, %v2416
        %v3005 = vpack.c.b16 %v2419, %v2417
        %v3006 = vpack.c.b16 %v2422, %v2420
        %v3007 = vpack.c.b16 %v2423, %v2421
        %v3008 = vpack.c.b16 %v2426, %v2424
        %v3009 = vpack.c.b16 %v2427, %v2425
        %v3010 = vpack.c.b16 %v2430, %v2428
        %v3011 = vpack.c.b16 %v2431, %v2429
        %v3012 = vpack.c.b16 %v2434, %v2432
        %v3013 = vpack.c.b16 %v2435, %v2433
        %v3014 = vpack.c.b16 %v2438, %v2436
        %v3015 = vpack.c.b16 %v2439, %v2437
        %v3016 = vpack.c.b16 %v2442, %v2440
        %v3017 = vpack.c.b16 %v2443, %v2441
        %v3018 = vpack.c.b16 %v2446, %v2444
        %v3019 = vpack.c.b16 %v2447, %v2445
        %v3020 = vpack.c.b16 %v2450, %v2448
        %v3021 = vpack.c.b16 %v2451, %v2449
        %v3022 = vpack.c.b16 %v2454, %v2452
        %v3023 = vpack.c.b16 %v2455, %v2453
        %v3024 = vpack.c.b16 %v2458, %v2456
        %v3025 = vpack.c.b16 %v2459, %v2457
        %v3026 = vpack.c.b16 %v2462, %v2460
        %v3027 = vpack.c.b16 %v2463, %v2461
        %v3028 = vpack.c.b16 %v2466, %v2464
        %v3029 = vpack.c.b16 %v2467, %v2465
        %v3030 = vpack.c.b16 %v2470, %v2468
        %v3031 = vpack.c.b16 %v2471, %v2469
        %v3032 = vpack.c.b16 %v2474, %v2472
        %v3033 = vpack.c.b16 %v2475, %v2473
        %v3034 = vpack.c.b16 %v2478, %v2476
        %v3035 = vpack.c.b16 %v2479, %v2477
        %v3036 = vpack.c.b16 %v2482, %v2480
        %v3037 = vpack.c.b16 %v2483, %v2481
        %v3038 = vpack.c.b16 %v2486, %v2484
        %v3039 = vpack.c.b16 %v2487, %v2485
        %v3040 = vpack.c.b16 %v2490, %v2488
        %v3041 = vpack.c.b16 %v2491, %v2489
        %v3042 = vpack.c.b16 %v2494, %v2492
        %v3043 = vpack.c.b16 %v2495, %v2493
        %v3044 = vpack.c.b16 %v2498, %v2496
        %v3045 = vpack.c.b16 %v2499, %v2497
        %v3046 = vpack.c.b16 %v2502, %v2500
        %v3047 = vpack.c.b16 %v2503, %v2501
        %v3048 = vpack.c.b16 %v2506, %v2504
        %v3049 = vpack.c.b16 %v2507, %v2505
        %v3050 = vpack.c.b16 %v2510, %v2508
        %v3051 = vpack.c.b16 %v2511, %v2509
        %v3052 = vpack.c.b16 %v2514, %v2512
        %v3053 = vpack.c.b16 %v2515, %v2513
        %v3054 = vpack.c.b16 %v2518, %v2516
        %v3055 = vpack.c.b16 %v2519, %v2517
        %v3056 = vpack.c.b16 %v2522, %v2520
        %v3057 = vpack.c.b16 %v2523, %v2521
        %v3058 = vpack.c.b16 %v2526, %v2524
        %v3059 = vpack.c.b16 %v2527, %v2525
        %v3060 = vpack.c.b16 %v2530, %v2528
        %v3061 = vpack.c.b16 %v2531, %v2529
        %v3062 = vpack.c.b16 %v2534, %v2532
        %v3063 = vpack.c.b16 %v2535, %v2533
        %v3064 = vpack.c.b16 %v2538, %v2536
        %v3065 = vpack.c.b16 %v2539, %v2537
        %v3066 = vpack.c.b16 %v2542, %v2540
        %v3067 = vpack.c.b16 %v2543, %v2541
        %v3068 = vpack.c.b16 %v2546, %v2544
        %v3069 = vpack.c.b16 %v2547, %v2545
        %v3070 = vpack.c.b16 %v2550, %v2548
        %v3071 = vpack.c.b16 %v2551, %v2549
        %v3072 = vpack.c.b16 %v2554, %v2552
        %v3073 = vpack.c.b16 %v2555, %v2553
        %v3074 = vpack.c.b16 %v2558, %v2556
        %v3075 = vpack.c.b16 %v2559, %v2557
        %v3076 = vpack.c.b16 %v2562, %v2560
        %v3077 = vpack.c.b16 %v2563, %v2561
        %v3078 = vpack.c.b16 %v2566, %v2564
        %v3079 = vpack.c.b16 %v2567, %v2565
        %v3080 = vpack.c.b16 %v2570, %v2568
        %v3081 = vpack.c.b16 %v2571, %v2569
        %v3082 = vpack.c.b16 %v2574, %v2572
        %v3083 = vpack.c.b16 %v2575, %v2573
        %v3084 = vpack.c.b16 %v2578, %v2576
        %v3085 = vpack.c.b16 %v2579, %v2577
        %v3086 = vpack.c.b16 %v2582, %v2580
        %v3087 = vpack.c.b16 %v2583, %v2581
        %v3088 = vpack.c.b16 %v2586, %v2584
        %v3089 = vpack.c.b16 %v2587, %v2585
        %v3090 = vpack.c.b16 %v2590, %v2588
        %v3091 = vpack.c.b16 %v2591, %v2589
        %v3092 = vpack.c.b16 %v2594, %v2592
        %v3093 = vpack.c.b16 %v2595, %v2593
        %v3094 = vpack.c.b16 %v2598, %v2596
        %v3095 = vpack.c.b16 %v2599, %v2597
        %v3096 = vpack.c.b16 %v2602, %v2600
        %v3097 = vpack.c.b16 %v2603, %v2601
        %v3098 = vpack.c.b16 %v2606, %v2604
        %v3099 = vpack.c.b16 %v2607, %v2605
        %v3100 = vpack.c.b16 %v2610, %v2608
        %v3101 = vpack.c.b16 %v2611, %v2609
        %v3102 = vpack.c.b16 %v2614, %v2612
        %v3103 = vpack.c.b16 %v2615, %v2613
        %v3104 = vpack.c.b16 %v2618, %v2616
        %v3105 = vpack.c.b16 %v2619, %v2617
        %v3106 = vpack.c.b16 %v2622, %v2620
        %v3107 = vpack.c.b16 %v2623, %v2621
        %v3108 = vpack.c.b16 %v2626, %v2624
        %v3109 = vpack.c.b16 %v2627, %v2625
        %v3110 = vpack.c.b16 %v2630, %v2628
        %v3111 = vpack.c.b16 %v2631, %v2629
        %v3112 = vpack.c.b16 %v2634, %v2632
        %v3113 = vpack.c.b16 %v2635, %v2633
        %v3114 = vpack.c.b16 %v2638, %v2636
        %v3115 = vpack.c.b16 %v2639, %v2637
        %v3116 = vpack.c.b16 %v2642, %v2640
        %v3117 = vpack.c.b16 %v2643, %v2641
        %v3118 = vpack.c.b16 %v2646, %v2644
        %v3119 = vpack.c.b16 %v2647, %v2645
        %v3120 = vpack.c.b16 %v2650, %v2648
        %v3121 = vpack.c.b16 %v2651, %v2649
        %v3122 = vpack.c.b16 %v2654, %v2652
        %v3123 = vpack.c.b16 %v2655, %v2653
        %v3124 = vpack.c.b16 %v2658, %v2656
        %v3125 = vpack.c.b16 %v2659, %v2657
        %v3126 = vpack.c.b16 %v2662, %v2660
        %v3127 = vpack.c.b16 %v2663, %v2661
        %v3128 = vpack.c.b16 %v2666, %v2664
        %v3129 = vpack.c.b16 %v2667, %v2665
        %v3130 = vpack.c.b16 %v2670, %v2668
        %v3131 = vpack.c.b16 %v2671, %v2669
        %v3132 = vpack.c.b16 %v2674, %v2672
        %v3133 = vpack.c.b16 %v2675, %v2673
        %v3134 = vpack.c.b16 %v2678, %v2676
        %v3135 = vpack.c.b16 %v2679, %v2677
        %v3136 = vpack.c.b16 %v2682, %v2680
        %v3137 = vpack.c.b16 %v2683, %v2681
        %v3138 = vpack.c.b16 %v2686, %v2684
        %v3139 = vpack.c.b16 %v2687, %v2685
        %v3140 = vpack.c.b16 %v2690, %v2688
        %v3141 = vpack.c.b16 %v2691, %v2689
        %v3142 = vpack.c.b16 %v2694, %v2692
        %v3143 = vpack.c.b16 %v2695, %v2693
        %v3144 = vpack.c.b16 %v2698, %v2696
        %v3145 = vpack.c.b16 %v2699, %v2697
        %v3146 = vpack.c.b16 %v2702, %v2700
        %v3147 = vpack.c.b16 %v2703, %v2701
        %v3148 = vpack.c.b16 %v2706, %v2704
        %v3149 = vpack.c.b16 %v2707, %v2705
        %v3150 = vpack.c.b16 %v2710, %v2708
        %v3151 = vpack.c.b16 %v2711, %v2709
        %v3152 = vpack.c.b16 %v2714, %v2712
        %v3153 = vpack.c.b16 %v2715, %v2713
        %v3154 = vpack.c.b16 %v2718, %v2716
        %v3155 = vpack.c.b16 %v2719, %v2717
        %v3156 = vpack.c.b16 %v2722, %v2720
        %v3157 = vpack.c.b16 %v2723, %v2721
        %v3158 = vpack.c.b16 %v2726, %v2724
        %v3159 = vpack.c.b16 %v2727, %v2725
        %v3160 = vpack.c.b16 %v2730, %v2728
        %v3161 = vpack.c.b16 %v2731, %v2729
        %v3162 = vpack.c.b16 %v2734, %v2732
        %v3163 = vpack.c.b16 %v2735, %v2733
        %v3164 = vpack.c.b16 %v2738, %v2736
        %v3165 = vpack.c.b16 %v2739, %v2737
        %v3166 = vpack.c.b16 %v2742, %v2740
        %v3167 = vpack.c.b16 %v2743, %v2741
        %v3168 = vpack.c.b16 %v2746, %v2744
        %v3169 = vpack.c.b16 %v2747, %v2745
        %v3170 = vpack.c.b16 %v2750, %v2748
        %v3171 = vpack.c.b16 %v2751, %v2749
        %v3172 = vpack.c.b16 %v2754, %v2752
        %v3173 = vpack.c.b16 %v2755, %v2753
        %v3174 = vpack.c.b16 %v2758, %v2756
        %v3175 = vpack.c.b16 %v2759, %v2757
        %v3176 = vpack.c.b16 %v2762, %v2760
        %v3177 = vpack.c.b16 %v2763, %v2761
        %v3178 = vpack.c.b16 %v2766, %v2764
        %v3179 = vpack.c.b16 %v2767, %v2765
        %v3180 = vpack.c.b16 %v2770, %v2768
        %v3181 = vpack.c.b16 %v2771, %v2769
        %v3182 = vpack.c.b16 %v2774, %v2772
        %v3183 = vpack.c.b16 %v2775, %v2773
        %v3184 = vpack.c.b16 %v2778, %v2776
        %v3185 = vpack.c.b16 %v2779, %v2777
        %v3186 = vpack.c.b16 %v2782, %v2780
        %v3187 = vpack.c.b16 %v2783, %v2781
        %v3188 = vpack.c.b16 %v2786, %v2784
        %v3189 = vpack.c.b16 %v2787, %v2785
        %v3190 = vpack.c.b16 %v2790, %v2788
        %v3191 = vpack.c.b16 %v2791, %v2789
        %3592 = vmatprep.subr.bf16.mxu0 %v2807
        %3593 = vmatpush1.bf16.msra.mxu0 %v2806
        %3594 = vmatprep.subr.bf16.mxu0 %v2805
        %3595 = vmatpush1.bf16.msra.mxu0 %v2804
        %3596 = vmatprep.subr.bf16.mxu0 %v2803
        %3597 = vmatpush1.bf16.msra.mxu0 %v2802
        %3598 = vmatprep.subr.bf16.mxu0 %v2801
        %3599 = vmatpush1.bf16.msra.mxu0 %v2800
        %3600 = vmatprep.subr.bf16.mxu0 %v2799
        %3601 = vmatpush1.bf16.msra.mxu0 %v2798
        %3602 = vmatprep.subr.bf16.mxu0 %v2797
        %3603 = vmatpush1.bf16.msra.mxu0 %v2796
        %3604 = vmatprep.subr.bf16.mxu0 %v2795
        %3605 = vmatpush1.bf16.msra.mxu0 %v2794
        %3606 = vmatprep.subr.bf16.mxu0 %v2793
        %3607 = vmatpush1.bf16.msra.mxu0 %v2792
        %3608 = vmatprep.subr.bf16.mxu0 %v2823
        %3609 = vmatpush2.bf16.msra.mxu0 %v2822
        %3610 = vmatprep.subr.bf16.mxu0 %v2821
        %3611 = vmatpush2.bf16.msra.mxu0 %v2820
        %3612 = vmatprep.subr.bf16.mxu0 %v2819
        %3613 = vmatpush2.bf16.msra.mxu0 %v2818
        %3614 = vmatprep.subr.bf16.mxu0 %v2817
        %3615 = vmatpush2.bf16.msra.mxu0 %v2816
        %3616 = vmatprep.subr.bf16.mxu0 %v2815
        %3617 = vmatpush2.bf16.msra.mxu0 %v2814
        %3618 = vmatprep.subr.bf16.mxu0 %v2813
        %3619 = vmatpush2.bf16.msra.mxu0 %v2812
        %3620 = vmatprep.subr.bf16.mxu0 %v2811
        %3621 = vmatpush2.bf16.msra.mxu0 %v2810
        %3622 = vmatprep.subr.bf16.mxu0 %v2809
        %3623 = vmatpush2.bf16.msra.mxu0 %v2808
        %3624 = vmatprep.mubr.bf16.mxu0 %v1443
        %3625 = vmatmul.mubr.bf16.gmra.mxu0 %v1429
        %v3626 = vpop.f32.mrf.mxu0
        %v3627 = vadd.f32 0.0, %v3626
        %v3628 = vpop.f32.mrf.mxu0
        %v3629 = vadd.f32 0.0, %v3628
        %v3630 = vpop.f32.mrf.mxu0
        %v3631 = vpop.f32.mrf.mxu0
        %3632 = vdwg.mxu0
        %3633 = vmatprep.subr.bf16.mxu0 %v2839
        %3634 = vmatpush1.bf16.msra.mxu0 %v2838
        %3635 = vmatprep.subr.bf16.mxu0 %v2837
        %3636 = vmatpush1.bf16.msra.mxu0 %v2836
        %3637 = vmatprep.subr.bf16.mxu0 %v2835
        %3638 = vmatpush1.bf16.msra.mxu0 %v2834
        %3639 = vmatprep.subr.bf16.mxu0 %v2833
        %3640 = vmatpush1.bf16.msra.mxu0 %v2832
        %3641 = vmatprep.subr.bf16.mxu0 %v2831
        %3642 = vmatpush1.bf16.msra.mxu0 %v2830
        %3643 = vmatprep.subr.bf16.mxu0 %v2829
        %3644 = vmatpush1.bf16.msra.mxu0 %v2828
        %3645 = vmatprep.subr.bf16.mxu0 %v2827
        %3646 = vmatpush1.bf16.msra.mxu0 %v2826
        %3647 = vmatprep.subr.bf16.mxu0 %v2825
        %3648 = vmatpush1.bf16.msra.mxu0 %v2824
        %3649 = vmatprep.subr.bf16.mxu0 %v2855
        %3650 = vmatpush2.bf16.msra.mxu0 %v2854
        %3651 = vmatprep.subr.bf16.mxu0 %v2853
        %3652 = vmatpush2.bf16.msra.mxu0 %v2852
        %3653 = vmatprep.subr.bf16.mxu0 %v2851
        %3654 = vmatpush2.bf16.msra.mxu0 %v2850
        %3655 = vmatprep.subr.bf16.mxu0 %v2849
        %3656 = vmatpush2.bf16.msra.mxu0 %v2848
        %3657 = vmatprep.subr.bf16.mxu0 %v2847
        %3658 = vmatpush2.bf16.msra.mxu0 %v2846
        %3659 = vmatprep.subr.bf16.mxu0 %v2845
        %3660 = vmatpush2.bf16.msra.mxu0 %v2844
        %3661 = vmatprep.subr.bf16.mxu0 %v2843
        %3662 = vmatpush2.bf16.msra.mxu0 %v2842
        %3663 = vmatprep.subr.bf16.mxu0 %v2841
        %3664 = vmatpush2.bf16.msra.mxu0 %v2840
        %3665 = vmatprep.mubr.bf16.mxu0 %v1453
        %3666 = vmatmul.mubr.bf16.gmra.mxu0 %v1451
        %v3667 = vpop.f32.mrf.mxu0
        %v3668 = vadd.f32 %v3627, %v3667
        %v3669 = vpop.f32.mrf.mxu0
        %v3670 = vadd.f32 %v3629, %v3669
        %v3671 = vpop.f32.mrf.mxu0
        %v3672 = vpop.f32.mrf.mxu0
        %3673 = vdwg.mxu0
        %3674 = vmatprep.subr.bf16.mxu0 %v2871
        %3675 = vmatpush1.bf16.msra.mxu0 %v2870
        %3676 = vmatprep.subr.bf16.mxu0 %v2869
        %3677 = vmatpush1.bf16.msra.mxu0 %v2868
        %3678 = vmatprep.subr.bf16.mxu0 %v2867
        %3679 = vmatpush1.bf16.msra.mxu0 %v2866
        %3680 = vmatprep.subr.bf16.mxu0 %v2865
        %3681 = vmatpush1.bf16.msra.mxu0 %v2864
        %3682 = vmatprep.subr.bf16.mxu0 %v2863
        %3683 = vmatpush1.bf16.msra.mxu0 %v2862
        %3684 = vmatprep.subr.bf16.mxu0 %v2861
        %3685 = vmatpush1.bf16.msra.mxu0 %v2860
        %3686 = vmatprep.subr.bf16.mxu0 %v2859
        %3687 = vmatpush1.bf16.msra.mxu0 %v2858
        %3688 = vmatprep.subr.bf16.mxu0 %v2857
        %3689 = vmatpush1.bf16.msra.mxu0 %v2856
        %3690 = vmatprep.subr.bf16.mxu0 %v2887
        %3691 = vmatpush2.bf16.msra.mxu0 %v2886
        %3692 = vmatprep.subr.bf16.mxu0 %v2885
        %3693 = vmatpush2.bf16.msra.mxu0 %v2884
        %3694 = vmatprep.subr.bf16.mxu0 %v2883
        %3695 = vmatpush2.bf16.msra.mxu0 %v2882
        %3696 = vmatprep.subr.bf16.mxu0 %v2881
        %3697 = vmatpush2.bf16.msra.mxu0 %v2880
        %3698 = vmatprep.subr.bf16.mxu0 %v2879
        %3699 = vmatpush2.bf16.msra.mxu0 %v2878
        %3700 = vmatprep.subr.bf16.mxu0 %v2877
        %3701 = vmatpush2.bf16.msra.mxu0 %v2876
        %3702 = vmatprep.subr.bf16.mxu0 %v2875
        %3703 = vmatpush2.bf16.msra.mxu0 %v2874
        %3704 = vmatprep.subr.bf16.mxu0 %v2873
        %3705 = vmatpush2.bf16.msra.mxu0 %v2872
        %3706 = vmatprep.mubr.bf16.mxu0 %v1450
        %3707 = vmatmul.mubr.bf16.gmra.mxu0 %v1436
        %v3708 = vpop.f32.mrf.mxu0
        %v3709 = vadd.f32 %v3668, %v3708
        %v3710 = vpop.f32.mrf.mxu0
        %v3711 = vadd.f32 %v3670, %v3710
        %v3712 = vpop.f32.mrf.mxu0
        %v3713 = vpop.f32.mrf.mxu0
        %3714 = vdwg.mxu0
        %3715 = vmatprep.subr.bf16.mxu0 %v2903
        %3716 = vmatpush1.bf16.msra.mxu0 %v2902
        %3717 = vmatprep.subr.bf16.mxu0 %v2901
        %3718 = vmatpush1.bf16.msra.mxu0 %v2900
        %3719 = vmatprep.subr.bf16.mxu0 %v2899
        %3720 = vmatpush1.bf16.msra.mxu0 %v2898
        %3721 = vmatprep.subr.bf16.mxu0 %v2897
        %3722 = vmatpush1.bf16.msra.mxu0 %v2896
        %3723 = vmatprep.subr.bf16.mxu0 %v2895
        %3724 = vmatpush1.bf16.msra.mxu0 %v2894
        %3725 = vmatprep.subr.bf16.mxu0 %v2893
        %3726 = vmatpush1.bf16.msra.mxu0 %v2892
        %3727 = vmatprep.subr.bf16.mxu0 %v2891
        %3728 = vmatpush1.bf16.msra.mxu0 %v2890
        %3729 = vmatprep.subr.bf16.mxu0 %v2889
        %3730 = vmatpush1.bf16.msra.mxu0 %v2888
        %3731 = vmatprep.subr.bf16.mxu0 %v2919
        %3732 = vmatpush2.bf16.msra.mxu0 %v2918
        %3733 = vmatprep.subr.bf16.mxu0 %v2917
        %3734 = vmatpush2.bf16.msra.mxu0 %v2916
        %3735 = vmatprep.subr.bf16.mxu0 %v2915
        %3736 = vmatpush2.bf16.msra.mxu0 %v2914
        %3737 = vmatprep.subr.bf16.mxu0 %v2913
        %3738 = vmatpush2.bf16.msra.mxu0 %v2912
        %3739 = vmatprep.subr.bf16.mxu0 %v2911
        %3740 = vmatpush2.bf16.msra.mxu0 %v2910
        %3741 = vmatprep.subr.bf16.mxu0 %v2909
        %3742 = vmatpush2.bf16.msra.mxu0 %v2908
        %3743 = vmatprep.subr.bf16.mxu0 %v2907
        %3744 = vmatpush2.bf16.msra.mxu0 %v2906
        %3745 = vmatprep.subr.bf16.mxu0 %v2905
        %3746 = vmatpush2.bf16.msra.mxu0 %v2904
        %3747 = vmatprep.mubr.bf16.mxu0 %v1454
        %3748 = vmatmul.mubr.bf16.gmra.mxu0 %v1452
        %v3749 = vpop.f32.mrf.mxu0
        %v3750 = vadd.f32 %v3709, %v3749
        %v3751 = vpop.f32.mrf.mxu0
        %v3752 = vadd.f32 %v3711, %v3751
        %v3753 = vpop.f32.mrf.mxu0
        %v3754 = vpop.f32.mrf.mxu0
        %3755 = vdwg.mxu0
        %3756 = vmatprep.subr.bf16.mxu0 %v2935
        %3757 = vmatpush1.bf16.msra.mxu0 %v2934
        %3758 = vmatprep.subr.bf16.mxu0 %v2933
        %3759 = vmatpush1.bf16.msra.mxu0 %v2932
        %3760 = vmatprep.subr.bf16.mxu0 %v2931
        %3761 = vmatpush1.bf16.msra.mxu0 %v2930
        %3762 = vmatprep.subr.bf16.mxu0 %v2929
        %3763 = vmatpush1.bf16.msra.mxu0 %v2928
        %3764 = vmatprep.subr.bf16.mxu0 %v2927
        %3765 = vmatpush1.bf16.msra.mxu0 %v2926
        %3766 = vmatprep.subr.bf16.mxu0 %v2925
        %3767 = vmatpush1.bf16.msra.mxu0 %v2924
        %3768 = vmatprep.subr.bf16.mxu0 %v2923
        %3769 = vmatpush1.bf16.msra.mxu0 %v2922
        %3770 = vmatprep.subr.bf16.mxu0 %v2921
        %3771 = vmatpush1.bf16.msra.mxu0 %v2920
        %3772 = vmatprep.subr.bf16.mxu0 %v2951
        %3773 = vmatpush2.bf16.msra.mxu0 %v2950
        %3774 = vmatprep.subr.bf16.mxu0 %v2949
        %3775 = vmatpush2.bf16.msra.mxu0 %v2948
        %3776 = vmatprep.subr.bf16.mxu0 %v2947
        %3777 = vmatpush2.bf16.msra.mxu0 %v2946
        %3778 = vmatprep.subr.bf16.mxu0 %v2945
        %3779 = vmatpush2.bf16.msra.mxu0 %v2944
        %3780 = vmatprep.subr.bf16.mxu0 %v2943
        %3781 = vmatpush2.bf16.msra.mxu0 %v2942
        %3782 = vmatprep.subr.bf16.mxu0 %v2941
        %3783 = vmatpush2.bf16.msra.mxu0 %v2940
        %3784 = vmatprep.subr.bf16.mxu0 %v2939
        %3785 = vmatpush2.bf16.msra.mxu0 %v2938
        %3786 = vmatprep.subr.bf16.mxu0 %v2937
        %3787 = vmatpush2.bf16.msra.mxu0 %v2936
        %3788 = vmatprep.mubr.bf16.mxu0 %v1492
        %3789 = vmatmul.mubr.bf16.gmra.mxu0 %v1478
        %v3790 = vpop.f32.mrf.mxu0
        %v3791 = vadd.f32 %v3750, %v3790
        %v3792 = vpop.f32.mrf.mxu0
        %v3793 = vadd.f32 %v3752, %v3792
        %v3794 = vpop.f32.mrf.mxu0
        %v3795 = vpop.f32.mrf.mxu0
        %3796 = vdwg.mxu0
        %3797 = vmatprep.subr.bf16.mxu0 %v2967
        %3798 = vmatpush1.bf16.msra.mxu0 %v2966
        %3799 = vmatprep.subr.bf16.mxu0 %v2965
        %3800 = vmatpush1.bf16.msra.mxu0 %v2964
        %3801 = vmatprep.subr.bf16.mxu0 %v2963
        %3802 = vmatpush1.bf16.msra.mxu0 %v2962
        %3803 = vmatprep.subr.bf16.mxu0 %v2961
        %3804 = vmatpush1.bf16.msra.mxu0 %v2960
        %3805 = vmatprep.subr.bf16.mxu0 %v2959
        %3806 = vmatpush1.bf16.msra.mxu0 %v2958
        %3807 = vmatprep.subr.bf16.mxu0 %v2957
        %3808 = vmatpush1.bf16.msra.mxu0 %v2956
        %3809 = vmatprep.subr.bf16.mxu0 %v2955
        %3810 = vmatpush1.bf16.msra.mxu0 %v2954
        %3811 = vmatprep.subr.bf16.mxu0 %v2953
        %3812 = vmatpush1.bf16.msra.mxu0 %v2952
        %3813 = vmatprep.subr.bf16.mxu0 %v2983
        %3814 = vmatpush2.bf16.msra.mxu0 %v2982
        %3815 = vmatprep.subr.bf16.mxu0 %v2981
        %3816 = vmatpush2.bf16.msra.mxu0 %v2980
        %3817 = vmatprep.subr.bf16.mxu0 %v2979
        %3818 = vmatpush2.bf16.msra.mxu0 %v2978
        %3819 = vmatprep.subr.bf16.mxu0 %v2977
        %3820 = vmatpush2.bf16.msra.mxu0 %v2976
        %3821 = vmatprep.subr.bf16.mxu0 %v2975
        %3822 = vmatpush2.bf16.msra.mxu0 %v2974
        %3823 = vmatprep.subr.bf16.mxu0 %v2973
        %3824 = vmatpush2.bf16.msra.mxu0 %v2972
        %3825 = vmatprep.subr.bf16.mxu0 %v2971
        %3826 = vmatpush2.bf16.msra.mxu0 %v2970
        %3827 = vmatprep.subr.bf16.mxu0 %v2969
        %3828 = vmatpush2.bf16.msra.mxu0 %v2968
        %3829 = vmatprep.mubr.bf16.mxu0 %v1502
        %3830 = vmatmul.mubr.bf16.gmra.mxu0 %v1500
        %v3831 = vpop.f32.mrf.mxu0
        %v3832 = vadd.f32 %v3791, %v3831
        %v3833 = vpop.f32.mrf.mxu0
        %v3834 = vadd.f32 %v3793, %v3833
        %v3835 = vpop.f32.mrf.mxu0
        %v3836 = vpop.f32.mrf.mxu0
        %3837 = vdwg.mxu0
        %3838 = vmatprep.subr.bf16.mxu0 %v2999
        %3839 = vmatpush1.bf16.msra.mxu0 %v2998
        %3840 = vmatprep.subr.bf16.mxu0 %v2997
        %3841 = vmatpush1.bf16.msra.mxu0 %v2996
        %3842 = vmatprep.subr.bf16.mxu0 %v2995
        %3843 = vmatpush1.bf16.msra.mxu0 %v2994
        %3844 = vmatprep.subr.bf16.mxu0 %v2993
        %3845 = vmatpush1.bf16.msra.mxu0 %v2992
        %3846 = vmatprep.subr.bf16.mxu0 %v2991
        %3847 = vmatpush1.bf16.msra.mxu0 %v2990
        %3848 = vmatprep.subr.bf16.mxu0 %v2989
        %3849 = vmatpush1.bf16.msra.mxu0 %v2988
        %3850 = vmatprep.subr.bf16.mxu0 %v2987
        %3851 = vmatpush1.bf16.msra.mxu0 %v2986
        %3852 = vmatprep.subr.bf16.mxu0 %v2985
        %3853 = vmatpush1.bf16.msra.mxu0 %v2984
        %3854 = vmatprep.subr.bf16.mxu0 %v3015
        %3855 = vmatpush2.bf16.msra.mxu0 %v3014
        %3856 = vmatprep.subr.bf16.mxu0 %v3013
        %3857 = vmatpush2.bf16.msra.mxu0 %v3012
        %3858 = vmatprep.subr.bf16.mxu0 %v3011
        %3859 = vmatpush2.bf16.msra.mxu0 %v3010
        %3860 = vmatprep.subr.bf16.mxu0 %v3009
        %3861 = vmatpush2.bf16.msra.mxu0 %v3008
        %3862 = vmatprep.subr.bf16.mxu0 %v3007
        %3863 = vmatpush2.bf16.msra.mxu0 %v3006
        %3864 = vmatprep.subr.bf16.mxu0 %v3005
        %3865 = vmatpush2.bf16.msra.mxu0 %v3004
        %3866 = vmatprep.subr.bf16.mxu0 %v3003
        %3867 = vmatpush2.bf16.msra.mxu0 %v3002
        %3868 = vmatprep.subr.bf16.mxu0 %v3001
        %3869 = vmatpush2.bf16.msra.mxu0 %v3000
        %3870 = vmatprep.mubr.bf16.mxu0 %v1499
        %3871 = vmatmul.mubr.bf16.gmra.mxu0 %v1485
        %v3872 = vpop.f32.mrf.mxu0
        %v3873 = vadd.f32 %v3832, %v3872
        %v3874 = vpop.f32.mrf.mxu0
        %v3875 = vadd.f32 %v3834, %v3874
        %v3876 = vpop.f32.mrf.mxu0
        %v3877 = vpop.f32.mrf.mxu0
        %3878 = vdwg.mxu0
        %3879 = vmatprep.subr.bf16.mxu0 %v3031
        %3880 = vmatpush1.bf16.msra.mxu0 %v3030
        %3881 = vmatprep.subr.bf16.mxu0 %v3029
        %3882 = vmatpush1.bf16.msra.mxu0 %v3028
        %3883 = vmatprep.subr.bf16.mxu0 %v3027
        %3884 = vmatpush1.bf16.msra.mxu0 %v3026
        %3885 = vmatprep.subr.bf16.mxu0 %v3025
        %3886 = vmatpush1.bf16.msra.mxu0 %v3024
        %3887 = vmatprep.subr.bf16.mxu0 %v3023
        %3888 = vmatpush1.bf16.msra.mxu0 %v3022
        %3889 = vmatprep.subr.bf16.mxu0 %v3021
        %3890 = vmatpush1.bf16.msra.mxu0 %v3020
        %3891 = vmatprep.subr.bf16.mxu0 %v3019
        %3892 = vmatpush1.bf16.msra.mxu0 %v3018
        %3893 = vmatprep.subr.bf16.mxu0 %v3017
        %3894 = vmatpush1.bf16.msra.mxu0 %v3016
        %3895 = vmatprep.subr.bf16.mxu0 %v3047
        %3896 = vmatpush2.bf16.msra.mxu0 %v3046
        %3897 = vmatprep.subr.bf16.mxu0 %v3045
        %3898 = vmatpush2.bf16.msra.mxu0 %v3044
        %3899 = vmatprep.subr.bf16.mxu0 %v3043
        %3900 = vmatpush2.bf16.msra.mxu0 %v3042
        %3901 = vmatprep.subr.bf16.mxu0 %v3041
        %3902 = vmatpush2.bf16.msra.mxu0 %v3040
        %3903 = vmatprep.subr.bf16.mxu0 %v3039
        %3904 = vmatpush2.bf16.msra.mxu0 %v3038
        %3905 = vmatprep.subr.bf16.mxu0 %v3037
        %3906 = vmatpush2.bf16.msra.mxu0 %v3036
        %3907 = vmatprep.subr.bf16.mxu0 %v3035
        %3908 = vmatpush2.bf16.msra.mxu0 %v3034
        %3909 = vmatprep.subr.bf16.mxu0 %v3033
        %3910 = vmatpush2.bf16.msra.mxu0 %v3032
        %3911 = vmatprep.mubr.bf16.mxu0 %v1503
        %3912 = vmatmul.mubr.bf16.gmra.mxu0 %v1501
        %v3913 = vpop.f32.mrf.mxu0
        %v3914 = vadd.f32 %v3873, %v3913
        %v3915 = vpop.f32.mrf.mxu0
        %v3916 = vadd.f32 %v3875, %v3915
        %v3917 = vpop.f32.mrf.mxu0
        %v3918 = vpop.f32.mrf.mxu0
        %3919 = vdwg.mxu0
        %3920 = vmatprep.subr.bf16.mxu0 %v3063
        %3921 = vmatpush1.bf16.msra.mxu0 %v3062
        %3922 = vmatprep.subr.bf16.mxu0 %v3061
        %3923 = vmatpush1.bf16.msra.mxu0 %v3060
        %3924 = vmatprep.subr.bf16.mxu0 %v3059
        %3925 = vmatpush1.bf16.msra.mxu0 %v3058
        %3926 = vmatprep.subr.bf16.mxu0 %v3057
        %3927 = vmatpush1.bf16.msra.mxu0 %v3056
        %3928 = vmatprep.subr.bf16.mxu0 %v3055
        %3929 = vmatpush1.bf16.msra.mxu0 %v3054
        %3930 = vmatprep.subr.bf16.mxu0 %v3053
        %3931 = vmatpush1.bf16.msra.mxu0 %v3052
        %3932 = vmatprep.subr.bf16.mxu0 %v3051
        %3933 = vmatpush1.bf16.msra.mxu0 %v3050
        %3934 = vmatprep.subr.bf16.mxu0 %v3049
        %3935 = vmatpush1.bf16.msra.mxu0 %v3048
        %3936 = vmatprep.subr.bf16.mxu0 %v3079
        %3937 = vmatpush2.bf16.msra.mxu0 %v3078
        %3938 = vmatprep.subr.bf16.mxu0 %v3077
        %3939 = vmatpush2.bf16.msra.mxu0 %v3076
        %3940 = vmatprep.subr.bf16.mxu0 %v3075
        %3941 = vmatpush2.bf16.msra.mxu0 %v3074
        %3942 = vmatprep.subr.bf16.mxu0 %v3073
        %3943 = vmatpush2.bf16.msra.mxu0 %v3072
        %3944 = vmatprep.subr.bf16.mxu0 %v3071
        %3945 = vmatpush2.bf16.msra.mxu0 %v3070
        %3946 = vmatprep.subr.bf16.mxu0 %v3069
        %3947 = vmatpush2.bf16.msra.mxu0 %v3068
        %3948 = vmatprep.subr.bf16.mxu0 %v3067
        %3949 = vmatpush2.bf16.msra.mxu0 %v3066
        %3950 = vmatprep.subr.bf16.mxu0 %v3065
        %3951 = vmatpush2.bf16.msra.mxu0 %v3064
        %3952 = vmatprep.mubr.bf16.mxu0 %v1541
        %3953 = vmatmul.mubr.bf16.gmra.mxu0 %v1527
        %v3954 = vpop.f32.mrf.mxu0
        %v3955 = vadd.f32 %v3914, %v3954
        %v3956 = vpop.f32.mrf.mxu0
        %v3957 = vadd.f32 %v3916, %v3956
        %v3958 = vpop.f32.mrf.mxu0
        %v3959 = vpop.f32.mrf.mxu0
        %3960 = vdwg.mxu0
        %3961 = vmatprep.subr.bf16.mxu0 %v3095
        %3962 = vmatpush1.bf16.msra.mxu0 %v3094
        %3963 = vmatprep.subr.bf16.mxu0 %v3093
        %3964 = vmatpush1.bf16.msra.mxu0 %v3092
        %3965 = vmatprep.subr.bf16.mxu0 %v3091
        %3966 = vmatpush1.bf16.msra.mxu0 %v3090
        %3967 = vmatprep.subr.bf16.mxu0 %v3089
        %3968 = vmatpush1.bf16.msra.mxu0 %v3088
        %3969 = vmatprep.subr.bf16.mxu0 %v3087
        %3970 = vmatpush1.bf16.msra.mxu0 %v3086
        %3971 = vmatprep.subr.bf16.mxu0 %v3085
        %3972 = vmatpush1.bf16.msra.mxu0 %v3084
        %3973 = vmatprep.subr.bf16.mxu0 %v3083
        %3974 = vmatpush1.bf16.msra.mxu0 %v3082
        %3975 = vmatprep.subr.bf16.mxu0 %v3081
        %3976 = vmatpush1.bf16.msra.mxu0 %v3080
        %3977 = vmatprep.subr.bf16.mxu0 %v3111
        %3978 = vmatpush2.bf16.msra.mxu0 %v3110
        %3979 = vmatprep.subr.bf16.mxu0 %v3109
        %3980 = vmatpush2.bf16.msra.mxu0 %v3108
        %3981 = vmatprep.subr.bf16.mxu0 %v3107
        %3982 = vmatpush2.bf16.msra.mxu0 %v3106
        %3983 = vmatprep.subr.bf16.mxu0 %v3105
        %3984 = vmatpush2.bf16.msra.mxu0 %v3104
        %3985 = vmatprep.subr.bf16.mxu0 %v3103
        %3986 = vmatpush2.bf16.msra.mxu0 %v3102
        %3987 = vmatprep.subr.bf16.mxu0 %v3101
        %3988 = vmatpush2.bf16.msra.mxu0 %v3100
        %3989 = vmatprep.subr.bf16.mxu0 %v3099
        %3990 = vmatpush2.bf16.msra.mxu0 %v3098
        %3991 = vmatprep.subr.bf16.mxu0 %v3097
        %3992 = vmatpush2.bf16.msra.mxu0 %v3096
        %3993 = vmatprep.mubr.bf16.mxu0 %v1551
        %3994 = vmatmul.mubr.bf16.gmra.mxu0 %v1549
        %v3995 = vpop.f32.mrf.mxu0
        %v3996 = vadd.f32 %v3955, %v3995
        %v3997 = vpop.f32.mrf.mxu0
        %v3998 = vadd.f32 %v3957, %v3997
        %v3999 = vpop.f32.mrf.mxu0
        %v4000 = vpop.f32.mrf.mxu0
        %4001 = vdwg.mxu0
        %4002 = vmatprep.subr.bf16.mxu0 %v3127
        %4003 = vmatpush1.bf16.msra.mxu0 %v3126
        %4004 = vmatprep.subr.bf16.mxu0 %v3125
        %4005 = vmatpush1.bf16.msra.mxu0 %v3124
        %4006 = vmatprep.subr.bf16.mxu0 %v3123
        %4007 = vmatpush1.bf16.msra.mxu0 %v3122
        %4008 = vmatprep.subr.bf16.mxu0 %v3121
        %4009 = vmatpush1.bf16.msra.mxu0 %v3120
        %4010 = vmatprep.subr.bf16.mxu0 %v3119
        %4011 = vmatpush1.bf16.msra.mxu0 %v3118
        %4012 = vmatprep.subr.bf16.mxu0 %v3117
        %4013 = vmatpush1.bf16.msra.mxu0 %v3116
        %4014 = vmatprep.subr.bf16.mxu0 %v3115
        %4015 = vmatpush1.bf16.msra.mxu0 %v3114
        %4016 = vmatprep.subr.bf16.mxu0 %v3113
        %4017 = vmatpush1.bf16.msra.mxu0 %v3112
        %4018 = vmatprep.subr.bf16.mxu0 %v3143
        %4019 = vmatpush2.bf16.msra.mxu0 %v3142
        %4020 = vmatprep.subr.bf16.mxu0 %v3141
        %4021 = vmatpush2.bf16.msra.mxu0 %v3140
        %4022 = vmatprep.subr.bf16.mxu0 %v3139
        %4023 = vmatpush2.bf16.msra.mxu0 %v3138
        %4024 = vmatprep.subr.bf16.mxu0 %v3137
        %4025 = vmatpush2.bf16.msra.mxu0 %v3136
        %4026 = vmatprep.subr.bf16.mxu0 %v3135
        %4027 = vmatpush2.bf16.msra.mxu0 %v3134
        %4028 = vmatprep.subr.bf16.mxu0 %v3133
        %4029 = vmatpush2.bf16.msra.mxu0 %v3132
        %4030 = vmatprep.subr.bf16.mxu0 %v3131
        %4031 = vmatpush2.bf16.msra.mxu0 %v3130
        %4032 = vmatprep.subr.bf16.mxu0 %v3129
        %4033 = vmatpush2.bf16.msra.mxu0 %v3128
        %4034 = vmatprep.mubr.bf16.mxu0 %v1548
        %4035 = vmatmul.mubr.bf16.gmra.mxu0 %v1534
        %v4036 = vpop.f32.mrf.mxu0
        %v4037 = vadd.f32 %v3996, %v4036
        %v4038 = vpop.f32.mrf.mxu0
        %v4039 = vadd.f32 %v3998, %v4038
        %v4040 = vpop.f32.mrf.mxu0
        %v4041 = vpop.f32.mrf.mxu0
        %4042 = vdwg.mxu0
        %4043 = vmatprep.subr.bf16.mxu0 %v3159
        %4044 = vmatpush1.bf16.msra.mxu0 %v3158
        %4045 = vmatprep.subr.bf16.mxu0 %v3157
        %4046 = vmatpush1.bf16.msra.mxu0 %v3156
        %4047 = vmatprep.subr.bf16.mxu0 %v3155
        %4048 = vmatpush1.bf16.msra.mxu0 %v3154
        %4049 = vmatprep.subr.bf16.mxu0 %v3153
        %4050 = vmatpush1.bf16.msra.mxu0 %v3152
        %4051 = vmatprep.subr.bf16.mxu0 %v3151
        %4052 = vmatpush1.bf16.msra.mxu0 %v3150
        %4053 = vmatprep.subr.bf16.mxu0 %v3149
        %4054 = vmatpush1.bf16.msra.mxu0 %v3148
        %4055 = vmatprep.subr.bf16.mxu0 %v3147
        %4056 = vmatpush1.bf16.msra.mxu0 %v3146
        %4057 = vmatprep.subr.bf16.mxu0 %v3145
        %4058 = vmatpush1.bf16.msra.mxu0 %v3144
        %4059 = vmatprep.subr.bf16.mxu0 %v3175
        %4060 = vmatpush2.bf16.msra.mxu0 %v3174
        %4061 = vmatprep.subr.bf16.mxu0 %v3173
        %4062 = vmatpush2.bf16.msra.mxu0 %v3172
        %4063 = vmatprep.subr.bf16.mxu0 %v3171
        %4064 = vmatpush2.bf16.msra.mxu0 %v3170
        %4065 = vmatprep.subr.bf16.mxu0 %v3169
        %4066 = vmatpush2.bf16.msra.mxu0 %v3168
        %4067 = vmatprep.subr.bf16.mxu0 %v3167
        %4068 = vmatpush2.bf16.msra.mxu0 %v3166
        %4069 = vmatprep.subr.bf16.mxu0 %v3165
        %4070 = vmatpush2.bf16.msra.mxu0 %v3164
        %4071 = vmatprep.subr.bf16.mxu0 %v3163
        %4072 = vmatpush2.bf16.msra.mxu0 %v3162
        %4073 = vmatprep.subr.bf16.mxu0 %v3161
        %4074 = vmatpush2.bf16.msra.mxu0 %v3160
        %4075 = vmatprep.mubr.bf16.mxu0 %v1552
        %4076 = vmatmul.mubr.bf16.gmra.mxu0 %v1550
        %v4077 = vpop.f32.mrf.mxu0
        %v4078 = vadd.f32 %v4037, %v4077
        %v4079 = vpop.f32.mrf.mxu0
        %v4080 = vadd.f32 %v4039, %v4079
        %v4081 = vpop.f32.mrf.mxu0
        %v4082 = vpop.f32.mrf.mxu0
        %4083 = vdwg.mxu0
        %4084 = vmatprep.subr.bf16.mxu0 %v3191
        %4085 = vmatpush1.bf16.msra.mxu0 %v3190
        %4086 = vmatprep.subr.bf16.mxu0 %v3189
        %4087 = vmatpush1.bf16.msra.mxu0 %v3188
        %4088 = vmatprep.subr.bf16.mxu0 %v3187
        %4089 = vmatpush1.bf16.msra.mxu0 %v3186
        %4090 = vmatprep.subr.bf16.mxu0 %v3185
        %4091 = vmatpush1.bf16.msra.mxu0 %v3184
        %4092 = vmatprep.subr.bf16.mxu0 %v3183
        %4093 = vmatpush1.bf16.msra.mxu0 %v3182
        %4094 = vmatprep.subr.bf16.mxu0 %v3181
        %4095 = vmatpush1.bf16.msra.mxu0 %v3180
        %4096 = vmatprep.subr.bf16.mxu0 %v3179
        %4097 = vmatpush1.bf16.msra.mxu0 %v3178
        %4098 = vmatprep.subr.bf16.mxu0 %v3177
        %4099 = vmatpush1.bf16.msra.mxu0 %v3176
        %4100 = vmatprep.subr.bf16.mxu0 0
        %4101 = vmatpush2.bf16.msra.mxu0 0
        %4102 = vmatprep.subr.bf16.mxu0 0
        %4103 = vmatpush2.bf16.msra.mxu0 0
        %4104 = vmatprep.subr.bf16.mxu0 0
        %4105 = vmatpush2.bf16.msra.mxu0 0
        %4106 = vmatprep.subr.bf16.mxu0 0
        %4107 = vmatpush2.bf16.msra.mxu0 0
        %4108 = vmatprep.subr.bf16.mxu0 0
        %4109 = vmatpush2.bf16.msra.mxu0 0
        %4110 = vmatprep.subr.bf16.mxu0 0
        %4111 = vmatpush2.bf16.msra.mxu0 0
        %4112 = vmatprep.subr.bf16.mxu0 0
        %4113 = vmatpush2.bf16.msra.mxu0 0
        %4114 = vmatprep.subr.bf16.mxu0 0
        %4115 = vmatpush2.bf16.msra.mxu0 0
        %4116 = vmatprep.mubr.bf16.mxu0 0
        %4117 = vmatmul.mubr.bf16.gmra.mxu0 %v1566
        %v4118 = vpop.f32.mrf.mxu0
        %v4119 = vadd.f32 %v4078, %v4118
        %v4120 = vpop.f32.mrf.mxu0
        %v4121 = vadd.f32 %v4080, %v4120
        %v4122 = vpop.f32.mrf.mxu0
        %v4123 = vpop.f32.mrf.mxu0
        %4124 = vdwg.mxu0
        %v4125 = vld [vmem:[%s435] sm:$0x3]
        %v4127 = vlaneseq
        %v4128 = vshrl.u32 %v4127, 7
        %v4129 = vsub.s32 0, %v4128
        %v4130 = vrot.slane %v4125, %v4129
        %v4131 = vlaneseq
        %v4132 = vshrl.u32 %v4131, 7
        %v4133 = vsub.s32 1, %v4132
        %v4134 = vrot.slane %v4125, %v4133
        %v4137 = vmul.f32 %v4119, %v4130
        %v4138 = vmul.f32 %v4121, %v4134
        %v4139 = vld [vmem:[%s444] sm:$0x3]
        %v4141 = vlaneseq
        %v4142 = vshrl.u32 %v4141, 7
        %v4143 = vsub.s32 0, %v4142
        %v4144 = vrot.slane %v4139, %v4143
        %v4145 = vlaneseq
        %v4146 = vshrl.u32 %v4145, 7
        %v4147 = vsub.s32 1, %v4146
        %v4148 = vrot.slane %v4139, %v4147
        %v4151 = vadd.f32 %v4137, %v4144
        %v4152 = vadd.f32 %v4138, %v4148
        %v4153 = vmax.f32 %v4151, 0.0
        %v4154 = vmax.f32 %v4152, 0.0
        %v4155 = vadd.f32 %v4153, 0.0
        %v4156 = vadd.f32 %v4154, 0.0
        %v4157 = vld [vmem:[#allocation17] sm:$0x3]
        %v4158 = vld [vmem:[%s453] sm:$0xff]
        %v4159 = vld [vmem:[%s453 + $0x8] sm:$0xff]
        %v4160 = vld [vmem:[%s453 + $0x10] sm:$0xff]
        %v4161 = vld [vmem:[%s453 + $0x18] sm:$0xff]
        %v4162 = vld [vmem:[%s453 + $0x20] sm:$0xff]
        %v4163 = vld [vmem:[%s453 + $0x28] sm:$0xff]
        %v4164 = vld [vmem:[%s453 + $0x30] sm:$0xff]
        %v4165 = vld [vmem:[%s453 + $0x38] sm:$0xff]
        %v4166 = vld [vmem:[%s453 + $0x40] sm:$0xff]
        %v4167 = vld [vmem:[%s453 + $0x48] sm:$0xff]
        %v4168 = vld [vmem:[%s453 + $0x50] sm:$0xff]
        %v4169 = vld [vmem:[%s453 + $0x58] sm:$0xff]
        %v4170 = vld [vmem:[%s453 + $0x60] sm:$0xff]
        %v4171 = vld [vmem:[%s453 + $0x68] sm:$0xff]
        %v4172 = vld [vmem:[%s453 + $0x70] sm:$0xff]
        %v4173 = vld [vmem:[%s453 + $0x78] sm:$0xff]
        %v4174 = vld [vmem:[%s453 + $0x80] sm:$0xff]
        %v4175 = vld [vmem:[%s453 + $0x88] sm:$0xff]
        %v4176 = vld [vmem:[%s453 + $0x90] sm:$0xff]
        %v4177 = vld [vmem:[%s453 + $0x98] sm:$0xff]
        %v4178 = vld [vmem:[%s453 + $0xa0] sm:$0xff]
        %v4179 = vld [vmem:[%s453 + $0xa8] sm:$0xff]
        %v4180 = vld [vmem:[%s453 + $0xb0] sm:$0xff]
        %v4181 = vld [vmem:[%s453 + $0xb8] sm:$0xff]
        %v4182 = vld [vmem:[%s453 + $0xc0] sm:$0xff]
        %v4183 = vld [vmem:[%s453 + $0xc8] sm:$0xff]
        %v4184 = vld [vmem:[%s453 + $0xd0] sm:$0xff]
        %v4185 = vld [vmem:[%s453 + $0xd8] sm:$0xff]
        %v4186 = vld [vmem:[%s453 + $0xe0] sm:$0xff]
        %v4187 = vld [vmem:[%s453 + $0xe8] sm:$0xff]
        %v4188 = vld [vmem:[%s453 + $0xf0] sm:$0xff]
        %v4189 = vld [vmem:[%s453 + $0xf8] sm:$0xff]
        %4190 = vmatprep.subr.mxu0 0.0
        %4191 = vmatpush1.msra.mxu0 %v4173
        %4192 = vmatprep.subr.mxu0 0.0
        %4193 = vmatpush1.msra.mxu0 %v4172
        %4194 = vmatprep.subr.mxu0 0.0
        %4195 = vmatpush1.msra.mxu0 %v4171
        %4196 = vmatprep.subr.mxu0 0.0
        %4197 = vmatpush1.msra.mxu0 %v4170
        %4198 = vmatprep.subr.mxu0 0.0
        %4199 = vmatpush1.msra.mxu0 %v4169
        %4200 = vmatprep.subr.mxu0 0.0
        %4201 = vmatpush1.msra.mxu0 %v4168
        %4202 = vmatprep.subr.mxu0 0.0
        %4203 = vmatpush1.msra.mxu0 %v4167
        %4204 = vmatprep.subr.mxu0 0.0
        %4205 = vmatpush1.msra.mxu0 %v4166
        %4206 = vmatprep.subr.mxu0 0.0
        %4207 = vmatpush1.msra.mxu0 %v4165
        %4208 = vmatprep.subr.mxu0 0.0
        %4209 = vmatpush1.msra.mxu0 %v4164
        %4210 = vmatprep.subr.mxu0 0.0
        %4211 = vmatpush1.msra.mxu0 %v4163
        %4212 = vmatprep.subr.mxu0 0.0
        %4213 = vmatpush1.msra.mxu0 %v4162
        %4214 = vmatprep.subr.mxu0 0.0
        %4215 = vmatpush1.msra.mxu0 %v4161
        %4216 = vmatprep.subr.mxu0 0.0
        %4217 = vmatpush1.msra.mxu0 %v4160
        %4218 = vmatprep.subr.mxu0 0.0
        %4219 = vmatpush1.msra.mxu0 %v4159
        %4220 = vmatprep.subr.mxu0 0.0
        %4221 = vmatpush1.msra.mxu0 %v4158
        %4222 = vmatprep.subr.mxu0 0.0
        %4223 = vmatpush2.msra.mxu0 %v4189
        %4224 = vmatprep.subr.mxu0 0.0
        %4225 = vmatpush2.msra.mxu0 %v4188
        %4226 = vmatprep.subr.mxu0 0.0
        %4227 = vmatpush2.msra.mxu0 %v4187
        %4228 = vmatprep.subr.mxu0 0.0
        %4229 = vmatpush2.msra.mxu0 %v4186
        %4230 = vmatprep.subr.mxu0 0.0
        %4231 = vmatpush2.msra.mxu0 %v4185
        %4232 = vmatprep.subr.mxu0 0.0
        %4233 = vmatpush2.msra.mxu0 %v4184
        %4234 = vmatprep.subr.mxu0 0.0
        %4235 = vmatpush2.msra.mxu0 %v4183
        %4236 = vmatprep.subr.mxu0 0.0
        %4237 = vmatpush2.msra.mxu0 %v4182
        %4238 = vmatprep.subr.mxu0 0.0
        %4239 = vmatpush2.msra.mxu0 %v4181
        %4240 = vmatprep.subr.mxu0 0.0
        %4241 = vmatpush2.msra.mxu0 %v4180
        %4242 = vmatprep.subr.mxu0 0.0
        %4243 = vmatpush2.msra.mxu0 %v4179
        %4244 = vmatprep.subr.mxu0 0.0
        %4245 = vmatpush2.msra.mxu0 %v4178
        %4246 = vmatprep.subr.mxu0 0.0
        %4247 = vmatpush2.msra.mxu0 %v4177
        %4248 = vmatprep.subr.mxu0 0.0
        %4249 = vmatpush2.msra.mxu0 %v4176
        %4250 = vmatprep.subr.mxu0 0.0
        %4251 = vmatpush2.msra.mxu0 %v4175
        %4252 = vmatprep.subr.mxu0 0.0
        %4253 = vmatpush2.msra.mxu0 %v4174
        %4254 = vmatprep.mubr.f32.mxu0 %v4156
        %4255 = vmatmul.mubr.f32.gmra.mxu0 %v4155
        %v4256 = vpop.f32.mrf.mxu0
        %v4257 = vadd.f32 0.0, %v4256
        %v4258 = vpop.f32.mrf.mxu0
        %4259 = vdwg.mxu0
        %v4260 = vadd.f32 %v4157, %v4257
        %4261 = vst [vmem:[#allocation17] sm:$0x3] %v4260
        // Predicated region
        $region93: #{tpu_custom_call.1} parent=55 // pred_check
          %p4262 = pneg %p252
        $region94: #{tpu_custom_call.1} parent=55 // pred_check_branch
          %4264 = sbr.rel (%p4262) target = $region96
        $region95: #{tpu_custom_call.1} parent=55 // pred_region
          %s4266 = ssub.s32 32, 32
          %4267 = vsyncadd [#allocation5], %s4266
          %s4269 = sshll.u32 [#allocation17], 4
          %s4270 = int_to_ptr.vmem [resolvable:$true] %s4269
          %4272 = dma.vmem_to_hbm [thread:$0]  %s4270, 32, %s9, [#allocation5]
        $region96: #{tpu_custom_call.1} parent=55 // pred_fallthru
          _
        // Predicated region
        $region97: #{tpu_custom_call.1} parent=55 // pred_check
          %p4273 = pneg %p252
        $region98: #{tpu_custom_call.1} parent=55 // pred_check_branch
          %4275 = sbr.rel (%p4273) target = $region100
        $region99: #{tpu_custom_call.1} parent=55 // pred_region
          %4276 = dma.done [#allocation5], 32
        $region100: #{tpu_custom_call.1} parent=55 // pred_fallthru
          _
      $region56: #{tpu_custom_call.1} parent=5 // pred_fallthru
        _
      %p4277 = scmp.le.s32.totalorder 2, %s25
      // Predicated region
      $region101: #{tpu_custom_call.1} parent=5 // pred_check
        %p4278 = pneg %p4277
      $region102: #{tpu_custom_call.1} parent=5 // pred_check_branch
        %4280 = sbr.rel (%p4278) target = $region104
      $region103: #{tpu_custom_call.1} parent=5 // pred_region
        %s4281 = ssub.s32 %s25, 2
      $region104: #{tpu_custom_call.1} parent=5 // pred_fallthru
        _
    $region6: #{tpu_custom_call.1} parent=1 // loop_footer
      %s29 = sadd.s32 1, %s25
    $region7: #{tpu_custom_call.1} parent=1 // loop_footer_branch
      %24 = sbr.rel target = $region3
    $region8: #{tpu_custom_call.1} parent=1 // loop_exit
      _
    %4282 = vsyncpa [#allocation4], 1
    %s4283 = scalar_lea.sflag [#allocation4], 1
    %4284 = vsyncpa %s4283, 1
    %4285 = vsyncpa [#allocation7], 1
    %4286 = vsyncpa [#allocation10], 1
    %s4287 = scalar_lea.sflag [#allocation10], 1
    %4288 = vsyncpa %s4287, 1
    %4289 = vsyncpa [#allocation13], 1
    %s4290 = scalar_lea.sflag [#allocation13], 1
    %4291 = vsyncpa %s4290, 1
    %4292 = vsyncpa [#allocation16], 1
    %4293 = vsyncpa [#allocation5], 1
    %s4294 = scalar_lea.sflag [#allocation5], 1
    %4295 = vsyncpa %s4294, 1

</llo_original>
